<compile_context>
chip_gen: v6e
topology: v6e:2x2x1
jax: 0.10.0
libtpu: 0.0.40
codegen_flags: <defaults>
</compile_context>

<pallas_src>
import jax
import jax.numpy as jnp
from jax.experimental import pallas as pl
from jax.experimental.pallas import tpu as pltpu

NUM_CATEGORIES = 12     # nn.Embedding(12, ...)
EMB_DIM = 32            # config.emb_dim

# Below this many ids, a custom call is pure overhead: use the XLA gather.
_PALLAS_MIN_ROWS = 1024
# Default rows per tile (multiple of 8).  ~4 MiB double-buffered VMEM at 2048,
# safe on v5e (16 MiB scoped), v6e/v7x (32 MiB scoped), v7x (64 MiB physical).
_DEFAULT_TILE_ROWS = 2048


def _round_up(x, m):
    return ((x + m - 1) // m) * m


def _embedding_kernel(ids_ref, table_ref, o_ref):
    # ids_ref:   (TM, 1) int32   in VMEM (lane-padded; accounted for in TM choice)
    # table_ref: (V, E)  float32 in VMEM (resident across the whole grid)
    # o_ref:     (TM, E) float32 in VMEM
    ids = ids_ref[...]                                            # (TM, 1)
    tm = ids.shape[0]
    v = table_ref.shape[0]
    # one-hot via 2-D broadcasted iota compare (1-D iota is not supported on TPU)
    iota = jax.lax.broadcasted_iota(jnp.int32, (tm, v), 1)        # (TM, V)
    onehot = (iota == ids).astype(table_ref.dtype)                # (TM, V)
    o_ref[...] = jnp.dot(onehot, table_ref[...],
                         preferred_element_type=jnp.float32).astype(o_ref.dtype)


def _category_encoder_pallas(table, ids_flat, tile_rows=_DEFAULT_TILE_ROWS):
    """Gridded, double-buffered embedding lookup: (N,) int32 ids -> (N, E)."""
    n = ids_flat.shape[0]
    v, e = table.shape

    tm = _round_up(min(tile_rows, n), 8)          # rows per tile, multiple of 8
    n_pad = pl.cdiv(n, tm) * tm                   # pad N to a whole number of tiles
    ids_padded = jnp.pad(ids_flat, (0, n_pad - n)).reshape(n_pad, 1)

    out = pl.pallas_call(
        _embedding_kernel,
        out_shape=jax.ShapeDtypeStruct((n_pad, e), table.dtype),
        grid=(n_pad // tm,),
        in_specs=[
            pl.BlockSpec((tm, 1), lambda i: (i, 0)),      # ids tile, pipelined
            pl.BlockSpec((v, e), lambda i: (0, 0)),       # table resident in VMEM
        ],
        out_specs=pl.BlockSpec((tm, e), lambda i: (i, 0)),
        compiler_params=pltpu.CompilerParams(
            dimension_semantics=("parallel",),            # shard N across TCs (v7x)
        ),
    )(ids_padded, table)
    return out[:n]


def category_encoder(table, cat_ids, *, tile_rows=_DEFAULT_TILE_ROWS):
    """JAX equivalent of CategoryEncoder.forward: table[cat_ids] -> (..., E)."""
    lead_shape = cat_ids.shape
    emb_dim = table.shape[1]
    ids = cat_ids.reshape(-1).astype(jnp.int32)
    n = ids.shape[0]

    if n < _PALLAS_MIN_ROWS:
        # Dispatch/overhead-bound regime: plain XLA gather, fusable with neighbours.
        return table[ids].reshape(*lead_shape, emb_dim)

    out = _category_encoder_pallas(table, ids, tile_rows)
    return out.reshape(*lead_shape, emb_dim)


if __name__ == "__main__":
    key = jax.random.PRNGKey(0)
    k_tab, k_small, k_big = jax.random.split(key, 3)

    # nn.Embedding(12, emb_dim).weight
    table = jax.random.normal(k_tab, (NUM_CATEGORIES, EMB_DIM), jnp.float32) * 0.05

    # Realistic tiny input (batch=2, n_trials=3): exercises the XLA-gather fast path.
    cat_small = jax.random.randint(k_small, (2, 3), 0, NUM_CATEGORIES, jnp.int32)
    out_small = jax.block_until_ready(category_encoder(table, cat_small))
    assert out_small.shape == (2, 3, EMB_DIM)
    assert bool(jnp.allclose(out_small, table[cat_small], atol=1e-6, rtol=1e-6))

    # Larger batch (batch=8, n_trials=512 -> N=4096): exercises the gridded,
    # double-buffered Pallas kernel (2 tiles of 2048 rows, "parallel" N axis).
    cat_big = jax.random.randint(k_big, (8, 512), 0, NUM_CATEGORIES, jnp.int32)
    out_big = jax.block_until_ready(category_encoder(table, cat_big))
    assert out_big.shape == (8, 512, EMB_DIM)
    assert bool(jnp.allclose(out_big, table[cat_big], atol=1e-6, rtol=1e-6))
    assert bool(jnp.all(jnp.isfinite(out_big)))

    print("KERNEL_OK")
</pallas_src>

<mosaic_0001>
module attributes {stable_mosaic.version = 11 : i64} {
  func.func @_embedding_kernel(%arg0: i32, %arg1: memref<2048x1xi32, #tpu.memory_space<vmem>>, %arg2: memref<12x32xf32, #tpu.memory_space<vmem>>, %arg3: memref<2048x32xf32, #tpu.memory_space<vmem>>) attributes {dimension_semantics = [#tpu.dimension_semantics<parallel>], iteration_bounds = array<i64: 2>, scalar_prefetch = 0 : i64, scratch_operands = 0 : i64, tpu.core_type = #tpu.core_type<tc>, window_params = [{transform_indices = @transform_0, window_bounds = array<i64: 2048, 1>}, {pipeline_mode = #tpu.pipeline_mode<synchronous>, transform_indices = @transform_1, window_bounds = array<i64: 12, 32>}, {transform_indices = @transform_2, window_bounds = array<i64: 2048, 32>}]} {
    %c0 = arith.constant 0 : index
    %c0_0 = arith.constant 0 : index
    %0 = vector.load %arg1[%c0, %c0_0] : memref<2048x1xi32, #tpu.memory_space<vmem>>, vector<2048x1xi32>
    %1 = tpu.iota {dimensions = array<i32: 1>} : vector<2048x12xi32>
    %2 = vector.broadcast %0 : vector<2048x1xi32> to vector<2048x12xi32>
    %3 = arith.cmpi eq, %1, %2 : vector<2048x12xi32>
    %4 = arith.extui %3 : vector<2048x12xi1> to vector<2048x12xi32>
    %5 = arith.sitofp %4 : vector<2048x12xi32> to vector<2048x12xf32>
    %c0_1 = arith.constant 0 : index
    %c0_2 = arith.constant 0 : index
    %6 = vector.load %arg2[%c0_1, %c0_2] : memref<12x32xf32, #tpu.memory_space<vmem>>, vector<12x32xf32>
    %cst = arith.constant dense<0.000000e+00> : vector<2048x32xf32>
    %7 = tpu.matmul %5, %6, %cst {dimension_numbers = #tpu.dot_dimension_numbers<[1], [0], [0], [1], [0, 0, 1, 1], [], []>} : vector<2048x12xf32>, vector<12x32xf32>, vector<2048x32xf32> -> vector<2048x32xf32>
    %c0_3 = arith.constant 0 : index
    %c0_4 = arith.constant 0 : index
    %8 = vector.load %arg3[%c0_3, %c0_4] : memref<2048x32xf32, #tpu.memory_space<vmem>>, vector<2048x32xf32>
    tpu.vector_store %arg3[%c0_3, %c0_4], %7 {strides = array<i32>} : memref<2048x32xf32, #tpu.memory_space<vmem>>, vector<2048x32xf32>,
    return
  }
  func.func @transform_0(%arg0: i32) -> (i32, i32) {
    %c0_i32 = arith.constant 0 : i32
    %c0_i32_0 = arith.constant 0 : i32
    return %arg0, %c0_i32 : i32, i32
  }
  func.func @transform_1(%arg0: i32) -> (i32, i32) {
    %c0_i32 = arith.constant 0 : i32
    %c0_i32_0 = arith.constant 0 : i32
    %c0_i32_1 = arith.constant 0 : i32
    return %c0_i32, %c0_i32_0 : i32, i32
  }
  func.func @transform_2(%arg0: i32) -> (i32, i32) {
    %c0_i32 = arith.constant 0 : i32
    %c0_i32_0 = arith.constant 0 : i32
    return %arg0, %c0_i32 : i32, i32
  }
}

</mosaic_0001>

<llo_original>
// kernel: tpu_custom_call.1
$region0: #{tpu_custom_call.1}
  #allocation0 [shape = 'u32[]', space=smem, size = 0x4, offset = 0x4, fixed_abs, tag = 'smem constant byte address 0x4 - core index']
  #allocation1 [shape = 'u32[144,128]{1,0:T(1,128)}', space=vmem, size = 0x12000, scoped, tag = 'internal scratch']
  %s0 = inlined_call_operand.vmem [shape: s32[4096,1], index: 0, kind: input, shape index: {}]
  %s1 = inlined_call_operand.vmem [shape: f32[12,32], index: 1, kind: input, shape index: {}]
  %s2 = inlined_call_operand.vmem [shape: f32[4096,32], index: 2, kind: output, shape index: {}]
  %s3 = sld [smem:[#allocation0]]
  $region41: #{tpu_custom_call.1} parent=0
    _
  %s5 = ssub.s32 1, %s3
  %s6 = scalar_select 0, %s5, %s3
  loop: start=0, step=1, limit=4
  $region2: #{tpu_custom_call.1} parent=0 // loop_pre_header
    _
  $region3: #{tpu_custom_call.1} parent=0 // loop_header
    %s8 = sphi 0, %s12
    %p9 = scmp.ge.s32.totalorder %s8, 4
    %s18 = sphi 0, %s20
    %s21 = sphi 0, %s18
    %s22 = sphi 0, %s21
    %s38 = sphi 0, %s22
    %s42 = sphi 0, %s42
    %s44 = sphi 0, %s42
    %s45 = sphi 0, %s44
    %s59 = sphi 0, %s45
    %s65 = sphi 0, %s67
    %s68 = sphi 0, %s65
    %s69 = sphi 0, %s68
    %s85 = sphi 0, %s69
  $region4: #{tpu_custom_call.1} parent=0 // loop_header_branch
    %11 = sbr.rel (%p9) target = $region8
  $region5: #{tpu_custom_call.1} parent=0 // loop_body
    %s13 = ssub.s32 %s8, 1
    %s14 = ssub.s32 %s8, 2
    %s15 = sadd.s32 %s8, 1
    %s16 = ssub.s32 %s8, %s15
    %p17 = scmp.eq.s32.totalorder %s16, 0
    %s19 = sadd.s32 %s18, 1
    %s20 = scalar_select %p17, %s18, %s19
    %p23 = pneg %p17
    %p24 = scmp.eq.s32.totalorder %s8, 1
    %p25 = por %p23, %p24
    %p26 = scmp.ne.s32.totalorder %s18, %s21
    %p27 = scmp.eq.s32.totalorder %s8, 0
    %p28 = por %p26, %p27
    %p29 = scmp.ne.s32.totalorder %s18, %s21
    %p30 = scmp.eq.s32.totalorder %s13, 1
    %p31 = por %p29, %p30
    %p32 = scmp.ne.s32.totalorder %s21, %s22
    %p33 = scmp.eq.s32.totalorder %s13, 0
    %p34 = por %p32, %p33
    %p35 = scmp.ne.s32.totalorder %s21, %s22
    %p36 = scmp.eq.s32.totalorder %s14, 1
    %p37 = por %p35, %p36
    %p39 = scmp.ne.s32.totalorder %s22, %s38
    %p40 = scmp.eq.s32.totalorder %s14, 0
    %p41 = por %p39, %p40
    %s43 = sadd.s32 %s42, 1
    %p46 = scmp.eq.s32.totalorder %s8, 1
    %p47 = scmp.ne.s32.totalorder %s42, %s44
    %p48 = scmp.eq.s32.totalorder %s8, 0
    %p49 = por %p47, %p48
    %p50 = scmp.ne.s32.totalorder %s42, %s44
    %p51 = scmp.eq.s32.totalorder %s13, 1
    %p52 = por %p50, %p51
    %p53 = scmp.ne.s32.totalorder %s44, %s45
    %p54 = scmp.eq.s32.totalorder %s13, 0
    %p55 = por %p53, %p54
    %p56 = scmp.ne.s32.totalorder %s44, %s45
    %p57 = scmp.eq.s32.totalorder %s14, 1
    %p58 = por %p56, %p57
    %p60 = scmp.ne.s32.totalorder %s45, %s59
    %p61 = scmp.eq.s32.totalorder %s14, 0
    %p62 = por %p60, %p61
    %s63 = ssub.s32 %s8, %s15
    %p64 = scmp.eq.s32.totalorder %s63, 0
    %s66 = sadd.s32 %s65, 1
    %s67 = scalar_select %p64, %s65, %s66
    %p70 = pneg %p64
    %p71 = scmp.eq.s32.totalorder %s8, 1
    %p72 = por %p70, %p71
    %p73 = scmp.ne.s32.totalorder %s65, %s68
    %p74 = scmp.eq.s32.totalorder %s8, 0
    %p75 = por %p73, %p74
    %p76 = scmp.ne.s32.totalorder %s65, %s68
    %p77 = scmp.eq.s32.totalorder %s13, 1
    %p78 = por %p76, %p77
    %p79 = scmp.ne.s32.totalorder %s68, %s69
    %p80 = scmp.eq.s32.totalorder %s13, 0
    %p81 = por %p79, %p80
    %p82 = scmp.ne.s32.totalorder %s68, %s69
    %p83 = scmp.eq.s32.totalorder %s14, 1
    %p84 = por %p82, %p83
    %p86 = scmp.ne.s32.totalorder %s69, %s85
    %p87 = scmp.eq.s32.totalorder %s14, 0
    %p88 = por %p86, %p87
    %p89 = scmp.le.s32.totalorder 1, %s8
    %p90 = scmp.lt.s32.totalorder %s8, 3
    %p91 = pnand %p89, %p90
    %p92 = pneg %p91
    // Predicated region
    $region9: #{tpu_custom_call.1} parent=5 // pred_check
      _
    $region10: #{tpu_custom_call.1} parent=5 // pred_check_branch
      %94 = sbr.rel (%p91) target = $region12
    $region11: #{tpu_custom_call.1} parent=5 // pred_region
      %s95 = ssub.s32 %s8, 1
      // Predicated region
      $region13: #{tpu_custom_call.1} parent=11 // pred_check
        %p96 = pneg %p55
      $region14: #{tpu_custom_call.1} parent=11 // pred_check_branch
        %98 = sbr.rel (%p96) target = $region16
      $region15: #{tpu_custom_call.1} parent=11 // pred_region
        _
      $region16: #{tpu_custom_call.1} parent=11 // pred_fallthru
        _
    $region12: #{tpu_custom_call.1} parent=5 // pred_fallthru
      _
    %p99 = scmp.lt.s32.totalorder %s8, 2
    // Predicated region
    $region17: #{tpu_custom_call.1} parent=5 // pred_check
      %p100 = pneg %p99
    $region18: #{tpu_custom_call.1} parent=5 // pred_check_branch
      %102 = sbr.rel (%p100) target = $region20
    $region19: #{tpu_custom_call.1} parent=5 // pred_region
      // Predicated region
      $region21: #{tpu_custom_call.1} parent=19 // pred_check
        %p103 = pneg %p28
      $region22: #{tpu_custom_call.1} parent=19 // pred_check_branch
        %105 = sbr.rel (%p103) target = $region24
      $region23: #{tpu_custom_call.1} parent=19 // pred_region
        %s106 = smul.u32 256, %s8
        %p107 = scmp.lt.s32.totalorder %s106, 511
        %s108 = scalar_select %p107, %s106, 511
        %s109 = smul.addr %s108, 8
        %s110 = scalar_lea.vmem %s0, %s109
        %s111 = smul.u32 256, %s8
      $region24: #{tpu_custom_call.1} parent=19 // pred_fallthru
        _
    $region20: #{tpu_custom_call.1} parent=5 // pred_fallthru
      _
    %p112 = scmp.le.s32.totalorder 1, %s8
    %p113 = scmp.lt.s32.totalorder %s8, 3
    %p114 = pnand %p112, %p113
    %p115 = pneg %p114
    // Predicated region
    $region25: #{tpu_custom_call.1} parent=5 // pred_check
      _
    $region26: #{tpu_custom_call.1} parent=5 // pred_check_branch
      %117 = sbr.rel (%p114) target = $region28
    $region27: #{tpu_custom_call.1} parent=5 // pred_region
      %s118 = ssub.s32 %s8, 1
      %s119 = smul.u32 256, %s13
      %p120 = scmp.lt.s32.totalorder %s119, 511
      %s121 = scalar_select %p120, %s119, 511
      %s122 = smul.addr %s121, 8
      %s123 = scalar_lea.vmem %s0, %s122
      %p124 = pneg %p34
      %p125 = pneg %p31
      %p126 = pneg %p55
      %p127 = pneg %p52
      %p128 = pneg %p81
      %p129 = pneg %p78
      %s130 = smul.u32 256, %s13
      %p131 = scmp.lt.s32.totalorder %s130, 511
      %s132 = scalar_select %p131, %s130, 511
      %s133 = smul.addr %s132, 8
      %s134 = scalar_lea.vmem %s2, %s133
      %s135 = smul.u32 256, %s13
      %p136 = scmp.lt.s32.totalorder %s135, 511
      %s137 = scalar_select %p136, %s135, 511
      %s138 = smul.addr %s137, 8
      %s139 = scalar_lea.vmem %s0, %s138
      %s140 = smul.u32 256, %s13
      %s141 = smul.u32 256, %s13
      %p142 = scmp.lt.s32.totalorder %s141, 511
      %s143 = scalar_select %p142, %s141, 511
      %s144 = smul.addr %s143, 8
      %s145 = scalar_lea.vmem %s2, %s144
      %s146 = smul.u32 256, %s13
      %v147 = vld [vmem:[%s139] sm:$0xff]
      %v148 = vld [vmem:[%s139 + $0x8] sm:$0xff]
      %v149 = vld [vmem:[%s139 + $0x10] sm:$0xff]
      %v150 = vld [vmem:[%s139 + $0x18] sm:$0xff]
      %v151 = vld [vmem:[%s139 + $0x20] sm:$0xff]
      %v152 = vld [vmem:[%s139 + $0x28] sm:$0xff]
      %v153 = vld [vmem:[%s139 + $0x30] sm:$0xff]
      %v154 = vld [vmem:[%s139 + $0x38] sm:$0xff]
      %v155 = vld [vmem:[%s139 + $0x40] sm:$0xff]
      %v156 = vld [vmem:[%s139 + $0x48] sm:$0xff]
      %v157 = vld [vmem:[%s139 + $0x50] sm:$0xff]
      %v158 = vld [vmem:[%s139 + $0x58] sm:$0xff]
      %v159 = vld [vmem:[%s139 + $0x60] sm:$0xff]
      %v160 = vld [vmem:[%s139 + $0x68] sm:$0xff]
      %v161 = vld [vmem:[%s139 + $0x70] sm:$0xff]
      %v162 = vld [vmem:[%s139 + $0x78] sm:$0xff]
      %v163 = vld [vmem:[%s139 + $0x80] sm:$0xff]
      %v164 = vld [vmem:[%s139 + $0x88] sm:$0xff]
      %v165 = vld [vmem:[%s139 + $0x90] sm:$0xff]
      %v166 = vld [vmem:[%s139 + $0x98] sm:$0xff]
      %v167 = vld [vmem:[%s139 + $0xa0] sm:$0xff]
      %v168 = vld [vmem:[%s139 + $0xa8] sm:$0xff]
      %v169 = vld [vmem:[%s139 + $0xb0] sm:$0xff]
      %v170 = vld [vmem:[%s139 + $0xb8] sm:$0xff]
      %v171 = vld [vmem:[%s139 + $0xc0] sm:$0xff]
      %v172 = vld [vmem:[%s139 + $0xc8] sm:$0xff]
      %v173 = vld [vmem:[%s139 + $0xd0] sm:$0xff]
      %v174 = vld [vmem:[%s139 + $0xd8] sm:$0xff]
      %v175 = vld [vmem:[%s139 + $0xe0] sm:$0xff]
      %v176 = vld [vmem:[%s139 + $0xe8] sm:$0xff]
      %v177 = vld [vmem:[%s139 + $0xf0] sm:$0xff]
      %v178 = vld [vmem:[%s139 + $0xf8] sm:$0xff]
      %v179 = vld [vmem:[%s139 + $0x100] sm:$0xff]
      %v180 = vld [vmem:[%s139 + $0x108] sm:$0xff]
      %v181 = vld [vmem:[%s139 + $0x110] sm:$0xff]
      %v182 = vld [vmem:[%s139 + $0x118] sm:$0xff]
      %v183 = vld [vmem:[%s139 + $0x120] sm:$0xff]
      %v184 = vld [vmem:[%s139 + $0x128] sm:$0xff]
      %v185 = vld [vmem:[%s139 + $0x130] sm:$0xff]
      %v186 = vld [vmem:[%s139 + $0x138] sm:$0xff]
      %v187 = vld [vmem:[%s139 + $0x140] sm:$0xff]
      %v188 = vld [vmem:[%s139 + $0x148] sm:$0xff]
      %v189 = vld [vmem:[%s139 + $0x150] sm:$0xff]
      %v190 = vld [vmem:[%s139 + $0x158] sm:$0xff]
      %v191 = vld [vmem:[%s139 + $0x160] sm:$0xff]
      %v192 = vld [vmem:[%s139 + $0x168] sm:$0xff]
      %v193 = vld [vmem:[%s139 + $0x170] sm:$0xff]
      %v194 = vld [vmem:[%s139 + $0x178] sm:$0xff]
      %v195 = vld [vmem:[%s139 + $0x180] sm:$0xff]
      %v196 = vld [vmem:[%s139 + $0x188] sm:$0xff]
      %v197 = vld [vmem:[%s139 + $0x190] sm:$0xff]
      %v198 = vld [vmem:[%s139 + $0x198] sm:$0xff]
      %v199 = vld [vmem:[%s139 + $0x1a0] sm:$0xff]
      %v200 = vld [vmem:[%s139 + $0x1a8] sm:$0xff]
      %v201 = vld [vmem:[%s139 + $0x1b0] sm:$0xff]
      %v202 = vld [vmem:[%s139 + $0x1b8] sm:$0xff]
      %v203 = vld [vmem:[%s139 + $0x1c0] sm:$0xff]
      %v204 = vld [vmem:[%s139 + $0x1c8] sm:$0xff]
      %v205 = vld [vmem:[%s139 + $0x1d0] sm:$0xff]
      %v206 = vld [vmem:[%s139 + $0x1d8] sm:$0xff]
      %v207 = vld [vmem:[%s139 + $0x1e0] sm:$0xff]
      %v208 = vld [vmem:[%s139 + $0x1e8] sm:$0xff]
      %v209 = vld [vmem:[%s139 + $0x1f0] sm:$0xff]
      %v210 = vld [vmem:[%s139 + $0x1f8] sm:$0xff]
      %v211 = vld [vmem:[%s139 + $0x200] sm:$0xff]
      %v212 = vld [vmem:[%s139 + $0x208] sm:$0xff]
      %v213 = vld [vmem:[%s139 + $0x210] sm:$0xff]
      %v214 = vld [vmem:[%s139 + $0x218] sm:$0xff]
      %v215 = vld [vmem:[%s139 + $0x220] sm:$0xff]
      %v216 = vld [vmem:[%s139 + $0x228] sm:$0xff]
      %v217 = vld [vmem:[%s139 + $0x230] sm:$0xff]
      %v218 = vld [vmem:[%s139 + $0x238] sm:$0xff]
      %v219 = vld [vmem:[%s139 + $0x240] sm:$0xff]
      %v220 = vld [vmem:[%s139 + $0x248] sm:$0xff]
      %v221 = vld [vmem:[%s139 + $0x250] sm:$0xff]
      %v222 = vld [vmem:[%s139 + $0x258] sm:$0xff]
      %v223 = vld [vmem:[%s139 + $0x260] sm:$0xff]
      %v224 = vld [vmem:[%s139 + $0x268] sm:$0xff]
      %v225 = vld [vmem:[%s139 + $0x270] sm:$0xff]
      %v226 = vld [vmem:[%s139 + $0x278] sm:$0xff]
      %v227 = vld [vmem:[%s139 + $0x280] sm:$0xff]
      %v228 = vld [vmem:[%s139 + $0x288] sm:$0xff]
      %v229 = vld [vmem:[%s139 + $0x290] sm:$0xff]
      %v230 = vld [vmem:[%s139 + $0x298] sm:$0xff]
      %v231 = vld [vmem:[%s139 + $0x2a0] sm:$0xff]
      %v232 = vld [vmem:[%s139 + $0x2a8] sm:$0xff]
      %v233 = vld [vmem:[%s139 + $0x2b0] sm:$0xff]
      %v234 = vld [vmem:[%s139 + $0x2b8] sm:$0xff]
      %v235 = vld [vmem:[%s139 + $0x2c0] sm:$0xff]
      %v236 = vld [vmem:[%s139 + $0x2c8] sm:$0xff]
      %v237 = vld [vmem:[%s139 + $0x2d0] sm:$0xff]
      %v238 = vld [vmem:[%s139 + $0x2d8] sm:$0xff]
      %v239 = vld [vmem:[%s139 + $0x2e0] sm:$0xff]
      %v240 = vld [vmem:[%s139 + $0x2e8] sm:$0xff]
      %v241 = vld [vmem:[%s139 + $0x2f0] sm:$0xff]
      %v242 = vld [vmem:[%s139 + $0x2f8] sm:$0xff]
      %v243 = vld [vmem:[%s139 + $0x300] sm:$0xff]
      %v244 = vld [vmem:[%s139 + $0x308] sm:$0xff]
      %v245 = vld [vmem:[%s139 + $0x310] sm:$0xff]
      %v246 = vld [vmem:[%s139 + $0x318] sm:$0xff]
      %v247 = vld [vmem:[%s139 + $0x320] sm:$0xff]
      %v248 = vld [vmem:[%s139 + $0x328] sm:$0xff]
      %v249 = vld [vmem:[%s139 + $0x330] sm:$0xff]
      %v250 = vld [vmem:[%s139 + $0x338] sm:$0xff]
      %v251 = vld [vmem:[%s139 + $0x340] sm:$0xff]
      %v252 = vld [vmem:[%s139 + $0x348] sm:$0xff]
      %v253 = vld [vmem:[%s139 + $0x350] sm:$0xff]
      %v254 = vld [vmem:[%s139 + $0x358] sm:$0xff]
      %v255 = vld [vmem:[%s139 + $0x360] sm:$0xff]
      %v256 = vld [vmem:[%s139 + $0x368] sm:$0xff]
      %v257 = vld [vmem:[%s139 + $0x370] sm:$0xff]
      %v258 = vld [vmem:[%s139 + $0x378] sm:$0xff]
      %v259 = vld [vmem:[%s139 + $0x380] sm:$0xff]
      %v260 = vld [vmem:[%s139 + $0x388] sm:$0xff]
      %v261 = vld [vmem:[%s139 + $0x390] sm:$0xff]
      %v262 = vld [vmem:[%s139 + $0x398] sm:$0xff]
      %v263 = vld [vmem:[%s139 + $0x3a0] sm:$0xff]
      %v264 = vld [vmem:[%s139 + $0x3a8] sm:$0xff]
      %v265 = vld [vmem:[%s139 + $0x3b0] sm:$0xff]
      %v266 = vld [vmem:[%s139 + $0x3b8] sm:$0xff]
      %v267 = vld [vmem:[%s139 + $0x3c0] sm:$0xff]
      %v268 = vld [vmem:[%s139 + $0x3c8] sm:$0xff]
      %v269 = vld [vmem:[%s139 + $0x3d0] sm:$0xff]
      %v270 = vld [vmem:[%s139 + $0x3d8] sm:$0xff]
      %v271 = vld [vmem:[%s139 + $0x3e0] sm:$0xff]
      %v272 = vld [vmem:[%s139 + $0x3e8] sm:$0xff]
      %v273 = vld [vmem:[%s139 + $0x3f0] sm:$0xff]
      %v274 = vld [vmem:[%s139 + $0x3f8] sm:$0xff]
      %v275 = vld [vmem:[%s139 + $0x400] sm:$0xff]
      %v276 = vld [vmem:[%s139 + $0x408] sm:$0xff]
      %v277 = vld [vmem:[%s139 + $0x410] sm:$0xff]
      %v278 = vld [vmem:[%s139 + $0x418] sm:$0xff]
      %v279 = vld [vmem:[%s139 + $0x420] sm:$0xff]
      %v280 = vld [vmem:[%s139 + $0x428] sm:$0xff]
      %v281 = vld [vmem:[%s139 + $0x430] sm:$0xff]
      %v282 = vld [vmem:[%s139 + $0x438] sm:$0xff]
      %v283 = vld [vmem:[%s139 + $0x440] sm:$0xff]
      %v284 = vld [vmem:[%s139 + $0x448] sm:$0xff]
      %v285 = vld [vmem:[%s139 + $0x450] sm:$0xff]
      %v286 = vld [vmem:[%s139 + $0x458] sm:$0xff]
      %v287 = vld [vmem:[%s139 + $0x460] sm:$0xff]
      %v288 = vld [vmem:[%s139 + $0x468] sm:$0xff]
      %v289 = vld [vmem:[%s139 + $0x470] sm:$0xff]
      %v290 = vld [vmem:[%s139 + $0x478] sm:$0xff]
      %v291 = vld [vmem:[%s139 + $0x480] sm:$0xff]
      %v292 = vld [vmem:[%s139 + $0x488] sm:$0xff]
      %v293 = vld [vmem:[%s139 + $0x490] sm:$0xff]
      %v294 = vld [vmem:[%s139 + $0x498] sm:$0xff]
      %v295 = vld [vmem:[%s139 + $0x4a0] sm:$0xff]
      %v296 = vld [vmem:[%s139 + $0x4a8] sm:$0xff]
      %v297 = vld [vmem:[%s139 + $0x4b0] sm:$0xff]
      %v298 = vld [vmem:[%s139 + $0x4b8] sm:$0xff]
      %v299 = vld [vmem:[%s139 + $0x4c0] sm:$0xff]
      %v300 = vld [vmem:[%s139 + $0x4c8] sm:$0xff]
      %v301 = vld [vmem:[%s139 + $0x4d0] sm:$0xff]
      %v302 = vld [vmem:[%s139 + $0x4d8] sm:$0xff]
      %v303 = vld [vmem:[%s139 + $0x4e0] sm:$0xff]
      %v304 = vld [vmem:[%s139 + $0x4e8] sm:$0xff]
      %v305 = vld [vmem:[%s139 + $0x4f0] sm:$0xff]
      %v306 = vld [vmem:[%s139 + $0x4f8] sm:$0xff]
      %v307 = vld [vmem:[%s139 + $0x500] sm:$0xff]
      %v308 = vld [vmem:[%s139 + $0x508] sm:$0xff]
      %v309 = vld [vmem:[%s139 + $0x510] sm:$0xff]
      %v310 = vld [vmem:[%s139 + $0x518] sm:$0xff]
      %v311 = vld [vmem:[%s139 + $0x520] sm:$0xff]
      %v312 = vld [vmem:[%s139 + $0x528] sm:$0xff]
      %v313 = vld [vmem:[%s139 + $0x530] sm:$0xff]
      %v314 = vld [vmem:[%s139 + $0x538] sm:$0xff]
      %v315 = vld [vmem:[%s139 + $0x540] sm:$0xff]
      %v316 = vld [vmem:[%s139 + $0x548] sm:$0xff]
      %v317 = vld [vmem:[%s139 + $0x550] sm:$0xff]
      %v318 = vld [vmem:[%s139 + $0x558] sm:$0xff]
      %v319 = vld [vmem:[%s139 + $0x560] sm:$0xff]
      %v320 = vld [vmem:[%s139 + $0x568] sm:$0xff]
      %v321 = vld [vmem:[%s139 + $0x570] sm:$0xff]
      %v322 = vld [vmem:[%s139 + $0x578] sm:$0xff]
      %v323 = vld [vmem:[%s139 + $0x580] sm:$0xff]
      %v324 = vld [vmem:[%s139 + $0x588] sm:$0xff]
      %v325 = vld [vmem:[%s139 + $0x590] sm:$0xff]
      %v326 = vld [vmem:[%s139 + $0x598] sm:$0xff]
      %v327 = vld [vmem:[%s139 + $0x5a0] sm:$0xff]
      %v328 = vld [vmem:[%s139 + $0x5a8] sm:$0xff]
      %v329 = vld [vmem:[%s139 + $0x5b0] sm:$0xff]
      %v330 = vld [vmem:[%s139 + $0x5b8] sm:$0xff]
      %v331 = vld [vmem:[%s139 + $0x5c0] sm:$0xff]
      %v332 = vld [vmem:[%s139 + $0x5c8] sm:$0xff]
      %v333 = vld [vmem:[%s139 + $0x5d0] sm:$0xff]
      %v334 = vld [vmem:[%s139 + $0x5d8] sm:$0xff]
      %v335 = vld [vmem:[%s139 + $0x5e0] sm:$0xff]
      %v336 = vld [vmem:[%s139 + $0x5e8] sm:$0xff]
      %v337 = vld [vmem:[%s139 + $0x5f0] sm:$0xff]
      %v338 = vld [vmem:[%s139 + $0x5f8] sm:$0xff]
      %v339 = vld [vmem:[%s139 + $0x600] sm:$0xff]
      %v340 = vld [vmem:[%s139 + $0x608] sm:$0xff]
      %v341 = vld [vmem:[%s139 + $0x610] sm:$0xff]
      %v342 = vld [vmem:[%s139 + $0x618] sm:$0xff]
      %v343 = vld [vmem:[%s139 + $0x620] sm:$0xff]
      %v344 = vld [vmem:[%s139 + $0x628] sm:$0xff]
      %v345 = vld [vmem:[%s139 + $0x630] sm:$0xff]
      %v346 = vld [vmem:[%s139 + $0x638] sm:$0xff]
      %v347 = vld [vmem:[%s139 + $0x640] sm:$0xff]
      %v348 = vld [vmem:[%s139 + $0x648] sm:$0xff]
      %v349 = vld [vmem:[%s139 + $0x650] sm:$0xff]
      %v350 = vld [vmem:[%s139 + $0x658] sm:$0xff]
      %v351 = vld [vmem:[%s139 + $0x660] sm:$0xff]
      %v352 = vld [vmem:[%s139 + $0x668] sm:$0xff]
      %v353 = vld [vmem:[%s139 + $0x670] sm:$0xff]
      %v354 = vld [vmem:[%s139 + $0x678] sm:$0xff]
      %v355 = vld [vmem:[%s139 + $0x680] sm:$0xff]
      %v356 = vld [vmem:[%s139 + $0x688] sm:$0xff]
      %v357 = vld [vmem:[%s139 + $0x690] sm:$0xff]
      %v358 = vld [vmem:[%s139 + $0x698] sm:$0xff]
      %v359 = vld [vmem:[%s139 + $0x6a0] sm:$0xff]
      %v360 = vld [vmem:[%s139 + $0x6a8] sm:$0xff]
      %v361 = vld [vmem:[%s139 + $0x6b0] sm:$0xff]
      %v362 = vld [vmem:[%s139 + $0x6b8] sm:$0xff]
      %v363 = vld [vmem:[%s139 + $0x6c0] sm:$0xff]
      %v364 = vld [vmem:[%s139 + $0x6c8] sm:$0xff]
      %v365 = vld [vmem:[%s139 + $0x6d0] sm:$0xff]
      %v366 = vld [vmem:[%s139 + $0x6d8] sm:$0xff]
      %v367 = vld [vmem:[%s139 + $0x6e0] sm:$0xff]
      %v368 = vld [vmem:[%s139 + $0x6e8] sm:$0xff]
      %v369 = vld [vmem:[%s139 + $0x6f0] sm:$0xff]
      %v370 = vld [vmem:[%s139 + $0x6f8] sm:$0xff]
      %v371 = vld [vmem:[%s139 + $0x700] sm:$0xff]
      %v372 = vld [vmem:[%s139 + $0x708] sm:$0xff]
      %v373 = vld [vmem:[%s139 + $0x710] sm:$0xff]
      %v374 = vld [vmem:[%s139 + $0x718] sm:$0xff]
      %v375 = vld [vmem:[%s139 + $0x720] sm:$0xff]
      %v376 = vld [vmem:[%s139 + $0x728] sm:$0xff]
      %v377 = vld [vmem:[%s139 + $0x730] sm:$0xff]
      %v378 = vld [vmem:[%s139 + $0x738] sm:$0xff]
      %v379 = vld [vmem:[%s139 + $0x740] sm:$0xff]
      %v380 = vld [vmem:[%s139 + $0x748] sm:$0xff]
      %v381 = vld [vmem:[%s139 + $0x750] sm:$0xff]
      %v382 = vld [vmem:[%s139 + $0x758] sm:$0xff]
      %v383 = vld [vmem:[%s139 + $0x760] sm:$0xff]
      %v384 = vld [vmem:[%s139 + $0x768] sm:$0xff]
      %v385 = vld [vmem:[%s139 + $0x770] sm:$0xff]
      %v386 = vld [vmem:[%s139 + $0x778] sm:$0xff]
      %v387 = vld [vmem:[%s139 + $0x780] sm:$0xff]
      %v388 = vld [vmem:[%s139 + $0x788] sm:$0xff]
      %v389 = vld [vmem:[%s139 + $0x790] sm:$0xff]
      %v390 = vld [vmem:[%s139 + $0x798] sm:$0xff]
      %v391 = vld [vmem:[%s139 + $0x7a0] sm:$0xff]
      %v392 = vld [vmem:[%s139 + $0x7a8] sm:$0xff]
      %v393 = vld [vmem:[%s139 + $0x7b0] sm:$0xff]
      %v394 = vld [vmem:[%s139 + $0x7b8] sm:$0xff]
      %v395 = vld [vmem:[%s139 + $0x7c0] sm:$0xff]
      %v396 = vld [vmem:[%s139 + $0x7c8] sm:$0xff]
      %v397 = vld [vmem:[%s139 + $0x7d0] sm:$0xff]
      %v398 = vld [vmem:[%s139 + $0x7d8] sm:$0xff]
      %v399 = vld [vmem:[%s139 + $0x7e0] sm:$0xff]
      %v400 = vld [vmem:[%s139 + $0x7e8] sm:$0xff]
      %v401 = vld [vmem:[%s139 + $0x7f0] sm:$0xff]
      %v402 = vld [vmem:[%s139 + $0x7f8] sm:$0xff]
      %v403 = vlaneseq
      %v404 = vand.u32 %v403, 127
      %405 = vset.pattern.permute.xlu0 0
      %406 = vperm.xlu0 %405, %v147
      %v407 = vpop.permute.xlu0 %406
      %408 = vset.pattern.permute.xlu0 0
      %409 = vperm.xlu0 %408, %v148
      %v410 = vpop.permute.xlu0 %409
      %411 = vset.pattern.permute.xlu0 0
      %412 = vperm.xlu0 %411, %v149
      %v413 = vpop.permute.xlu0 %412
      %414 = vset.pattern.permute.xlu0 0
      %415 = vperm.xlu0 %414, %v150
      %v416 = vpop.permute.xlu0 %415
      %417 = vset.pattern.permute.xlu0 0
      %418 = vperm.xlu0 %417, %v151
      %v419 = vpop.permute.xlu0 %418
      %420 = vset.pattern.permute.xlu0 0
      %421 = vperm.xlu0 %420, %v152
      %v422 = vpop.permute.xlu0 %421
      %423 = vset.pattern.permute.xlu0 0
      %424 = vperm.xlu0 %423, %v153
      %v425 = vpop.permute.xlu0 %424
      %426 = vset.pattern.permute.xlu0 0
      %427 = vperm.xlu0 %426, %v154
      %v428 = vpop.permute.xlu0 %427
      %429 = vset.pattern.permute.xlu0 0
      %430 = vperm.xlu0 %429, %v155
      %v431 = vpop.permute.xlu0 %430
      %432 = vset.pattern.permute.xlu0 0
      %433 = vperm.xlu0 %432, %v156
      %v434 = vpop.permute.xlu0 %433
      %435 = vset.pattern.permute.xlu0 0
      %436 = vperm.xlu0 %435, %v157
      %v437 = vpop.permute.xlu0 %436
      %438 = vset.pattern.permute.xlu0 0
      %439 = vperm.xlu0 %438, %v158
      %v440 = vpop.permute.xlu0 %439
      %441 = vset.pattern.permute.xlu0 0
      %442 = vperm.xlu0 %441, %v159
      %v443 = vpop.permute.xlu0 %442
      %444 = vset.pattern.permute.xlu0 0
      %445 = vperm.xlu0 %444, %v160
      %v446 = vpop.permute.xlu0 %445
      %447 = vset.pattern.permute.xlu0 0
      %448 = vperm.xlu0 %447, %v161
      %v449 = vpop.permute.xlu0 %448
      %450 = vset.pattern.permute.xlu0 0
      %451 = vperm.xlu0 %450, %v162
      %v452 = vpop.permute.xlu0 %451
      %453 = vset.pattern.permute.xlu0 0
      %454 = vperm.xlu0 %453, %v163
      %v455 = vpop.permute.xlu0 %454
      %456 = vset.pattern.permute.xlu0 0
      %457 = vperm.xlu0 %456, %v164
      %v458 = vpop.permute.xlu0 %457
      %459 = vset.pattern.permute.xlu0 0
      %460 = vperm.xlu0 %459, %v165
      %v461 = vpop.permute.xlu0 %460
      %462 = vset.pattern.permute.xlu0 0
      %463 = vperm.xlu0 %462, %v166
      %v464 = vpop.permute.xlu0 %463
      %465 = vset.pattern.permute.xlu0 0
      %466 = vperm.xlu0 %465, %v167
      %v467 = vpop.permute.xlu0 %466
      %468 = vset.pattern.permute.xlu0 0
      %469 = vperm.xlu0 %468, %v168
      %v470 = vpop.permute.xlu0 %469
      %471 = vset.pattern.permute.xlu0 0
      %472 = vperm.xlu0 %471, %v169
      %v473 = vpop.permute.xlu0 %472
      %474 = vset.pattern.permute.xlu0 0
      %475 = vperm.xlu0 %474, %v170
      %v476 = vpop.permute.xlu0 %475
      %477 = vset.pattern.permute.xlu0 0
      %478 = vperm.xlu0 %477, %v171
      %v479 = vpop.permute.xlu0 %478
      %480 = vset.pattern.permute.xlu0 0
      %481 = vperm.xlu0 %480, %v172
      %v482 = vpop.permute.xlu0 %481
      %483 = vset.pattern.permute.xlu0 0
      %484 = vperm.xlu0 %483, %v173
      %v485 = vpop.permute.xlu0 %484
      %486 = vset.pattern.permute.xlu0 0
      %487 = vperm.xlu0 %486, %v174
      %v488 = vpop.permute.xlu0 %487
      %489 = vset.pattern.permute.xlu0 0
      %490 = vperm.xlu0 %489, %v175
      %v491 = vpop.permute.xlu0 %490
      %492 = vset.pattern.permute.xlu0 0
      %493 = vperm.xlu0 %492, %v176
      %v494 = vpop.permute.xlu0 %493
      %495 = vset.pattern.permute.xlu0 0
      %496 = vperm.xlu0 %495, %v177
      %v497 = vpop.permute.xlu0 %496
      %498 = vset.pattern.permute.xlu0 0
      %499 = vperm.xlu0 %498, %v178
      %v500 = vpop.permute.xlu0 %499
      %501 = vset.pattern.permute.xlu0 0
      %502 = vperm.xlu0 %501, %v179
      %v503 = vpop.permute.xlu0 %502
      %504 = vset.pattern.permute.xlu0 0
      %505 = vperm.xlu0 %504, %v180
      %v506 = vpop.permute.xlu0 %505
      %507 = vset.pattern.permute.xlu0 0
      %508 = vperm.xlu0 %507, %v181
      %v509 = vpop.permute.xlu0 %508
      %510 = vset.pattern.permute.xlu0 0
      %511 = vperm.xlu0 %510, %v182
      %v512 = vpop.permute.xlu0 %511
      %513 = vset.pattern.permute.xlu0 0
      %514 = vperm.xlu0 %513, %v183
      %v515 = vpop.permute.xlu0 %514
      %516 = vset.pattern.permute.xlu0 0
      %517 = vperm.xlu0 %516, %v184
      %v518 = vpop.permute.xlu0 %517
      %519 = vset.pattern.permute.xlu0 0
      %520 = vperm.xlu0 %519, %v185
      %v521 = vpop.permute.xlu0 %520
      %522 = vset.pattern.permute.xlu0 0
      %523 = vperm.xlu0 %522, %v186
      %v524 = vpop.permute.xlu0 %523
      %525 = vset.pattern.permute.xlu0 0
      %526 = vperm.xlu0 %525, %v187
      %v527 = vpop.permute.xlu0 %526
      %528 = vset.pattern.permute.xlu0 0
      %529 = vperm.xlu0 %528, %v188
      %v530 = vpop.permute.xlu0 %529
      %531 = vset.pattern.permute.xlu0 0
      %532 = vperm.xlu0 %531, %v189
      %v533 = vpop.permute.xlu0 %532
      %534 = vset.pattern.permute.xlu0 0
      %535 = vperm.xlu0 %534, %v190
      %v536 = vpop.permute.xlu0 %535
      %537 = vset.pattern.permute.xlu0 0
      %538 = vperm.xlu0 %537, %v191
      %v539 = vpop.permute.xlu0 %538
      %540 = vset.pattern.permute.xlu0 0
      %541 = vperm.xlu0 %540, %v192
      %v542 = vpop.permute.xlu0 %541
      %543 = vset.pattern.permute.xlu0 0
      %544 = vperm.xlu0 %543, %v193
      %v545 = vpop.permute.xlu0 %544
      %546 = vset.pattern.permute.xlu0 0
      %547 = vperm.xlu0 %546, %v194
      %v548 = vpop.permute.xlu0 %547
      %549 = vset.pattern.permute.xlu0 0
      %550 = vperm.xlu0 %549, %v195
      %v551 = vpop.permute.xlu0 %550
      %552 = vset.pattern.permute.xlu0 0
      %553 = vperm.xlu0 %552, %v196
      %v554 = vpop.permute.xlu0 %553
      %555 = vset.pattern.permute.xlu0 0
      %556 = vperm.xlu0 %555, %v197
      %v557 = vpop.permute.xlu0 %556
      %558 = vset.pattern.permute.xlu0 0
      %559 = vperm.xlu0 %558, %v198
      %v560 = vpop.permute.xlu0 %559
      %561 = vset.pattern.permute.xlu0 0
      %562 = vperm.xlu0 %561, %v199
      %v563 = vpop.permute.xlu0 %562
      %564 = vset.pattern.permute.xlu0 0
      %565 = vperm.xlu0 %564, %v200
      %v566 = vpop.permute.xlu0 %565
      %567 = vset.pattern.permute.xlu0 0
      %568 = vperm.xlu0 %567, %v201
      %v569 = vpop.permute.xlu0 %568
      %570 = vset.pattern.permute.xlu0 0
      %571 = vperm.xlu0 %570, %v202
      %v572 = vpop.permute.xlu0 %571
      %573 = vset.pattern.permute.xlu0 0
      %574 = vperm.xlu0 %573, %v203
      %v575 = vpop.permute.xlu0 %574
      %576 = vset.pattern.permute.xlu0 0
      %577 = vperm.xlu0 %576, %v204
      %v578 = vpop.permute.xlu0 %577
      %579 = vset.pattern.permute.xlu0 0
      %580 = vperm.xlu0 %579, %v205
      %v581 = vpop.permute.xlu0 %580
      %582 = vset.pattern.permute.xlu0 0
      %583 = vperm.xlu0 %582, %v206
      %v584 = vpop.permute.xlu0 %583
      %585 = vset.pattern.permute.xlu0 0
      %586 = vperm.xlu0 %585, %v207
      %v587 = vpop.permute.xlu0 %586
      %588 = vset.pattern.permute.xlu0 0
      %589 = vperm.xlu0 %588, %v208
      %v590 = vpop.permute.xlu0 %589
      %591 = vset.pattern.permute.xlu0 0
      %592 = vperm.xlu0 %591, %v209
      %v593 = vpop.permute.xlu0 %592
      %594 = vset.pattern.permute.xlu0 0
      %595 = vperm.xlu0 %594, %v210
      %v596 = vpop.permute.xlu0 %595
      %597 = vset.pattern.permute.xlu0 0
      %598 = vperm.xlu0 %597, %v211
      %v599 = vpop.permute.xlu0 %598
      %600 = vset.pattern.permute.xlu0 0
      %601 = vperm.xlu0 %600, %v212
      %v602 = vpop.permute.xlu0 %601
      %603 = vset.pattern.permute.xlu0 0
      %604 = vperm.xlu0 %603, %v213
      %v605 = vpop.permute.xlu0 %604
      %606 = vset.pattern.permute.xlu0 0
      %607 = vperm.xlu0 %606, %v214
      %v608 = vpop.permute.xlu0 %607
      %609 = vset.pattern.permute.xlu0 0
      %610 = vperm.xlu0 %609, %v215
      %v611 = vpop.permute.xlu0 %610
      %612 = vset.pattern.permute.xlu0 0
      %613 = vperm.xlu0 %612, %v216
      %v614 = vpop.permute.xlu0 %613
      %615 = vset.pattern.permute.xlu0 0
      %616 = vperm.xlu0 %615, %v217
      %v617 = vpop.permute.xlu0 %616
      %618 = vset.pattern.permute.xlu0 0
      %619 = vperm.xlu0 %618, %v218
      %v620 = vpop.permute.xlu0 %619
      %621 = vset.pattern.permute.xlu0 0
      %622 = vperm.xlu0 %621, %v219
      %v623 = vpop.permute.xlu0 %622
      %624 = vset.pattern.permute.xlu0 0
      %625 = vperm.xlu0 %624, %v220
      %v626 = vpop.permute.xlu0 %625
      %627 = vset.pattern.permute.xlu0 0
      %628 = vperm.xlu0 %627, %v221
      %v629 = vpop.permute.xlu0 %628
      %630 = vset.pattern.permute.xlu0 0
      %631 = vperm.xlu0 %630, %v222
      %v632 = vpop.permute.xlu0 %631
      %633 = vset.pattern.permute.xlu0 0
      %634 = vperm.xlu0 %633, %v223
      %v635 = vpop.permute.xlu0 %634
      %636 = vset.pattern.permute.xlu0 0
      %637 = vperm.xlu0 %636, %v224
      %v638 = vpop.permute.xlu0 %637
      %639 = vset.pattern.permute.xlu0 0
      %640 = vperm.xlu0 %639, %v225
      %v641 = vpop.permute.xlu0 %640
      %642 = vset.pattern.permute.xlu0 0
      %643 = vperm.xlu0 %642, %v226
      %v644 = vpop.permute.xlu0 %643
      %645 = vset.pattern.permute.xlu0 0
      %646 = vperm.xlu0 %645, %v227
      %v647 = vpop.permute.xlu0 %646
      %648 = vset.pattern.permute.xlu0 0
      %649 = vperm.xlu0 %648, %v228
      %v650 = vpop.permute.xlu0 %649
      %651 = vset.pattern.permute.xlu0 0
      %652 = vperm.xlu0 %651, %v229
      %v653 = vpop.permute.xlu0 %652
      %654 = vset.pattern.permute.xlu0 0
      %655 = vperm.xlu0 %654, %v230
      %v656 = vpop.permute.xlu0 %655
      %657 = vset.pattern.permute.xlu0 0
      %658 = vperm.xlu0 %657, %v231
      %v659 = vpop.permute.xlu0 %658
      %660 = vset.pattern.permute.xlu0 0
      %661 = vperm.xlu0 %660, %v232
      %v662 = vpop.permute.xlu0 %661
      %663 = vset.pattern.permute.xlu0 0
      %664 = vperm.xlu0 %663, %v233
      %v665 = vpop.permute.xlu0 %664
      %666 = vset.pattern.permute.xlu0 0
      %667 = vperm.xlu0 %666, %v234
      %v668 = vpop.permute.xlu0 %667
      %669 = vset.pattern.permute.xlu0 0
      %670 = vperm.xlu0 %669, %v235
      %v671 = vpop.permute.xlu0 %670
      %672 = vset.pattern.permute.xlu0 0
      %673 = vperm.xlu0 %672, %v236
      %v674 = vpop.permute.xlu0 %673
      %675 = vset.pattern.permute.xlu0 0
      %676 = vperm.xlu0 %675, %v237
      %v677 = vpop.permute.xlu0 %676
      %678 = vset.pattern.permute.xlu0 0
      %679 = vperm.xlu0 %678, %v238
      %v680 = vpop.permute.xlu0 %679
      %681 = vset.pattern.permute.xlu0 0
      %682 = vperm.xlu0 %681, %v239
      %v683 = vpop.permute.xlu0 %682
      %684 = vset.pattern.permute.xlu0 0
      %685 = vperm.xlu0 %684, %v240
      %v686 = vpop.permute.xlu0 %685
      %687 = vset.pattern.permute.xlu0 0
      %688 = vperm.xlu0 %687, %v241
      %v689 = vpop.permute.xlu0 %688
      %690 = vset.pattern.permute.xlu0 0
      %691 = vperm.xlu0 %690, %v242
      %v692 = vpop.permute.xlu0 %691
      %693 = vset.pattern.permute.xlu0 0
      %694 = vperm.xlu0 %693, %v243
      %v695 = vpop.permute.xlu0 %694
      %696 = vset.pattern.permute.xlu0 0
      %697 = vperm.xlu0 %696, %v244
      %v698 = vpop.permute.xlu0 %697
      %699 = vset.pattern.permute.xlu0 0
      %700 = vperm.xlu0 %699, %v245
      %v701 = vpop.permute.xlu0 %700
      %702 = vset.pattern.permute.xlu0 0
      %703 = vperm.xlu0 %702, %v246
      %v704 = vpop.permute.xlu0 %703
      %705 = vset.pattern.permute.xlu0 0
      %706 = vperm.xlu0 %705, %v247
      %v707 = vpop.permute.xlu0 %706
      %708 = vset.pattern.permute.xlu0 0
      %709 = vperm.xlu0 %708, %v248
      %v710 = vpop.permute.xlu0 %709
      %711 = vset.pattern.permute.xlu0 0
      %712 = vperm.xlu0 %711, %v249
      %v713 = vpop.permute.xlu0 %712
      %714 = vset.pattern.permute.xlu0 0
      %715 = vperm.xlu0 %714, %v250
      %v716 = vpop.permute.xlu0 %715
      %717 = vset.pattern.permute.xlu0 0
      %718 = vperm.xlu0 %717, %v251
      %v719 = vpop.permute.xlu0 %718
      %720 = vset.pattern.permute.xlu0 0
      %721 = vperm.xlu0 %720, %v252
      %v722 = vpop.permute.xlu0 %721
      %723 = vset.pattern.permute.xlu0 0
      %724 = vperm.xlu0 %723, %v253
      %v725 = vpop.permute.xlu0 %724
      %726 = vset.pattern.permute.xlu0 0
      %727 = vperm.xlu0 %726, %v254
      %v728 = vpop.permute.xlu0 %727
      %729 = vset.pattern.permute.xlu0 0
      %730 = vperm.xlu0 %729, %v255
      %v731 = vpop.permute.xlu0 %730
      %732 = vset.pattern.permute.xlu0 0
      %733 = vperm.xlu0 %732, %v256
      %v734 = vpop.permute.xlu0 %733
      %735 = vset.pattern.permute.xlu0 0
      %736 = vperm.xlu0 %735, %v257
      %v737 = vpop.permute.xlu0 %736
      %738 = vset.pattern.permute.xlu0 0
      %739 = vperm.xlu0 %738, %v258
      %v740 = vpop.permute.xlu0 %739
      %741 = vset.pattern.permute.xlu0 0
      %742 = vperm.xlu0 %741, %v259
      %v743 = vpop.permute.xlu0 %742
      %744 = vset.pattern.permute.xlu0 0
      %745 = vperm.xlu0 %744, %v260
      %v746 = vpop.permute.xlu0 %745
      %747 = vset.pattern.permute.xlu0 0
      %748 = vperm.xlu0 %747, %v261
      %v749 = vpop.permute.xlu0 %748
      %750 = vset.pattern.permute.xlu0 0
      %751 = vperm.xlu0 %750, %v262
      %v752 = vpop.permute.xlu0 %751
      %753 = vset.pattern.permute.xlu0 0
      %754 = vperm.xlu0 %753, %v263
      %v755 = vpop.permute.xlu0 %754
      %756 = vset.pattern.permute.xlu0 0
      %757 = vperm.xlu0 %756, %v264
      %v758 = vpop.permute.xlu0 %757
      %759 = vset.pattern.permute.xlu0 0
      %760 = vperm.xlu0 %759, %v265
      %v761 = vpop.permute.xlu0 %760
      %762 = vset.pattern.permute.xlu0 0
      %763 = vperm.xlu0 %762, %v266
      %v764 = vpop.permute.xlu0 %763
      %765 = vset.pattern.permute.xlu0 0
      %766 = vperm.xlu0 %765, %v267
      %v767 = vpop.permute.xlu0 %766
      %768 = vset.pattern.permute.xlu0 0
      %769 = vperm.xlu0 %768, %v268
      %v770 = vpop.permute.xlu0 %769
      %771 = vset.pattern.permute.xlu0 0
      %772 = vperm.xlu0 %771, %v269
      %v773 = vpop.permute.xlu0 %772
      %774 = vset.pattern.permute.xlu0 0
      %775 = vperm.xlu0 %774, %v270
      %v776 = vpop.permute.xlu0 %775
      %777 = vset.pattern.permute.xlu0 0
      %778 = vperm.xlu0 %777, %v271
      %v779 = vpop.permute.xlu0 %778
      %780 = vset.pattern.permute.xlu0 0
      %781 = vperm.xlu0 %780, %v272
      %v782 = vpop.permute.xlu0 %781
      %783 = vset.pattern.permute.xlu0 0
      %784 = vperm.xlu0 %783, %v273
      %v785 = vpop.permute.xlu0 %784
      %786 = vset.pattern.permute.xlu0 0
      %787 = vperm.xlu0 %786, %v274
      %v788 = vpop.permute.xlu0 %787
      %789 = vset.pattern.permute.xlu0 0
      %790 = vperm.xlu0 %789, %v275
      %v791 = vpop.permute.xlu0 %790
      %792 = vset.pattern.permute.xlu0 0
      %793 = vperm.xlu0 %792, %v276
      %v794 = vpop.permute.xlu0 %793
      %795 = vset.pattern.permute.xlu0 0
      %796 = vperm.xlu0 %795, %v277
      %v797 = vpop.permute.xlu0 %796
      %798 = vset.pattern.permute.xlu0 0
      %799 = vperm.xlu0 %798, %v278
      %v800 = vpop.permute.xlu0 %799
      %801 = vset.pattern.permute.xlu0 0
      %802 = vperm.xlu0 %801, %v279
      %v803 = vpop.permute.xlu0 %802
      %804 = vset.pattern.permute.xlu0 0
      %805 = vperm.xlu0 %804, %v280
      %v806 = vpop.permute.xlu0 %805
      %807 = vset.pattern.permute.xlu0 0
      %808 = vperm.xlu0 %807, %v281
      %v809 = vpop.permute.xlu0 %808
      %810 = vset.pattern.permute.xlu0 0
      %811 = vperm.xlu0 %810, %v282
      %v812 = vpop.permute.xlu0 %811
      %813 = vset.pattern.permute.xlu0 0
      %814 = vperm.xlu0 %813, %v283
      %v815 = vpop.permute.xlu0 %814
      %816 = vset.pattern.permute.xlu0 0
      %817 = vperm.xlu0 %816, %v284
      %v818 = vpop.permute.xlu0 %817
      %819 = vset.pattern.permute.xlu0 0
      %820 = vperm.xlu0 %819, %v285
      %v821 = vpop.permute.xlu0 %820
      %822 = vset.pattern.permute.xlu0 0
      %823 = vperm.xlu0 %822, %v286
      %v824 = vpop.permute.xlu0 %823
      %825 = vset.pattern.permute.xlu0 0
      %826 = vperm.xlu0 %825, %v287
      %v827 = vpop.permute.xlu0 %826
      %828 = vset.pattern.permute.xlu0 0
      %829 = vperm.xlu0 %828, %v288
      %v830 = vpop.permute.xlu0 %829
      %831 = vset.pattern.permute.xlu0 0
      %832 = vperm.xlu0 %831, %v289
      %v833 = vpop.permute.xlu0 %832
      %834 = vset.pattern.permute.xlu0 0
      %835 = vperm.xlu0 %834, %v290
      %v836 = vpop.permute.xlu0 %835
      %837 = vset.pattern.permute.xlu0 0
      %838 = vperm.xlu0 %837, %v291
      %v839 = vpop.permute.xlu0 %838
      %840 = vset.pattern.permute.xlu0 0
      %841 = vperm.xlu0 %840, %v292
      %v842 = vpop.permute.xlu0 %841
      %843 = vset.pattern.permute.xlu0 0
      %844 = vperm.xlu0 %843, %v293
      %v845 = vpop.permute.xlu0 %844
      %846 = vset.pattern.permute.xlu0 0
      %847 = vperm.xlu0 %846, %v294
      %v848 = vpop.permute.xlu0 %847
      %849 = vset.pattern.permute.xlu0 0
      %850 = vperm.xlu0 %849, %v295
      %v851 = vpop.permute.xlu0 %850
      %852 = vset.pattern.permute.xlu0 0
      %853 = vperm.xlu0 %852, %v296
      %v854 = vpop.permute.xlu0 %853
      %855 = vset.pattern.permute.xlu0 0
      %856 = vperm.xlu0 %855, %v297
      %v857 = vpop.permute.xlu0 %856
      %858 = vset.pattern.permute.xlu0 0
      %859 = vperm.xlu0 %858, %v298
      %v860 = vpop.permute.xlu0 %859
      %861 = vset.pattern.permute.xlu0 0
      %862 = vperm.xlu0 %861, %v299
      %v863 = vpop.permute.xlu0 %862
      %864 = vset.pattern.permute.xlu0 0
      %865 = vperm.xlu0 %864, %v300
      %v866 = vpop.permute.xlu0 %865
      %867 = vset.pattern.permute.xlu0 0
      %868 = vperm.xlu0 %867, %v301
      %v869 = vpop.permute.xlu0 %868
      %870 = vset.pattern.permute.xlu0 0
      %871 = vperm.xlu0 %870, %v302
      %v872 = vpop.permute.xlu0 %871
      %873 = vset.pattern.permute.xlu0 0
      %874 = vperm.xlu0 %873, %v303
      %v875 = vpop.permute.xlu0 %874
      %876 = vset.pattern.permute.xlu0 0
      %877 = vperm.xlu0 %876, %v304
      %v878 = vpop.permute.xlu0 %877
      %879 = vset.pattern.permute.xlu0 0
      %880 = vperm.xlu0 %879, %v305
      %v881 = vpop.permute.xlu0 %880
      %882 = vset.pattern.permute.xlu0 0
      %883 = vperm.xlu0 %882, %v306
      %v884 = vpop.permute.xlu0 %883
      %885 = vset.pattern.permute.xlu0 0
      %886 = vperm.xlu0 %885, %v307
      %v887 = vpop.permute.xlu0 %886
      %888 = vset.pattern.permute.xlu0 0
      %889 = vperm.xlu0 %888, %v308
      %v890 = vpop.permute.xlu0 %889
      %891 = vset.pattern.permute.xlu0 0
      %892 = vperm.xlu0 %891, %v309
      %v893 = vpop.permute.xlu0 %892
      %894 = vset.pattern.permute.xlu0 0
      %895 = vperm.xlu0 %894, %v310
      %v896 = vpop.permute.xlu0 %895
      %897 = vset.pattern.permute.xlu0 0
      %898 = vperm.xlu0 %897, %v311
      %v899 = vpop.permute.xlu0 %898
      %900 = vset.pattern.permute.xlu0 0
      %901 = vperm.xlu0 %900, %v312
      %v902 = vpop.permute.xlu0 %901
      %903 = vset.pattern.permute.xlu0 0
      %904 = vperm.xlu0 %903, %v313
      %v905 = vpop.permute.xlu0 %904
      %906 = vset.pattern.permute.xlu0 0
      %907 = vperm.xlu0 %906, %v314
      %v908 = vpop.permute.xlu0 %907
      %909 = vset.pattern.permute.xlu0 0
      %910 = vperm.xlu0 %909, %v315
      %v911 = vpop.permute.xlu0 %910
      %912 = vset.pattern.permute.xlu0 0
      %913 = vperm.xlu0 %912, %v316
      %v914 = vpop.permute.xlu0 %913
      %915 = vset.pattern.permute.xlu0 0
      %916 = vperm.xlu0 %915, %v317
      %v917 = vpop.permute.xlu0 %916
      %918 = vset.pattern.permute.xlu0 0
      %919 = vperm.xlu0 %918, %v318
      %v920 = vpop.permute.xlu0 %919
      %921 = vset.pattern.permute.xlu0 0
      %922 = vperm.xlu0 %921, %v319
      %v923 = vpop.permute.xlu0 %922
      %924 = vset.pattern.permute.xlu0 0
      %925 = vperm.xlu0 %924, %v320
      %v926 = vpop.permute.xlu0 %925
      %927 = vset.pattern.permute.xlu0 0
      %928 = vperm.xlu0 %927, %v321
      %v929 = vpop.permute.xlu0 %928
      %930 = vset.pattern.permute.xlu0 0
      %931 = vperm.xlu0 %930, %v322
      %v932 = vpop.permute.xlu0 %931
      %933 = vset.pattern.permute.xlu0 0
      %934 = vperm.xlu0 %933, %v323
      %v935 = vpop.permute.xlu0 %934
      %936 = vset.pattern.permute.xlu0 0
      %937 = vperm.xlu0 %936, %v324
      %v938 = vpop.permute.xlu0 %937
      %939 = vset.pattern.permute.xlu0 0
      %940 = vperm.xlu0 %939, %v325
      %v941 = vpop.permute.xlu0 %940
      %942 = vset.pattern.permute.xlu0 0
      %943 = vperm.xlu0 %942, %v326
      %v944 = vpop.permute.xlu0 %943
      %945 = vset.pattern.permute.xlu0 0
      %946 = vperm.xlu0 %945, %v327
      %v947 = vpop.permute.xlu0 %946
      %948 = vset.pattern.permute.xlu0 0
      %949 = vperm.xlu0 %948, %v328
      %v950 = vpop.permute.xlu0 %949
      %951 = vset.pattern.permute.xlu0 0
      %952 = vperm.xlu0 %951, %v329
      %v953 = vpop.permute.xlu0 %952
      %954 = vset.pattern.permute.xlu0 0
      %955 = vperm.xlu0 %954, %v330
      %v956 = vpop.permute.xlu0 %955
      %957 = vset.pattern.permute.xlu0 0
      %958 = vperm.xlu0 %957, %v331
      %v959 = vpop.permute.xlu0 %958
      %960 = vset.pattern.permute.xlu0 0
      %961 = vperm.xlu0 %960, %v332
      %v962 = vpop.permute.xlu0 %961
      %963 = vset.pattern.permute.xlu0 0
      %964 = vperm.xlu0 %963, %v333
      %v965 = vpop.permute.xlu0 %964
      %966 = vset.pattern.permute.xlu0 0
      %967 = vperm.xlu0 %966, %v334
      %v968 = vpop.permute.xlu0 %967
      %969 = vset.pattern.permute.xlu0 0
      %970 = vperm.xlu0 %969, %v335
      %v971 = vpop.permute.xlu0 %970
      %972 = vset.pattern.permute.xlu0 0
      %973 = vperm.xlu0 %972, %v336
      %v974 = vpop.permute.xlu0 %973
      %975 = vset.pattern.permute.xlu0 0
      %976 = vperm.xlu0 %975, %v337
      %v977 = vpop.permute.xlu0 %976
      %978 = vset.pattern.permute.xlu0 0
      %979 = vperm.xlu0 %978, %v338
      %v980 = vpop.permute.xlu0 %979
      %981 = vset.pattern.permute.xlu0 0
      %982 = vperm.xlu0 %981, %v339
      %v983 = vpop.permute.xlu0 %982
      %984 = vset.pattern.permute.xlu0 0
      %985 = vperm.xlu0 %984, %v340
      %v986 = vpop.permute.xlu0 %985
      %987 = vset.pattern.permute.xlu0 0
      %988 = vperm.xlu0 %987, %v341
      %v989 = vpop.permute.xlu0 %988
      %990 = vset.pattern.permute.xlu0 0
      %991 = vperm.xlu0 %990, %v342
      %v992 = vpop.permute.xlu0 %991
      %993 = vset.pattern.permute.xlu0 0
      %994 = vperm.xlu0 %993, %v343
      %v995 = vpop.permute.xlu0 %994
      %996 = vset.pattern.permute.xlu0 0
      %997 = vperm.xlu0 %996, %v344
      %v998 = vpop.permute.xlu0 %997
      %999 = vset.pattern.permute.xlu0 0
      %1000 = vperm.xlu0 %999, %v345
      %v1001 = vpop.permute.xlu0 %1000
      %1002 = vset.pattern.permute.xlu0 0
      %1003 = vperm.xlu0 %1002, %v346
      %v1004 = vpop.permute.xlu0 %1003
      %1005 = vset.pattern.permute.xlu0 0
      %1006 = vperm.xlu0 %1005, %v347
      %v1007 = vpop.permute.xlu0 %1006
      %1008 = vset.pattern.permute.xlu0 0
      %1009 = vperm.xlu0 %1008, %v348
      %v1010 = vpop.permute.xlu0 %1009
      %1011 = vset.pattern.permute.xlu0 0
      %1012 = vperm.xlu0 %1011, %v349
      %v1013 = vpop.permute.xlu0 %1012
      %1014 = vset.pattern.permute.xlu0 0
      %1015 = vperm.xlu0 %1014, %v350
      %v1016 = vpop.permute.xlu0 %1015
      %1017 = vset.pattern.permute.xlu0 0
      %1018 = vperm.xlu0 %1017, %v351
      %v1019 = vpop.permute.xlu0 %1018
      %1020 = vset.pattern.permute.xlu0 0
      %1021 = vperm.xlu0 %1020, %v352
      %v1022 = vpop.permute.xlu0 %1021
      %1023 = vset.pattern.permute.xlu0 0
      %1024 = vperm.xlu0 %1023, %v353
      %v1025 = vpop.permute.xlu0 %1024
      %1026 = vset.pattern.permute.xlu0 0
      %1027 = vperm.xlu0 %1026, %v354
      %v1028 = vpop.permute.xlu0 %1027
      %1029 = vset.pattern.permute.xlu0 0
      %1030 = vperm.xlu0 %1029, %v355
      %v1031 = vpop.permute.xlu0 %1030
      %1032 = vset.pattern.permute.xlu0 0
      %1033 = vperm.xlu0 %1032, %v356
      %v1034 = vpop.permute.xlu0 %1033
      %1035 = vset.pattern.permute.xlu0 0
      %1036 = vperm.xlu0 %1035, %v357
      %v1037 = vpop.permute.xlu0 %1036
      %1038 = vset.pattern.permute.xlu0 0
      %1039 = vperm.xlu0 %1038, %v358
      %v1040 = vpop.permute.xlu0 %1039
      %1041 = vset.pattern.permute.xlu0 0
      %1042 = vperm.xlu0 %1041, %v359
      %v1043 = vpop.permute.xlu0 %1042
      %1044 = vset.pattern.permute.xlu0 0
      %1045 = vperm.xlu0 %1044, %v360
      %v1046 = vpop.permute.xlu0 %1045
      %1047 = vset.pattern.permute.xlu0 0
      %1048 = vperm.xlu0 %1047, %v361
      %v1049 = vpop.permute.xlu0 %1048
      %1050 = vset.pattern.permute.xlu0 0
      %1051 = vperm.xlu0 %1050, %v362
      %v1052 = vpop.permute.xlu0 %1051
      %1053 = vset.pattern.permute.xlu0 0
      %1054 = vperm.xlu0 %1053, %v363
      %v1055 = vpop.permute.xlu0 %1054
      %1056 = vset.pattern.permute.xlu0 0
      %1057 = vperm.xlu0 %1056, %v364
      %v1058 = vpop.permute.xlu0 %1057
      %1059 = vset.pattern.permute.xlu0 0
      %1060 = vperm.xlu0 %1059, %v365
      %v1061 = vpop.permute.xlu0 %1060
      %1062 = vset.pattern.permute.xlu0 0
      %1063 = vperm.xlu0 %1062, %v366
      %v1064 = vpop.permute.xlu0 %1063
      %1065 = vset.pattern.permute.xlu0 0
      %1066 = vperm.xlu0 %1065, %v367
      %v1067 = vpop.permute.xlu0 %1066
      %1068 = vset.pattern.permute.xlu0 0
      %1069 = vperm.xlu0 %1068, %v368
      %v1070 = vpop.permute.xlu0 %1069
      %1071 = vset.pattern.permute.xlu0 0
      %1072 = vperm.xlu0 %1071, %v369
      %v1073 = vpop.permute.xlu0 %1072
      %1074 = vset.pattern.permute.xlu0 0
      %1075 = vperm.xlu0 %1074, %v370
      %v1076 = vpop.permute.xlu0 %1075
      %1077 = vset.pattern.permute.xlu0 0
      %1078 = vperm.xlu0 %1077, %v371
      %v1079 = vpop.permute.xlu0 %1078
      %1080 = vset.pattern.permute.xlu0 0
      %1081 = vperm.xlu0 %1080, %v372
      %v1082 = vpop.permute.xlu0 %1081
      %1083 = vset.pattern.permute.xlu0 0
      %1084 = vperm.xlu0 %1083, %v373
      %v1085 = vpop.permute.xlu0 %1084
      %1086 = vset.pattern.permute.xlu0 0
      %1087 = vperm.xlu0 %1086, %v374
      %v1088 = vpop.permute.xlu0 %1087
      %1089 = vset.pattern.permute.xlu0 0
      %1090 = vperm.xlu0 %1089, %v375
      %v1091 = vpop.permute.xlu0 %1090
      %1092 = vset.pattern.permute.xlu0 0
      %1093 = vperm.xlu0 %1092, %v376
      %v1094 = vpop.permute.xlu0 %1093
      %1095 = vset.pattern.permute.xlu0 0
      %1096 = vperm.xlu0 %1095, %v377
      %v1097 = vpop.permute.xlu0 %1096
      %1098 = vset.pattern.permute.xlu0 0
      %1099 = vperm.xlu0 %1098, %v378
      %v1100 = vpop.permute.xlu0 %1099
      %1101 = vset.pattern.permute.xlu0 0
      %1102 = vperm.xlu0 %1101, %v379
      %v1103 = vpop.permute.xlu0 %1102
      %1104 = vset.pattern.permute.xlu0 0
      %1105 = vperm.xlu0 %1104, %v380
      %v1106 = vpop.permute.xlu0 %1105
      %1107 = vset.pattern.permute.xlu0 0
      %1108 = vperm.xlu0 %1107, %v381
      %v1109 = vpop.permute.xlu0 %1108
      %1110 = vset.pattern.permute.xlu0 0
      %1111 = vperm.xlu0 %1110, %v382
      %v1112 = vpop.permute.xlu0 %1111
      %1113 = vset.pattern.permute.xlu0 0
      %1114 = vperm.xlu0 %1113, %v383
      %v1115 = vpop.permute.xlu0 %1114
      %1116 = vset.pattern.permute.xlu0 0
      %1117 = vperm.xlu0 %1116, %v384
      %v1118 = vpop.permute.xlu0 %1117
      %1119 = vset.pattern.permute.xlu0 0
      %1120 = vperm.xlu0 %1119, %v385
      %v1121 = vpop.permute.xlu0 %1120
      %1122 = vset.pattern.permute.xlu0 0
      %1123 = vperm.xlu0 %1122, %v386
      %v1124 = vpop.permute.xlu0 %1123
      %1125 = vset.pattern.permute.xlu0 0
      %1126 = vperm.xlu0 %1125, %v387
      %v1127 = vpop.permute.xlu0 %1126
      %1128 = vset.pattern.permute.xlu0 0
      %1129 = vperm.xlu0 %1128, %v388
      %v1130 = vpop.permute.xlu0 %1129
      %1131 = vset.pattern.permute.xlu0 0
      %1132 = vperm.xlu0 %1131, %v389
      %v1133 = vpop.permute.xlu0 %1132
      %1134 = vset.pattern.permute.xlu0 0
      %1135 = vperm.xlu0 %1134, %v390
      %v1136 = vpop.permute.xlu0 %1135
      %1137 = vset.pattern.permute.xlu0 0
      %1138 = vperm.xlu0 %1137, %v391
      %v1139 = vpop.permute.xlu0 %1138
      %1140 = vset.pattern.permute.xlu0 0
      %1141 = vperm.xlu0 %1140, %v392
      %v1142 = vpop.permute.xlu0 %1141
      %1143 = vset.pattern.permute.xlu0 0
      %1144 = vperm.xlu0 %1143, %v393
      %v1145 = vpop.permute.xlu0 %1144
      %1146 = vset.pattern.permute.xlu0 0
      %1147 = vperm.xlu0 %1146, %v394
      %v1148 = vpop.permute.xlu0 %1147
      %1149 = vset.pattern.permute.xlu0 0
      %1150 = vperm.xlu0 %1149, %v395
      %v1151 = vpop.permute.xlu0 %1150
      %1152 = vset.pattern.permute.xlu0 0
      %1153 = vperm.xlu0 %1152, %v396
      %v1154 = vpop.permute.xlu0 %1153
      %1155 = vset.pattern.permute.xlu0 0
      %1156 = vperm.xlu0 %1155, %v397
      %v1157 = vpop.permute.xlu0 %1156
      %1158 = vset.pattern.permute.xlu0 0
      %1159 = vperm.xlu0 %1158, %v398
      %v1160 = vpop.permute.xlu0 %1159
      %1161 = vset.pattern.permute.xlu0 0
      %1162 = vperm.xlu0 %1161, %v399
      %v1163 = vpop.permute.xlu0 %1162
      %1164 = vset.pattern.permute.xlu0 0
      %1165 = vperm.xlu0 %1164, %v400
      %v1166 = vpop.permute.xlu0 %1165
      %1167 = vset.pattern.permute.xlu0 0
      %1168 = vperm.xlu0 %1167, %v401
      %v1169 = vpop.permute.xlu0 %1168
      %1170 = vset.pattern.permute.xlu0 0
      %1171 = vperm.xlu0 %1170, %v402
      %v1172 = vpop.permute.xlu0 %1171
      %vm1173 = vcmp.eq.s32.totalorder %v404, %v407
      %vm1174 = vcmp.eq.s32.totalorder %v404, %v410
      %vm1175 = vcmp.eq.s32.totalorder %v404, %v413
      %vm1176 = vcmp.eq.s32.totalorder %v404, %v416
      %vm1177 = vcmp.eq.s32.totalorder %v404, %v419
      %vm1178 = vcmp.eq.s32.totalorder %v404, %v422
      %vm1179 = vcmp.eq.s32.totalorder %v404, %v425
      %vm1180 = vcmp.eq.s32.totalorder %v404, %v428
      %vm1181 = vcmp.eq.s32.totalorder %v404, %v431
      %vm1182 = vcmp.eq.s32.totalorder %v404, %v434
      %vm1183 = vcmp.eq.s32.totalorder %v404, %v437
      %vm1184 = vcmp.eq.s32.totalorder %v404, %v440
      %vm1185 = vcmp.eq.s32.totalorder %v404, %v443
      %vm1186 = vcmp.eq.s32.totalorder %v404, %v446
      %vm1187 = vcmp.eq.s32.totalorder %v404, %v449
      %vm1188 = vcmp.eq.s32.totalorder %v404, %v452
      %vm1189 = vcmp.eq.s32.totalorder %v404, %v455
      %vm1190 = vcmp.eq.s32.totalorder %v404, %v458
      %vm1191 = vcmp.eq.s32.totalorder %v404, %v461
      %vm1192 = vcmp.eq.s32.totalorder %v404, %v464
      %vm1193 = vcmp.eq.s32.totalorder %v404, %v467
      %vm1194 = vcmp.eq.s32.totalorder %v404, %v470
      %vm1195 = vcmp.eq.s32.totalorder %v404, %v473
      %vm1196 = vcmp.eq.s32.totalorder %v404, %v476
      %vm1197 = vcmp.eq.s32.totalorder %v404, %v479
      %vm1198 = vcmp.eq.s32.totalorder %v404, %v482
      %vm1199 = vcmp.eq.s32.totalorder %v404, %v485
      %vm1200 = vcmp.eq.s32.totalorder %v404, %v488
      %vm1201 = vcmp.eq.s32.totalorder %v404, %v491
      %vm1202 = vcmp.eq.s32.totalorder %v404, %v494
      %vm1203 = vcmp.eq.s32.totalorder %v404, %v497
      %vm1204 = vcmp.eq.s32.totalorder %v404, %v500
      %vm1205 = vcmp.eq.s32.totalorder %v404, %v503
      %vm1206 = vcmp.eq.s32.totalorder %v404, %v506
      %vm1207 = vcmp.eq.s32.totalorder %v404, %v509
      %vm1208 = vcmp.eq.s32.totalorder %v404, %v512
      %vm1209 = vcmp.eq.s32.totalorder %v404, %v515
      %vm1210 = vcmp.eq.s32.totalorder %v404, %v518
      %vm1211 = vcmp.eq.s32.totalorder %v404, %v521
      %vm1212 = vcmp.eq.s32.totalorder %v404, %v524
      %vm1213 = vcmp.eq.s32.totalorder %v404, %v527
      %vm1214 = vcmp.eq.s32.totalorder %v404, %v530
      %vm1215 = vcmp.eq.s32.totalorder %v404, %v533
      %vm1216 = vcmp.eq.s32.totalorder %v404, %v536
      %vm1217 = vcmp.eq.s32.totalorder %v404, %v539
      %vm1218 = vcmp.eq.s32.totalorder %v404, %v542
      %vm1219 = vcmp.eq.s32.totalorder %v404, %v545
      %vm1220 = vcmp.eq.s32.totalorder %v404, %v548
      %vm1221 = vcmp.eq.s32.totalorder %v404, %v551
      %vm1222 = vcmp.eq.s32.totalorder %v404, %v554
      %vm1223 = vcmp.eq.s32.totalorder %v404, %v557
      %vm1224 = vcmp.eq.s32.totalorder %v404, %v560
      %vm1225 = vcmp.eq.s32.totalorder %v404, %v563
      %vm1226 = vcmp.eq.s32.totalorder %v404, %v566
      %vm1227 = vcmp.eq.s32.totalorder %v404, %v569
      %vm1228 = vcmp.eq.s32.totalorder %v404, %v572
      %vm1229 = vcmp.eq.s32.totalorder %v404, %v575
      %vm1230 = vcmp.eq.s32.totalorder %v404, %v578
      %vm1231 = vcmp.eq.s32.totalorder %v404, %v581
      %vm1232 = vcmp.eq.s32.totalorder %v404, %v584
      %vm1233 = vcmp.eq.s32.totalorder %v404, %v587
      %vm1234 = vcmp.eq.s32.totalorder %v404, %v590
      %vm1235 = vcmp.eq.s32.totalorder %v404, %v593
      %vm1236 = vcmp.eq.s32.totalorder %v404, %v596
      %vm1237 = vcmp.eq.s32.totalorder %v404, %v599
      %vm1238 = vcmp.eq.s32.totalorder %v404, %v602
      %vm1239 = vcmp.eq.s32.totalorder %v404, %v605
      %vm1240 = vcmp.eq.s32.totalorder %v404, %v608
      %vm1241 = vcmp.eq.s32.totalorder %v404, %v611
      %vm1242 = vcmp.eq.s32.totalorder %v404, %v614
      %vm1243 = vcmp.eq.s32.totalorder %v404, %v617
      %vm1244 = vcmp.eq.s32.totalorder %v404, %v620
      %vm1245 = vcmp.eq.s32.totalorder %v404, %v623
      %vm1246 = vcmp.eq.s32.totalorder %v404, %v626
      %vm1247 = vcmp.eq.s32.totalorder %v404, %v629
      %vm1248 = vcmp.eq.s32.totalorder %v404, %v632
      %vm1249 = vcmp.eq.s32.totalorder %v404, %v635
      %vm1250 = vcmp.eq.s32.totalorder %v404, %v638
      %vm1251 = vcmp.eq.s32.totalorder %v404, %v641
      %vm1252 = vcmp.eq.s32.totalorder %v404, %v644
      %vm1253 = vcmp.eq.s32.totalorder %v404, %v647
      %vm1254 = vcmp.eq.s32.totalorder %v404, %v650
      %vm1255 = vcmp.eq.s32.totalorder %v404, %v653
      %vm1256 = vcmp.eq.s32.totalorder %v404, %v656
      %vm1257 = vcmp.eq.s32.totalorder %v404, %v659
      %vm1258 = vcmp.eq.s32.totalorder %v404, %v662
      %vm1259 = vcmp.eq.s32.totalorder %v404, %v665
      %vm1260 = vcmp.eq.s32.totalorder %v404, %v668
      %vm1261 = vcmp.eq.s32.totalorder %v404, %v671
      %vm1262 = vcmp.eq.s32.totalorder %v404, %v674
      %vm1263 = vcmp.eq.s32.totalorder %v404, %v677
      %vm1264 = vcmp.eq.s32.totalorder %v404, %v680
      %vm1265 = vcmp.eq.s32.totalorder %v404, %v683
      %vm1266 = vcmp.eq.s32.totalorder %v404, %v686
      %vm1267 = vcmp.eq.s32.totalorder %v404, %v689
      %vm1268 = vcmp.eq.s32.totalorder %v404, %v692
      %vm1269 = vcmp.eq.s32.totalorder %v404, %v695
      %vm1270 = vcmp.eq.s32.totalorder %v404, %v698
      %vm1271 = vcmp.eq.s32.totalorder %v404, %v701
      %vm1272 = vcmp.eq.s32.totalorder %v404, %v704
      %vm1273 = vcmp.eq.s32.totalorder %v404, %v707
      %vm1274 = vcmp.eq.s32.totalorder %v404, %v710
      %vm1275 = vcmp.eq.s32.totalorder %v404, %v713
      %vm1276 = vcmp.eq.s32.totalorder %v404, %v716
      %vm1277 = vcmp.eq.s32.totalorder %v404, %v719
      %vm1278 = vcmp.eq.s32.totalorder %v404, %v722
      %vm1279 = vcmp.eq.s32.totalorder %v404, %v725
      %vm1280 = vcmp.eq.s32.totalorder %v404, %v728
      %vm1281 = vcmp.eq.s32.totalorder %v404, %v731
      %vm1282 = vcmp.eq.s32.totalorder %v404, %v734
      %vm1283 = vcmp.eq.s32.totalorder %v404, %v737
      %vm1284 = vcmp.eq.s32.totalorder %v404, %v740
      %vm1285 = vcmp.eq.s32.totalorder %v404, %v743
      %vm1286 = vcmp.eq.s32.totalorder %v404, %v746
      %vm1287 = vcmp.eq.s32.totalorder %v404, %v749
      %vm1288 = vcmp.eq.s32.totalorder %v404, %v752
      %vm1289 = vcmp.eq.s32.totalorder %v404, %v755
      %vm1290 = vcmp.eq.s32.totalorder %v404, %v758
      %vm1291 = vcmp.eq.s32.totalorder %v404, %v761
      %vm1292 = vcmp.eq.s32.totalorder %v404, %v764
      %vm1293 = vcmp.eq.s32.totalorder %v404, %v767
      %vm1294 = vcmp.eq.s32.totalorder %v404, %v770
      %vm1295 = vcmp.eq.s32.totalorder %v404, %v773
      %vm1296 = vcmp.eq.s32.totalorder %v404, %v776
      %vm1297 = vcmp.eq.s32.totalorder %v404, %v779
      %vm1298 = vcmp.eq.s32.totalorder %v404, %v782
      %vm1299 = vcmp.eq.s32.totalorder %v404, %v785
      %vm1300 = vcmp.eq.s32.totalorder %v404, %v788
      %vm1301 = vcmp.eq.s32.totalorder %v404, %v791
      %vm1302 = vcmp.eq.s32.totalorder %v404, %v794
      %vm1303 = vcmp.eq.s32.totalorder %v404, %v797
      %vm1304 = vcmp.eq.s32.totalorder %v404, %v800
      %vm1305 = vcmp.eq.s32.totalorder %v404, %v803
      %vm1306 = vcmp.eq.s32.totalorder %v404, %v806
      %vm1307 = vcmp.eq.s32.totalorder %v404, %v809
      %vm1308 = vcmp.eq.s32.totalorder %v404, %v812
      %vm1309 = vcmp.eq.s32.totalorder %v404, %v815
      %vm1310 = vcmp.eq.s32.totalorder %v404, %v818
      %vm1311 = vcmp.eq.s32.totalorder %v404, %v821
      %vm1312 = vcmp.eq.s32.totalorder %v404, %v824
      %vm1313 = vcmp.eq.s32.totalorder %v404, %v827
      %vm1314 = vcmp.eq.s32.totalorder %v404, %v830
      %vm1315 = vcmp.eq.s32.totalorder %v404, %v833
      %vm1316 = vcmp.eq.s32.totalorder %v404, %v836
      %vm1317 = vcmp.eq.s32.totalorder %v404, %v839
      %vm1318 = vcmp.eq.s32.totalorder %v404, %v842
      %vm1319 = vcmp.eq.s32.totalorder %v404, %v845
      %vm1320 = vcmp.eq.s32.totalorder %v404, %v848
      %vm1321 = vcmp.eq.s32.totalorder %v404, %v851
      %vm1322 = vcmp.eq.s32.totalorder %v404, %v854
      %vm1323 = vcmp.eq.s32.totalorder %v404, %v857
      %vm1324 = vcmp.eq.s32.totalorder %v404, %v860
      %vm1325 = vcmp.eq.s32.totalorder %v404, %v863
      %vm1326 = vcmp.eq.s32.totalorder %v404, %v866
      %vm1327 = vcmp.eq.s32.totalorder %v404, %v869
      %vm1328 = vcmp.eq.s32.totalorder %v404, %v872
      %vm1329 = vcmp.eq.s32.totalorder %v404, %v875
      %vm1330 = vcmp.eq.s32.totalorder %v404, %v878
      %vm1331 = vcmp.eq.s32.totalorder %v404, %v881
      %vm1332 = vcmp.eq.s32.totalorder %v404, %v884
      %vm1333 = vcmp.eq.s32.totalorder %v404, %v887
      %vm1334 = vcmp.eq.s32.totalorder %v404, %v890
      %vm1335 = vcmp.eq.s32.totalorder %v404, %v893
      %vm1336 = vcmp.eq.s32.totalorder %v404, %v896
      %vm1337 = vcmp.eq.s32.totalorder %v404, %v899
      %vm1338 = vcmp.eq.s32.totalorder %v404, %v902
      %vm1339 = vcmp.eq.s32.totalorder %v404, %v905
      %vm1340 = vcmp.eq.s32.totalorder %v404, %v908
      %vm1341 = vcmp.eq.s32.totalorder %v404, %v911
      %vm1342 = vcmp.eq.s32.totalorder %v404, %v914
      %vm1343 = vcmp.eq.s32.totalorder %v404, %v917
      %vm1344 = vcmp.eq.s32.totalorder %v404, %v920
      %vm1345 = vcmp.eq.s32.totalorder %v404, %v923
      %vm1346 = vcmp.eq.s32.totalorder %v404, %v926
      %vm1347 = vcmp.eq.s32.totalorder %v404, %v929
      %vm1348 = vcmp.eq.s32.totalorder %v404, %v932
      %vm1349 = vcmp.eq.s32.totalorder %v404, %v935
      %vm1350 = vcmp.eq.s32.totalorder %v404, %v938
      %vm1351 = vcmp.eq.s32.totalorder %v404, %v941
      %vm1352 = vcmp.eq.s32.totalorder %v404, %v944
      %vm1353 = vcmp.eq.s32.totalorder %v404, %v947
      %vm1354 = vcmp.eq.s32.totalorder %v404, %v950
      %vm1355 = vcmp.eq.s32.totalorder %v404, %v953
      %vm1356 = vcmp.eq.s32.totalorder %v404, %v956
      %vm1357 = vcmp.eq.s32.totalorder %v404, %v959
      %vm1358 = vcmp.eq.s32.totalorder %v404, %v962
      %vm1359 = vcmp.eq.s32.totalorder %v404, %v965
      %vm1360 = vcmp.eq.s32.totalorder %v404, %v968
      %vm1361 = vcmp.eq.s32.totalorder %v404, %v971
      %vm1362 = vcmp.eq.s32.totalorder %v404, %v974
      %vm1363 = vcmp.eq.s32.totalorder %v404, %v977
      %vm1364 = vcmp.eq.s32.totalorder %v404, %v980
      %vm1365 = vcmp.eq.s32.totalorder %v404, %v983
      %vm1366 = vcmp.eq.s32.totalorder %v404, %v986
      %vm1367 = vcmp.eq.s32.totalorder %v404, %v989
      %vm1368 = vcmp.eq.s32.totalorder %v404, %v992
      %vm1369 = vcmp.eq.s32.totalorder %v404, %v995
      %vm1370 = vcmp.eq.s32.totalorder %v404, %v998
      %vm1371 = vcmp.eq.s32.totalorder %v404, %v1001
      %vm1372 = vcmp.eq.s32.totalorder %v404, %v1004
      %vm1373 = vcmp.eq.s32.totalorder %v404, %v1007
      %vm1374 = vcmp.eq.s32.totalorder %v404, %v1010
      %vm1375 = vcmp.eq.s32.totalorder %v404, %v1013
      %vm1376 = vcmp.eq.s32.totalorder %v404, %v1016
      %vm1377 = vcmp.eq.s32.totalorder %v404, %v1019
      %vm1378 = vcmp.eq.s32.totalorder %v404, %v1022
      %vm1379 = vcmp.eq.s32.totalorder %v404, %v1025
      %vm1380 = vcmp.eq.s32.totalorder %v404, %v1028
      %vm1381 = vcmp.eq.s32.totalorder %v404, %v1031
      %vm1382 = vcmp.eq.s32.totalorder %v404, %v1034
      %vm1383 = vcmp.eq.s32.totalorder %v404, %v1037
      %vm1384 = vcmp.eq.s32.totalorder %v404, %v1040
      %vm1385 = vcmp.eq.s32.totalorder %v404, %v1043
      %vm1386 = vcmp.eq.s32.totalorder %v404, %v1046
      %vm1387 = vcmp.eq.s32.totalorder %v404, %v1049
      %vm1388 = vcmp.eq.s32.totalorder %v404, %v1052
      %vm1389 = vcmp.eq.s32.totalorder %v404, %v1055
      %vm1390 = vcmp.eq.s32.totalorder %v404, %v1058
      %vm1391 = vcmp.eq.s32.totalorder %v404, %v1061
      %vm1392 = vcmp.eq.s32.totalorder %v404, %v1064
      %vm1393 = vcmp.eq.s32.totalorder %v404, %v1067
      %vm1394 = vcmp.eq.s32.totalorder %v404, %v1070
      %vm1395 = vcmp.eq.s32.totalorder %v404, %v1073
      %vm1396 = vcmp.eq.s32.totalorder %v404, %v1076
      %vm1397 = vcmp.eq.s32.totalorder %v404, %v1079
      %vm1398 = vcmp.eq.s32.totalorder %v404, %v1082
      %vm1399 = vcmp.eq.s32.totalorder %v404, %v1085
      %vm1400 = vcmp.eq.s32.totalorder %v404, %v1088
      %vm1401 = vcmp.eq.s32.totalorder %v404, %v1091
      %vm1402 = vcmp.eq.s32.totalorder %v404, %v1094
      %vm1403 = vcmp.eq.s32.totalorder %v404, %v1097
      %vm1404 = vcmp.eq.s32.totalorder %v404, %v1100
      %vm1405 = vcmp.eq.s32.totalorder %v404, %v1103
      %vm1406 = vcmp.eq.s32.totalorder %v404, %v1106
      %vm1407 = vcmp.eq.s32.totalorder %v404, %v1109
      %vm1408 = vcmp.eq.s32.totalorder %v404, %v1112
      %vm1409 = vcmp.eq.s32.totalorder %v404, %v1115
      %vm1410 = vcmp.eq.s32.totalorder %v404, %v1118
      %vm1411 = vcmp.eq.s32.totalorder %v404, %v1121
      %vm1412 = vcmp.eq.s32.totalorder %v404, %v1124
      %vm1413 = vcmp.eq.s32.totalorder %v404, %v1127
      %vm1414 = vcmp.eq.s32.totalorder %v404, %v1130
      %vm1415 = vcmp.eq.s32.totalorder %v404, %v1133
      %vm1416 = vcmp.eq.s32.totalorder %v404, %v1136
      %vm1417 = vcmp.eq.s32.totalorder %v404, %v1139
      %vm1418 = vcmp.eq.s32.totalorder %v404, %v1142
      %vm1419 = vcmp.eq.s32.totalorder %v404, %v1145
      %vm1420 = vcmp.eq.s32.totalorder %v404, %v1148
      %vm1421 = vcmp.eq.s32.totalorder %v404, %v1151
      %vm1422 = vcmp.eq.s32.totalorder %v404, %v1154
      %vm1423 = vcmp.eq.s32.totalorder %v404, %v1157
      %vm1424 = vcmp.eq.s32.totalorder %v404, %v1160
      %vm1425 = vcmp.eq.s32.totalorder %v404, %v1163
      %vm1426 = vcmp.eq.s32.totalorder %v404, %v1166
      %vm1427 = vcmp.eq.s32.totalorder %v404, %v1169
      %vm1428 = vcmp.eq.s32.totalorder %v404, %v1172
      %v1429 = vsel %vm1173, 1, 0
      %v1430 = vsel %vm1174, 1, 0
      %v1431 = vsel %vm1175, 1, 0
      %v1432 = vsel %vm1176, 1, 0
      %v1433 = vsel %vm1177, 1, 0
      %v1434 = vsel %vm1178, 1, 0
      %v1435 = vsel %vm1179, 1, 0
      %v1436 = vsel %vm1180, 1, 0
      %v1437 = vsel %vm1181, 1, 0
      %v1438 = vsel %vm1182, 1, 0
      %v1439 = vsel %vm1183, 1, 0
      %v1440 = vsel %vm1184, 1, 0
      %v1441 = vsel %vm1185, 1, 0
      %v1442 = vsel %vm1186, 1, 0
      %v1443 = vsel %vm1187, 1, 0
      %v1444 = vsel %vm1188, 1, 0
      %v1445 = vsel %vm1189, 1, 0
      %v1446 = vsel %vm1190, 1, 0
      %v1447 = vsel %vm1191, 1, 0
      %v1448 = vsel %vm1192, 1, 0
      %v1449 = vsel %vm1193, 1, 0
      %v1450 = vsel %vm1194, 1, 0
      %v1451 = vsel %vm1195, 1, 0
      %v1452 = vsel %vm1196, 1, 0
      %v1453 = vsel %vm1197, 1, 0
      %v1454 = vsel %vm1198, 1, 0
      %v1455 = vsel %vm1199, 1, 0
      %v1456 = vsel %vm1200, 1, 0
      %v1457 = vsel %vm1201, 1, 0
      %v1458 = vsel %vm1202, 1, 0
      %v1459 = vsel %vm1203, 1, 0
      %v1460 = vsel %vm1204, 1, 0
      %v1461 = vsel %vm1205, 1, 0
      %v1462 = vsel %vm1206, 1, 0
      %v1463 = vsel %vm1207, 1, 0
      %v1464 = vsel %vm1208, 1, 0
      %v1465 = vsel %vm1209, 1, 0
      %v1466 = vsel %vm1210, 1, 0
      %v1467 = vsel %vm1211, 1, 0
      %v1468 = vsel %vm1212, 1, 0
      %v1469 = vsel %vm1213, 1, 0
      %v1470 = vsel %vm1214, 1, 0
      %v1471 = vsel %vm1215, 1, 0
      %v1472 = vsel %vm1216, 1, 0
      %v1473 = vsel %vm1217, 1, 0
      %v1474 = vsel %vm1218, 1, 0
      %v1475 = vsel %vm1219, 1, 0
      %v1476 = vsel %vm1220, 1, 0
      %v1477 = vsel %vm1221, 1, 0
      %v1478 = vsel %vm1222, 1, 0
      %v1479 = vsel %vm1223, 1, 0
      %v1480 = vsel %vm1224, 1, 0
      %v1481 = vsel %vm1225, 1, 0
      %v1482 = vsel %vm1226, 1, 0
      %v1483 = vsel %vm1227, 1, 0
      %v1484 = vsel %vm1228, 1, 0
      %v1485 = vsel %vm1229, 1, 0
      %v1486 = vsel %vm1230, 1, 0
      %v1487 = vsel %vm1231, 1, 0
      %v1488 = vsel %vm1232, 1, 0
      %v1489 = vsel %vm1233, 1, 0
      %v1490 = vsel %vm1234, 1, 0
      %v1491 = vsel %vm1235, 1, 0
      %v1492 = vsel %vm1236, 1, 0
      %v1493 = vsel %vm1237, 1, 0
      %v1494 = vsel %vm1238, 1, 0
      %v1495 = vsel %vm1239, 1, 0
      %v1496 = vsel %vm1240, 1, 0
      %v1497 = vsel %vm1241, 1, 0
      %v1498 = vsel %vm1242, 1, 0
      %v1499 = vsel %vm1243, 1, 0
      %v1500 = vsel %vm1244, 1, 0
      %v1501 = vsel %vm1245, 1, 0
      %v1502 = vsel %vm1246, 1, 0
      %v1503 = vsel %vm1247, 1, 0
      %v1504 = vsel %vm1248, 1, 0
      %v1505 = vsel %vm1249, 1, 0
      %v1506 = vsel %vm1250, 1, 0
      %v1507 = vsel %vm1251, 1, 0
      %v1508 = vsel %vm1252, 1, 0
      %v1509 = vsel %vm1253, 1, 0
      %v1510 = vsel %vm1254, 1, 0
      %v1511 = vsel %vm1255, 1, 0
      %v1512 = vsel %vm1256, 1, 0
      %v1513 = vsel %vm1257, 1, 0
      %v1514 = vsel %vm1258, 1, 0
      %v1515 = vsel %vm1259, 1, 0
      %v1516 = vsel %vm1260, 1, 0
      %v1517 = vsel %vm1261, 1, 0
      %v1518 = vsel %vm1262, 1, 0
      %v1519 = vsel %vm1263, 1, 0
      %v1520 = vsel %vm1264, 1, 0
      %v1521 = vsel %vm1265, 1, 0
      %v1522 = vsel %vm1266, 1, 0
      %v1523 = vsel %vm1267, 1, 0
      %v1524 = vsel %vm1268, 1, 0
      %v1525 = vsel %vm1269, 1, 0
      %v1526 = vsel %vm1270, 1, 0
      %v1527 = vsel %vm1271, 1, 0
      %v1528 = vsel %vm1272, 1, 0
      %v1529 = vsel %vm1273, 1, 0
      %v1530 = vsel %vm1274, 1, 0
      %v1531 = vsel %vm1275, 1, 0
      %v1532 = vsel %vm1276, 1, 0
      %v1533 = vsel %vm1277, 1, 0
      %v1534 = vsel %vm1278, 1, 0
      %v1535 = vsel %vm1279, 1, 0
      %v1536 = vsel %vm1280, 1, 0
      %v1537 = vsel %vm1281, 1, 0
      %v1538 = vsel %vm1282, 1, 0
      %v1539 = vsel %vm1283, 1, 0
      %v1540 = vsel %vm1284, 1, 0
      %v1541 = vsel %vm1285, 1, 0
      %v1542 = vsel %vm1286, 1, 0
      %v1543 = vsel %vm1287, 1, 0
      %v1544 = vsel %vm1288, 1, 0
      %v1545 = vsel %vm1289, 1, 0
      %v1546 = vsel %vm1290, 1, 0
      %v1547 = vsel %vm1291, 1, 0
      %v1548 = vsel %vm1292, 1, 0
      %v1549 = vsel %vm1293, 1, 0
      %v1550 = vsel %vm1294, 1, 0
      %v1551 = vsel %vm1295, 1, 0
      %v1552 = vsel %vm1296, 1, 0
      %v1553 = vsel %vm1297, 1, 0
      %v1554 = vsel %vm1298, 1, 0
      %v1555 = vsel %vm1299, 1, 0
      %v1556 = vsel %vm1300, 1, 0
      %v1557 = vsel %vm1301, 1, 0
      %v1558 = vsel %vm1302, 1, 0
      %v1559 = vsel %vm1303, 1, 0
      %v1560 = vsel %vm1304, 1, 0
      %v1561 = vsel %vm1305, 1, 0
      %v1562 = vsel %vm1306, 1, 0
      %v1563 = vsel %vm1307, 1, 0
      %v1564 = vsel %vm1308, 1, 0
      %v1565 = vsel %vm1309, 1, 0
      %v1566 = vsel %vm1310, 1, 0
      %v1567 = vsel %vm1311, 1, 0
      %v1568 = vsel %vm1312, 1, 0
      %v1569 = vsel %vm1313, 1, 0
      %v1570 = vsel %vm1314, 1, 0
      %v1571 = vsel %vm1315, 1, 0
      %v1572 = vsel %vm1316, 1, 0
      %v1573 = vsel %vm1317, 1, 0
      %v1574 = vsel %vm1318, 1, 0
      %v1575 = vsel %vm1319, 1, 0
      %v1576 = vsel %vm1320, 1, 0
      %v1577 = vsel %vm1321, 1, 0
      %v1578 = vsel %vm1322, 1, 0
      %v1579 = vsel %vm1323, 1, 0
      %v1580 = vsel %vm1324, 1, 0
      %v1581 = vsel %vm1325, 1, 0
      %v1582 = vsel %vm1326, 1, 0
      %v1583 = vsel %vm1327, 1, 0
      %v1584 = vsel %vm1328, 1, 0
      %v1585 = vsel %vm1329, 1, 0
      %v1586 = vsel %vm1330, 1, 0
      %v1587 = vsel %vm1331, 1, 0
      %v1588 = vsel %vm1332, 1, 0
      %v1589 = vsel %vm1333, 1, 0
      %v1590 = vsel %vm1334, 1, 0
      %v1591 = vsel %vm1335, 1, 0
      %v1592 = vsel %vm1336, 1, 0
      %v1593 = vsel %vm1337, 1, 0
      %v1594 = vsel %vm1338, 1, 0
      %v1595 = vsel %vm1339, 1, 0
      %v1596 = vsel %vm1340, 1, 0
      %v1597 = vsel %vm1341, 1, 0
      %v1598 = vsel %vm1342, 1, 0
      %v1599 = vsel %vm1343, 1, 0
      %v1600 = vsel %vm1344, 1, 0
      %v1601 = vsel %vm1345, 1, 0
      %v1602 = vsel %vm1346, 1, 0
      %v1603 = vsel %vm1347, 1, 0
      %v1604 = vsel %vm1348, 1, 0
      %v1605 = vsel %vm1349, 1, 0
      %v1606 = vsel %vm1350, 1, 0
      %v1607 = vsel %vm1351, 1, 0
      %v1608 = vsel %vm1352, 1, 0
      %v1609 = vsel %vm1353, 1, 0
      %v1610 = vsel %vm1354, 1, 0
      %v1611 = vsel %vm1355, 1, 0
      %v1612 = vsel %vm1356, 1, 0
      %v1613 = vsel %vm1357, 1, 0
      %v1614 = vsel %vm1358, 1, 0
      %v1615 = vsel %vm1359, 1, 0
      %v1616 = vsel %vm1360, 1, 0
      %v1617 = vsel %vm1361, 1, 0
      %v1618 = vsel %vm1362, 1, 0
      %v1619 = vsel %vm1363, 1, 0
      %v1620 = vsel %vm1364, 1, 0
      %v1621 = vsel %vm1365, 1, 0
      %v1622 = vsel %vm1366, 1, 0
      %v1623 = vsel %vm1367, 1, 0
      %v1624 = vsel %vm1368, 1, 0
      %v1625 = vsel %vm1369, 1, 0
      %v1626 = vsel %vm1370, 1, 0
      %v1627 = vsel %vm1371, 1, 0
      %v1628 = vsel %vm1372, 1, 0
      %v1629 = vsel %vm1373, 1, 0
      %v1630 = vsel %vm1374, 1, 0
      %v1631 = vsel %vm1375, 1, 0
      %v1632 = vsel %vm1376, 1, 0
      %v1633 = vsel %vm1377, 1, 0
      %v1634 = vsel %vm1378, 1, 0
      %v1635 = vsel %vm1379, 1, 0
      %v1636 = vsel %vm1380, 1, 0
      %v1637 = vsel %vm1381, 1, 0
      %v1638 = vsel %vm1382, 1, 0
      %v1639 = vsel %vm1383, 1, 0
      %v1640 = vsel %vm1384, 1, 0
      %v1641 = vsel %vm1385, 1, 0
      %v1642 = vsel %vm1386, 1, 0
      %v1643 = vsel %vm1387, 1, 0
      %v1644 = vsel %vm1388, 1, 0
      %v1645 = vsel %vm1389, 1, 0
      %v1646 = vsel %vm1390, 1, 0
      %v1647 = vsel %vm1391, 1, 0
      %v1648 = vsel %vm1392, 1, 0
      %v1649 = vsel %vm1393, 1, 0
      %v1650 = vsel %vm1394, 1, 0
      %v1651 = vsel %vm1395, 1, 0
      %v1652 = vsel %vm1396, 1, 0
      %v1653 = vsel %vm1397, 1, 0
      %v1654 = vsel %vm1398, 1, 0
      %v1655 = vsel %vm1399, 1, 0
      %v1656 = vsel %vm1400, 1, 0
      %v1657 = vsel %vm1401, 1, 0
      %v1658 = vsel %vm1402, 1, 0
      %v1659 = vsel %vm1403, 1, 0
      %v1660 = vsel %vm1404, 1, 0
      %v1661 = vsel %vm1405, 1, 0
      %v1662 = vsel %vm1406, 1, 0
      %v1663 = vsel %vm1407, 1, 0
      %v1664 = vsel %vm1408, 1, 0
      %v1665 = vsel %vm1409, 1, 0
      %v1666 = vsel %vm1410, 1, 0
      %v1667 = vsel %vm1411, 1, 0
      %v1668 = vsel %vm1412, 1, 0
      %v1669 = vsel %vm1413, 1, 0
      %v1670 = vsel %vm1414, 1, 0
      %v1671 = vsel %vm1415, 1, 0
      %v1672 = vsel %vm1416, 1, 0
      %v1673 = vsel %vm1417, 1, 0
      %v1674 = vsel %vm1418, 1, 0
      %v1675 = vsel %vm1419, 1, 0
      %v1676 = vsel %vm1420, 1, 0
      %v1677 = vsel %vm1421, 1, 0
      %v1678 = vsel %vm1422, 1, 0
      %v1679 = vsel %vm1423, 1, 0
      %v1680 = vsel %vm1424, 1, 0
      %v1681 = vsel %vm1425, 1, 0
      %v1682 = vsel %vm1426, 1, 0
      %v1683 = vsel %vm1427, 1, 0
      %v1684 = vsel %vm1428, 1, 0
      %v1685 = vcvt.s32.f32 %v1429
      %v1686 = vcvt.s32.f32 %v1430
      %v1687 = vcvt.s32.f32 %v1431
      %v1688 = vcvt.s32.f32 %v1432
      %v1689 = vcvt.s32.f32 %v1433
      %v1690 = vcvt.s32.f32 %v1434
      %v1691 = vcvt.s32.f32 %v1435
      %v1692 = vcvt.s32.f32 %v1436
      %v1693 = vcvt.s32.f32 %v1437
      %v1694 = vcvt.s32.f32 %v1438
      %v1695 = vcvt.s32.f32 %v1439
      %v1696 = vcvt.s32.f32 %v1440
      %v1697 = vcvt.s32.f32 %v1441
      %v1698 = vcvt.s32.f32 %v1442
      %v1699 = vcvt.s32.f32 %v1443
      %v1700 = vcvt.s32.f32 %v1444
      %v1701 = vcvt.s32.f32 %v1445
      %v1702 = vcvt.s32.f32 %v1446
      %v1703 = vcvt.s32.f32 %v1447
      %v1704 = vcvt.s32.f32 %v1448
      %v1705 = vcvt.s32.f32 %v1449
      %v1706 = vcvt.s32.f32 %v1450
      %v1707 = vcvt.s32.f32 %v1451
      %v1708 = vcvt.s32.f32 %v1452
      %v1709 = vcvt.s32.f32 %v1453
      %v1710 = vcvt.s32.f32 %v1454
      %v1711 = vcvt.s32.f32 %v1455
      %v1712 = vcvt.s32.f32 %v1456
      %v1713 = vcvt.s32.f32 %v1457
      %v1714 = vcvt.s32.f32 %v1458
      %v1715 = vcvt.s32.f32 %v1459
      %v1716 = vcvt.s32.f32 %v1460
      %v1717 = vcvt.s32.f32 %v1461
      %v1718 = vcvt.s32.f32 %v1462
      %v1719 = vcvt.s32.f32 %v1463
      %v1720 = vcvt.s32.f32 %v1464
      %v1721 = vcvt.s32.f32 %v1465
      %v1722 = vcvt.s32.f32 %v1466
      %v1723 = vcvt.s32.f32 %v1467
      %v1724 = vcvt.s32.f32 %v1468
      %v1725 = vcvt.s32.f32 %v1469
      %v1726 = vcvt.s32.f32 %v1470
      %v1727 = vcvt.s32.f32 %v1471
      %v1728 = vcvt.s32.f32 %v1472
      %v1729 = vcvt.s32.f32 %v1473
      %v1730 = vcvt.s32.f32 %v1474
      %v1731 = vcvt.s32.f32 %v1475
      %v1732 = vcvt.s32.f32 %v1476
      %v1733 = vcvt.s32.f32 %v1477
      %v1734 = vcvt.s32.f32 %v1478
      %v1735 = vcvt.s32.f32 %v1479
      %v1736 = vcvt.s32.f32 %v1480
      %v1737 = vcvt.s32.f32 %v1481
      %v1738 = vcvt.s32.f32 %v1482
      %v1739 = vcvt.s32.f32 %v1483
      %v1740 = vcvt.s32.f32 %v1484
      %v1741 = vcvt.s32.f32 %v1485
      %v1742 = vcvt.s32.f32 %v1486
      %v1743 = vcvt.s32.f32 %v1487
      %v1744 = vcvt.s32.f32 %v1488
      %v1745 = vcvt.s32.f32 %v1489
      %v1746 = vcvt.s32.f32 %v1490
      %v1747 = vcvt.s32.f32 %v1491
      %v1748 = vcvt.s32.f32 %v1492
      %v1749 = vcvt.s32.f32 %v1493
      %v1750 = vcvt.s32.f32 %v1494
      %v1751 = vcvt.s32.f32 %v1495
      %v1752 = vcvt.s32.f32 %v1496
      %v1753 = vcvt.s32.f32 %v1497
      %v1754 = vcvt.s32.f32 %v1498
      %v1755 = vcvt.s32.f32 %v1499
      %v1756 = vcvt.s32.f32 %v1500
      %v1757 = vcvt.s32.f32 %v1501
      %v1758 = vcvt.s32.f32 %v1502
      %v1759 = vcvt.s32.f32 %v1503
      %v1760 = vcvt.s32.f32 %v1504
      %v1761 = vcvt.s32.f32 %v1505
      %v1762 = vcvt.s32.f32 %v1506
      %v1763 = vcvt.s32.f32 %v1507
      %v1764 = vcvt.s32.f32 %v1508
      %v1765 = vcvt.s32.f32 %v1509
      %v1766 = vcvt.s32.f32 %v1510
      %v1767 = vcvt.s32.f32 %v1511
      %v1768 = vcvt.s32.f32 %v1512
      %v1769 = vcvt.s32.f32 %v1513
      %v1770 = vcvt.s32.f32 %v1514
      %v1771 = vcvt.s32.f32 %v1515
      %v1772 = vcvt.s32.f32 %v1516
      %v1773 = vcvt.s32.f32 %v1517
      %v1774 = vcvt.s32.f32 %v1518
      %v1775 = vcvt.s32.f32 %v1519
      %v1776 = vcvt.s32.f32 %v1520
      %v1777 = vcvt.s32.f32 %v1521
      %v1778 = vcvt.s32.f32 %v1522
      %v1779 = vcvt.s32.f32 %v1523
      %v1780 = vcvt.s32.f32 %v1524
      %v1781 = vcvt.s32.f32 %v1525
      %v1782 = vcvt.s32.f32 %v1526
      %v1783 = vcvt.s32.f32 %v1527
      %v1784 = vcvt.s32.f32 %v1528
      %v1785 = vcvt.s32.f32 %v1529
      %v1786 = vcvt.s32.f32 %v1530
      %v1787 = vcvt.s32.f32 %v1531
      %v1788 = vcvt.s32.f32 %v1532
      %v1789 = vcvt.s32.f32 %v1533
      %v1790 = vcvt.s32.f32 %v1534
      %v1791 = vcvt.s32.f32 %v1535
      %v1792 = vcvt.s32.f32 %v1536
      %v1793 = vcvt.s32.f32 %v1537
      %v1794 = vcvt.s32.f32 %v1538
      %v1795 = vcvt.s32.f32 %v1539
      %v1796 = vcvt.s32.f32 %v1540
      %v1797 = vcvt.s32.f32 %v1541
      %v1798 = vcvt.s32.f32 %v1542
      %v1799 = vcvt.s32.f32 %v1543
      %v1800 = vcvt.s32.f32 %v1544
      %v1801 = vcvt.s32.f32 %v1545
      %v1802 = vcvt.s32.f32 %v1546
      %v1803 = vcvt.s32.f32 %v1547
      %v1804 = vcvt.s32.f32 %v1548
      %v1805 = vcvt.s32.f32 %v1549
      %v1806 = vcvt.s32.f32 %v1550
      %v1807 = vcvt.s32.f32 %v1551
      %v1808 = vcvt.s32.f32 %v1552
      %v1809 = vcvt.s32.f32 %v1553
      %v1810 = vcvt.s32.f32 %v1554
      %v1811 = vcvt.s32.f32 %v1555
      %v1812 = vcvt.s32.f32 %v1556
      %v1813 = vcvt.s32.f32 %v1557
      %v1814 = vcvt.s32.f32 %v1558
      %v1815 = vcvt.s32.f32 %v1559
      %v1816 = vcvt.s32.f32 %v1560
      %v1817 = vcvt.s32.f32 %v1561
      %v1818 = vcvt.s32.f32 %v1562
      %v1819 = vcvt.s32.f32 %v1563
      %v1820 = vcvt.s32.f32 %v1564
      %v1821 = vcvt.s32.f32 %v1565
      %v1822 = vcvt.s32.f32 %v1566
      %v1823 = vcvt.s32.f32 %v1567
      %v1824 = vcvt.s32.f32 %v1568
      %v1825 = vcvt.s32.f32 %v1569
      %v1826 = vcvt.s32.f32 %v1570
      %v1827 = vcvt.s32.f32 %v1571
      %v1828 = vcvt.s32.f32 %v1572
      %v1829 = vcvt.s32.f32 %v1573
      %v1830 = vcvt.s32.f32 %v1574
      %v1831 = vcvt.s32.f32 %v1575
      %v1832 = vcvt.s32.f32 %v1576
      %v1833 = vcvt.s32.f32 %v1577
      %v1834 = vcvt.s32.f32 %v1578
      %v1835 = vcvt.s32.f32 %v1579
      %v1836 = vcvt.s32.f32 %v1580
      %v1837 = vcvt.s32.f32 %v1581
      %v1838 = vcvt.s32.f32 %v1582
      %v1839 = vcvt.s32.f32 %v1583
      %v1840 = vcvt.s32.f32 %v1584
      %v1841 = vcvt.s32.f32 %v1585
      %v1842 = vcvt.s32.f32 %v1586
      %v1843 = vcvt.s32.f32 %v1587
      %v1844 = vcvt.s32.f32 %v1588
      %v1845 = vcvt.s32.f32 %v1589
      %v1846 = vcvt.s32.f32 %v1590
      %v1847 = vcvt.s32.f32 %v1591
      %v1848 = vcvt.s32.f32 %v1592
      %v1849 = vcvt.s32.f32 %v1593
      %v1850 = vcvt.s32.f32 %v1594
      %v1851 = vcvt.s32.f32 %v1595
      %v1852 = vcvt.s32.f32 %v1596
      %v1853 = vcvt.s32.f32 %v1597
      %v1854 = vcvt.s32.f32 %v1598
      %v1855 = vcvt.s32.f32 %v1599
      %v1856 = vcvt.s32.f32 %v1600
      %v1857 = vcvt.s32.f32 %v1601
      %v1858 = vcvt.s32.f32 %v1602
      %v1859 = vcvt.s32.f32 %v1603
      %v1860 = vcvt.s32.f32 %v1604
      %v1861 = vcvt.s32.f32 %v1605
      %v1862 = vcvt.s32.f32 %v1606
      %v1863 = vcvt.s32.f32 %v1607
      %v1864 = vcvt.s32.f32 %v1608
      %v1865 = vcvt.s32.f32 %v1609
      %v1866 = vcvt.s32.f32 %v1610
      %v1867 = vcvt.s32.f32 %v1611
      %v1868 = vcvt.s32.f32 %v1612
      %v1869 = vcvt.s32.f32 %v1613
      %v1870 = vcvt.s32.f32 %v1614
      %v1871 = vcvt.s32.f32 %v1615
      %v1872 = vcvt.s32.f32 %v1616
      %v1873 = vcvt.s32.f32 %v1617
      %v1874 = vcvt.s32.f32 %v1618
      %v1875 = vcvt.s32.f32 %v1619
      %v1876 = vcvt.s32.f32 %v1620
      %v1877 = vcvt.s32.f32 %v1621
      %v1878 = vcvt.s32.f32 %v1622
      %v1879 = vcvt.s32.f32 %v1623
      %v1880 = vcvt.s32.f32 %v1624
      %v1881 = vcvt.s32.f32 %v1625
      %v1882 = vcvt.s32.f32 %v1626
      %v1883 = vcvt.s32.f32 %v1627
      %v1884 = vcvt.s32.f32 %v1628
      %v1885 = vcvt.s32.f32 %v1629
      %v1886 = vcvt.s32.f32 %v1630
      %v1887 = vcvt.s32.f32 %v1631
      %v1888 = vcvt.s32.f32 %v1632
      %v1889 = vcvt.s32.f32 %v1633
      %v1890 = vcvt.s32.f32 %v1634
      %v1891 = vcvt.s32.f32 %v1635
      %v1892 = vcvt.s32.f32 %v1636
      %v1893 = vcvt.s32.f32 %v1637
      %v1894 = vcvt.s32.f32 %v1638
      %v1895 = vcvt.s32.f32 %v1639
      %v1896 = vcvt.s32.f32 %v1640
      %v1897 = vcvt.s32.f32 %v1641
      %v1898 = vcvt.s32.f32 %v1642
      %v1899 = vcvt.s32.f32 %v1643
      %v1900 = vcvt.s32.f32 %v1644
      %v1901 = vcvt.s32.f32 %v1645
      %v1902 = vcvt.s32.f32 %v1646
      %v1903 = vcvt.s32.f32 %v1647
      %v1904 = vcvt.s32.f32 %v1648
      %v1905 = vcvt.s32.f32 %v1649
      %v1906 = vcvt.s32.f32 %v1650
      %v1907 = vcvt.s32.f32 %v1651
      %v1908 = vcvt.s32.f32 %v1652
      %v1909 = vcvt.s32.f32 %v1653
      %v1910 = vcvt.s32.f32 %v1654
      %v1911 = vcvt.s32.f32 %v1655
      %v1912 = vcvt.s32.f32 %v1656
      %v1913 = vcvt.s32.f32 %v1657
      %v1914 = vcvt.s32.f32 %v1658
      %v1915 = vcvt.s32.f32 %v1659
      %v1916 = vcvt.s32.f32 %v1660
      %v1917 = vcvt.s32.f32 %v1661
      %v1918 = vcvt.s32.f32 %v1662
      %v1919 = vcvt.s32.f32 %v1663
      %v1920 = vcvt.s32.f32 %v1664
      %v1921 = vcvt.s32.f32 %v1665
      %v1922 = vcvt.s32.f32 %v1666
      %v1923 = vcvt.s32.f32 %v1667
      %v1924 = vcvt.s32.f32 %v1668
      %v1925 = vcvt.s32.f32 %v1669
      %v1926 = vcvt.s32.f32 %v1670
      %v1927 = vcvt.s32.f32 %v1671
      %v1928 = vcvt.s32.f32 %v1672
      %v1929 = vcvt.s32.f32 %v1673
      %v1930 = vcvt.s32.f32 %v1674
      %v1931 = vcvt.s32.f32 %v1675
      %v1932 = vcvt.s32.f32 %v1676
      %v1933 = vcvt.s32.f32 %v1677
      %v1934 = vcvt.s32.f32 %v1678
      %v1935 = vcvt.s32.f32 %v1679
      %v1936 = vcvt.s32.f32 %v1680
      %v1937 = vcvt.s32.f32 %v1681
      %v1938 = vcvt.s32.f32 %v1682
      %v1939 = vcvt.s32.f32 %v1683
      %v1940 = vcvt.s32.f32 %v1684
      %v1941 = vld [vmem:[%s1] sm:$0xff]
      %v1942 = vld [vmem:[%s1 + $0x8] sm:$0xf]
      %vm1943 = vcmask 97280
      %v1945 = vsel %vm1943, %v1685, 0
      %v1948 = vsel %vm1943, %v1686, 0
      %v1951 = vsel %vm1943, %v1687, 0
      %v1954 = vsel %vm1943, %v1688, 0
      %v1957 = vsel %vm1943, %v1689, 0
      %v1960 = vsel %vm1943, %v1690, 0
      %v1963 = vsel %vm1943, %v1691, 0
      %v1966 = vsel %vm1943, %v1692, 0
      %v1969 = vsel %vm1943, %v1693, 0
      %v1972 = vsel %vm1943, %v1694, 0
      %v1975 = vsel %vm1943, %v1695, 0
      %v1978 = vsel %vm1943, %v1696, 0
      %v1981 = vsel %vm1943, %v1697, 0
      %v1984 = vsel %vm1943, %v1698, 0
      %v1987 = vsel %vm1943, %v1699, 0
      %v1990 = vsel %vm1943, %v1700, 0
      %v1993 = vsel %vm1943, %v1701, 0
      %v1996 = vsel %vm1943, %v1702, 0
      %v1999 = vsel %vm1943, %v1703, 0
      %v2002 = vsel %vm1943, %v1704, 0
      %v2005 = vsel %vm1943, %v1705, 0
      %v2008 = vsel %vm1943, %v1706, 0
      %v2011 = vsel %vm1943, %v1707, 0
      %v2014 = vsel %vm1943, %v1708, 0
      %v2017 = vsel %vm1943, %v1709, 0
      %v2020 = vsel %vm1943, %v1710, 0
      %v2023 = vsel %vm1943, %v1711, 0
      %v2026 = vsel %vm1943, %v1712, 0
      %v2029 = vsel %vm1943, %v1713, 0
      %v2032 = vsel %vm1943, %v1714, 0
      %v2035 = vsel %vm1943, %v1715, 0
      %v2038 = vsel %vm1943, %v1716, 0
      %v2041 = vsel %vm1943, %v1717, 0
      %v2044 = vsel %vm1943, %v1718, 0
      %v2047 = vsel %vm1943, %v1719, 0
      %v2050 = vsel %vm1943, %v1720, 0
      %v2053 = vsel %vm1943, %v1721, 0
      %v2056 = vsel %vm1943, %v1722, 0
      %v2059 = vsel %vm1943, %v1723, 0
      %v2062 = vsel %vm1943, %v1724, 0
      %v2065 = vsel %vm1943, %v1725, 0
      %v2068 = vsel %vm1943, %v1726, 0
      %v2071 = vsel %vm1943, %v1727, 0
      %v2074 = vsel %vm1943, %v1728, 0
      %v2077 = vsel %vm1943, %v1729, 0
      %v2080 = vsel %vm1943, %v1730, 0
      %v2083 = vsel %vm1943, %v1731, 0
      %v2086 = vsel %vm1943, %v1732, 0
      %v2089 = vsel %vm1943, %v1733, 0
      %v2092 = vsel %vm1943, %v1734, 0
      %v2095 = vsel %vm1943, %v1735, 0
      %v2098 = vsel %vm1943, %v1736, 0
      %v2101 = vsel %vm1943, %v1737, 0
      %v2104 = vsel %vm1943, %v1738, 0
      %v2107 = vsel %vm1943, %v1739, 0
      %v2110 = vsel %vm1943, %v1740, 0
      %v2113 = vsel %vm1943, %v1741, 0
      %v2116 = vsel %vm1943, %v1742, 0
      %v2119 = vsel %vm1943, %v1743, 0
      %v2122 = vsel %vm1943, %v1744, 0
      %v2125 = vsel %vm1943, %v1745, 0
      %v2128 = vsel %vm1943, %v1746, 0
      %v2131 = vsel %vm1943, %v1747, 0
      %v2134 = vsel %vm1943, %v1748, 0
      %v2137 = vsel %vm1943, %v1749, 0
      %v2140 = vsel %vm1943, %v1750, 0
      %v2143 = vsel %vm1943, %v1751, 0
      %v2146 = vsel %vm1943, %v1752, 0
      %v2149 = vsel %vm1943, %v1753, 0
      %v2152 = vsel %vm1943, %v1754, 0
      %v2155 = vsel %vm1943, %v1755, 0
      %v2158 = vsel %vm1943, %v1756, 0
      %v2161 = vsel %vm1943, %v1757, 0
      %v2164 = vsel %vm1943, %v1758, 0
      %v2167 = vsel %vm1943, %v1759, 0
      %v2170 = vsel %vm1943, %v1760, 0
      %v2173 = vsel %vm1943, %v1761, 0
      %v2176 = vsel %vm1943, %v1762, 0
      %v2179 = vsel %vm1943, %v1763, 0
      %v2182 = vsel %vm1943, %v1764, 0
      %v2185 = vsel %vm1943, %v1765, 0
      %v2188 = vsel %vm1943, %v1766, 0
      %v2191 = vsel %vm1943, %v1767, 0
      %v2194 = vsel %vm1943, %v1768, 0
      %v2197 = vsel %vm1943, %v1769, 0
      %v2200 = vsel %vm1943, %v1770, 0
      %v2203 = vsel %vm1943, %v1771, 0
      %v2206 = vsel %vm1943, %v1772, 0
      %v2209 = vsel %vm1943, %v1773, 0
      %v2212 = vsel %vm1943, %v1774, 0
      %v2215 = vsel %vm1943, %v1775, 0
      %v2218 = vsel %vm1943, %v1776, 0
      %v2221 = vsel %vm1943, %v1777, 0
      %v2224 = vsel %vm1943, %v1778, 0
      %v2227 = vsel %vm1943, %v1779, 0
      %v2230 = vsel %vm1943, %v1780, 0
      %v2233 = vsel %vm1943, %v1781, 0
      %v2236 = vsel %vm1943, %v1782, 0
      %v2239 = vsel %vm1943, %v1783, 0
      %v2242 = vsel %vm1943, %v1784, 0
      %v2245 = vsel %vm1943, %v1785, 0
      %v2248 = vsel %vm1943, %v1786, 0
      %v2251 = vsel %vm1943, %v1787, 0
      %v2254 = vsel %vm1943, %v1788, 0
      %v2257 = vsel %vm1943, %v1789, 0
      %v2260 = vsel %vm1943, %v1790, 0
      %v2263 = vsel %vm1943, %v1791, 0
      %v2266 = vsel %vm1943, %v1792, 0
      %v2269 = vsel %vm1943, %v1793, 0
      %v2272 = vsel %vm1943, %v1794, 0
      %v2275 = vsel %vm1943, %v1795, 0
      %v2278 = vsel %vm1943, %v1796, 0
      %v2281 = vsel %vm1943, %v1797, 0
      %v2284 = vsel %vm1943, %v1798, 0
      %v2287 = vsel %vm1943, %v1799, 0
      %v2290 = vsel %vm1943, %v1800, 0
      %v2293 = vsel %vm1943, %v1801, 0
      %v2296 = vsel %vm1943, %v1802, 0
      %v2299 = vsel %vm1943, %v1803, 0
      %v2302 = vsel %vm1943, %v1804, 0
      %v2305 = vsel %vm1943, %v1805, 0
      %v2308 = vsel %vm1943, %v1806, 0
      %v2311 = vsel %vm1943, %v1807, 0
      %v2314 = vsel %vm1943, %v1808, 0
      %v2317 = vsel %vm1943, %v1809, 0
      %v2320 = vsel %vm1943, %v1810, 0
      %v2323 = vsel %vm1943, %v1811, 0
      %v2326 = vsel %vm1943, %v1812, 0
      %v2329 = vsel %vm1943, %v1813, 0
      %v2332 = vsel %vm1943, %v1814, 0
      %v2335 = vsel %vm1943, %v1815, 0
      %v2338 = vsel %vm1943, %v1816, 0
      %v2341 = vsel %vm1943, %v1817, 0
      %v2344 = vsel %vm1943, %v1818, 0
      %v2347 = vsel %vm1943, %v1819, 0
      %v2350 = vsel %vm1943, %v1820, 0
      %v2353 = vsel %vm1943, %v1821, 0
      %v2356 = vsel %vm1943, %v1822, 0
      %v2359 = vsel %vm1943, %v1823, 0
      %v2362 = vsel %vm1943, %v1824, 0
      %v2365 = vsel %vm1943, %v1825, 0
      %v2368 = vsel %vm1943, %v1826, 0
      %v2371 = vsel %vm1943, %v1827, 0
      %v2374 = vsel %vm1943, %v1828, 0
      %v2377 = vsel %vm1943, %v1829, 0
      %v2380 = vsel %vm1943, %v1830, 0
      %v2383 = vsel %vm1943, %v1831, 0
      %v2386 = vsel %vm1943, %v1832, 0
      %v2389 = vsel %vm1943, %v1833, 0
      %v2392 = vsel %vm1943, %v1834, 0
      %v2395 = vsel %vm1943, %v1835, 0
      %v2398 = vsel %vm1943, %v1836, 0
      %v2401 = vsel %vm1943, %v1837, 0
      %v2404 = vsel %vm1943, %v1838, 0
      %v2407 = vsel %vm1943, %v1839, 0
      %v2410 = vsel %vm1943, %v1840, 0
      %v2413 = vsel %vm1943, %v1841, 0
      %v2416 = vsel %vm1943, %v1842, 0
      %v2419 = vsel %vm1943, %v1843, 0
      %v2422 = vsel %vm1943, %v1844, 0
      %v2425 = vsel %vm1943, %v1845, 0
      %v2428 = vsel %vm1943, %v1846, 0
      %v2431 = vsel %vm1943, %v1847, 0
      %v2434 = vsel %vm1943, %v1848, 0
      %v2437 = vsel %vm1943, %v1849, 0
      %v2440 = vsel %vm1943, %v1850, 0
      %v2443 = vsel %vm1943, %v1851, 0
      %v2446 = vsel %vm1943, %v1852, 0
      %v2449 = vsel %vm1943, %v1853, 0
      %v2452 = vsel %vm1943, %v1854, 0
      %v2455 = vsel %vm1943, %v1855, 0
      %v2458 = vsel %vm1943, %v1856, 0
      %v2461 = vsel %vm1943, %v1857, 0
      %v2464 = vsel %vm1943, %v1858, 0
      %v2467 = vsel %vm1943, %v1859, 0
      %v2470 = vsel %vm1943, %v1860, 0
      %v2473 = vsel %vm1943, %v1861, 0
      %v2476 = vsel %vm1943, %v1862, 0
      %v2479 = vsel %vm1943, %v1863, 0
      %v2482 = vsel %vm1943, %v1864, 0
      %v2485 = vsel %vm1943, %v1865, 0
      %v2488 = vsel %vm1943, %v1866, 0
      %v2491 = vsel %vm1943, %v1867, 0
      %v2494 = vsel %vm1943, %v1868, 0
      %v2497 = vsel %vm1943, %v1869, 0
      %v2500 = vsel %vm1943, %v1870, 0
      %v2503 = vsel %vm1943, %v1871, 0
      %v2506 = vsel %vm1943, %v1872, 0
      %v2509 = vsel %vm1943, %v1873, 0
      %v2512 = vsel %vm1943, %v1874, 0
      %v2515 = vsel %vm1943, %v1875, 0
      %v2518 = vsel %vm1943, %v1876, 0
      %v2521 = vsel %vm1943, %v1877, 0
      %v2524 = vsel %vm1943, %v1878, 0
      %v2527 = vsel %vm1943, %v1879, 0
      %v2530 = vsel %vm1943, %v1880, 0
      %v2533 = vsel %vm1943, %v1881, 0
      %v2536 = vsel %vm1943, %v1882, 0
      %v2539 = vsel %vm1943, %v1883, 0
      %v2542 = vsel %vm1943, %v1884, 0
      %v2545 = vsel %vm1943, %v1885, 0
      %v2548 = vsel %vm1943, %v1886, 0
      %v2551 = vsel %vm1943, %v1887, 0
      %v2554 = vsel %vm1943, %v1888, 0
      %v2557 = vsel %vm1943, %v1889, 0
      %v2560 = vsel %vm1943, %v1890, 0
      %v2563 = vsel %vm1943, %v1891, 0
      %v2566 = vsel %vm1943, %v1892, 0
      %v2569 = vsel %vm1943, %v1893, 0
      %v2572 = vsel %vm1943, %v1894, 0
      %v2575 = vsel %vm1943, %v1895, 0
      %v2578 = vsel %vm1943, %v1896, 0
      %v2581 = vsel %vm1943, %v1897, 0
      %v2584 = vsel %vm1943, %v1898, 0
      %v2587 = vsel %vm1943, %v1899, 0
      %v2590 = vsel %vm1943, %v1900, 0
      %v2593 = vsel %vm1943, %v1901, 0
      %v2596 = vsel %vm1943, %v1902, 0
      %v2599 = vsel %vm1943, %v1903, 0
      %v2602 = vsel %vm1943, %v1904, 0
      %v2605 = vsel %vm1943, %v1905, 0
      %v2608 = vsel %vm1943, %v1906, 0
      %v2611 = vsel %vm1943, %v1907, 0
      %v2614 = vsel %vm1943, %v1908, 0
      %v2617 = vsel %vm1943, %v1909, 0
      %v2620 = vsel %vm1943, %v1910, 0
      %v2623 = vsel %vm1943, %v1911, 0
      %v2626 = vsel %vm1943, %v1912, 0
      %v2629 = vsel %vm1943, %v1913, 0
      %v2632 = vsel %vm1943, %v1914, 0
      %v2635 = vsel %vm1943, %v1915, 0
      %v2638 = vsel %vm1943, %v1916, 0
      %v2641 = vsel %vm1943, %v1917, 0
      %v2644 = vsel %vm1943, %v1918, 0
      %v2647 = vsel %vm1943, %v1919, 0
      %v2650 = vsel %vm1943, %v1920, 0
      %v2653 = vsel %vm1943, %v1921, 0
      %v2656 = vsel %vm1943, %v1922, 0
      %v2659 = vsel %vm1943, %v1923, 0
      %v2662 = vsel %vm1943, %v1924, 0
      %v2665 = vsel %vm1943, %v1925, 0
      %v2668 = vsel %vm1943, %v1926, 0
      %v2671 = vsel %vm1943, %v1927, 0
      %v2674 = vsel %vm1943, %v1928, 0
      %v2677 = vsel %vm1943, %v1929, 0
      %v2680 = vsel %vm1943, %v1930, 0
      %v2683 = vsel %vm1943, %v1931, 0
      %v2686 = vsel %vm1943, %v1932, 0
      %v2689 = vsel %vm1943, %v1933, 0
      %v2692 = vsel %vm1943, %v1934, 0
      %v2695 = vsel %vm1943, %v1935, 0
      %v2698 = vsel %vm1943, %v1936, 0
      %v2701 = vsel %vm1943, %v1937, 0
      %v2704 = vsel %vm1943, %v1938, 0
      %v2707 = vsel %vm1943, %v1939, 0
      %v2710 = vsel %vm1943, %v1940, 0
      %vm2712 = vcmask 1043456
      %v2714 = vsel %vm2712, %v1942, 0
      %2716 = vmatprep.subr.mxu0 0.0
      %2717 = vmatpush1.msra.mxu0 0.0
      %2718 = vmatprep.subr.mxu0 0.0
      %2719 = vmatpush1.msra.mxu0 0.0
      %2720 = vmatprep.subr.mxu0 0.0
      %2721 = vmatpush1.msra.mxu0 0.0
      %2722 = vmatprep.subr.mxu0 0.0
      %2723 = vmatpush1.msra.mxu0 0.0
      %2724 = vmatprep.subr.mxu0 0.0
      %2725 = vmatpush1.msra.mxu0 0.0
      %2726 = vmatprep.subr.mxu0 0.0
      %2727 = vmatpush1.msra.mxu0 0.0
      %2728 = vmatprep.subr.mxu0 0.0
      %2729 = vmatpush1.msra.mxu0 0.0
      %2730 = vmatprep.subr.mxu0 0.0
      %2731 = vmatpush1.msra.mxu0 0.0
      %2732 = vmatprep.subr.mxu0 0.0
      %2733 = vmatpush1.msra.mxu0 0.0
      %2734 = vmatprep.subr.mxu0 0.0
      %2735 = vmatpush1.msra.mxu0 0.0
      %2736 = vmatprep.subr.mxu0 0.0
      %2737 = vmatpush1.msra.mxu0 0.0
      %2738 = vmatprep.subr.mxu0 0.0
      %2739 = vmatpush1.msra.mxu0 0.0
      %2740 = vmatprep.subr.mxu0 0.0
      %2741 = vmatpush1.msra.mxu0 0.0
      %2742 = vmatprep.subr.mxu0 0.0
      %2743 = vmatpush1.msra.mxu0 0.0
      %2744 = vmatprep.subr.mxu0 0.0
      %2745 = vmatpush1.msra.mxu0 %v2714
      %2746 = vmatprep.subr.mxu0 0.0
      %2747 = vmatpush1.msra.mxu0 %v1941
      %2748 = vmatprep.subr.mxu0 0.0
      %2749 = vmatpush2.msra.mxu0 0.0
      %2750 = vmatprep.subr.mxu0 0.0
      %2751 = vmatpush2.msra.mxu0 0.0
      %2752 = vmatprep.subr.mxu0 0.0
      %2753 = vmatpush2.msra.mxu0 0.0
      %2754 = vmatprep.subr.mxu0 0.0
      %2755 = vmatpush2.msra.mxu0 0.0
      %2756 = vmatprep.subr.mxu0 0.0
      %2757 = vmatpush2.msra.mxu0 0.0
      %2758 = vmatprep.subr.mxu0 0.0
      %2759 = vmatpush2.msra.mxu0 0.0
      %2760 = vmatprep.subr.mxu0 0.0
      %2761 = vmatpush2.msra.mxu0 0.0
      %2762 = vmatprep.subr.mxu0 0.0
      %2763 = vmatpush2.msra.mxu0 0.0
      %2764 = vmatprep.subr.mxu0 0.0
      %2765 = vmatpush2.msra.mxu0 0.0
      %2766 = vmatprep.subr.mxu0 0.0
      %2767 = vmatpush2.msra.mxu0 0.0
      %2768 = vmatprep.subr.mxu0 0.0
      %2769 = vmatpush2.msra.mxu0 0.0
      %2770 = vmatprep.subr.mxu0 0.0
      %2771 = vmatpush2.msra.mxu0 0.0
      %2772 = vmatprep.subr.mxu0 0.0
      %2773 = vmatpush2.msra.mxu0 0.0
      %2774 = vmatprep.subr.mxu0 0.0
      %2775 = vmatpush2.msra.mxu0 0.0
      %2776 = vmatprep.subr.mxu0 0.0
      %2777 = vmatpush2.msra.mxu0 0.0
      %2778 = vmatprep.subr.mxu0 0.0
      %2779 = vmatpush2.msra.mxu0 0.0
      %2780 = vmatprep.mubr.f32.mxu0 0.0
      %2781 = vmatmul.mubr.f32.gmra.mxu0 %v1945
      %v2782 = vpop.f32.mrf.mxu0
      %v2783 = vadd.f32 0.0, %v2782
      %v2784 = vpop.f32.mrf.mxu0
      %2785 = vmatprep.mubr.f32.mxu0 0.0
      %2786 = vmatmul.mubr.f32.gmra.mxu0 %v1948
      %v2787 = vpop.f32.mrf.mxu0
      %v2788 = vadd.f32 0.0, %v2787
      %v2789 = vpop.f32.mrf.mxu0
      %2790 = vmatprep.mubr.f32.mxu0 0.0
      %2791 = vmatmul.mubr.f32.gmra.mxu0 %v1951
      %v2792 = vpop.f32.mrf.mxu0
      %v2793 = vadd.f32 0.0, %v2792
      %v2794 = vpop.f32.mrf.mxu0
      %2795 = vmatprep.mubr.f32.mxu0 0.0
      %2796 = vmatmul.mubr.f32.gmra.mxu0 %v1954
      %v2797 = vpop.f32.mrf.mxu0
      %v2798 = vadd.f32 0.0, %v2797
      %v2799 = vpop.f32.mrf.mxu0
      %2800 = vmatprep.mubr.f32.mxu0 0.0
      %2801 = vmatmul.mubr.f32.gmra.mxu0 %v1957
      %v2802 = vpop.f32.mrf.mxu0
      %v2803 = vadd.f32 0.0, %v2802
      %v2804 = vpop.f32.mrf.mxu0
      %2805 = vmatprep.mubr.f32.mxu0 0.0
      %2806 = vmatmul.mubr.f32.gmra.mxu0 %v1960
      %v2807 = vpop.f32.mrf.mxu0
      %v2808 = vadd.f32 0.0, %v2807
      %v2809 = vpop.f32.mrf.mxu0
      %2810 = vmatprep.mubr.f32.mxu0 0.0
      %2811 = vmatmul.mubr.f32.gmra.mxu0 %v1963
      %v2812 = vpop.f32.mrf.mxu0
      %v2813 = vadd.f32 0.0, %v2812
      %v2814 = vpop.f32.mrf.mxu0
      %2815 = vmatprep.mubr.f32.mxu0 0.0
      %2816 = vmatmul.mubr.f32.gmra.mxu0 %v1966
      %v2817 = vpop.f32.mrf.mxu0
      %v2818 = vadd.f32 0.0, %v2817
      %v2819 = vpop.f32.mrf.mxu0
      %2820 = vmatprep.mubr.f32.mxu0 0.0
      %2821 = vmatmul.mubr.f32.gmra.mxu0 %v1969
      %v2822 = vpop.f32.mrf.mxu0
      %v2823 = vadd.f32 0.0, %v2822
      %v2824 = vpop.f32.mrf.mxu0
      %2825 = vmatprep.mubr.f32.mxu0 0.0
      %2826 = vmatmul.mubr.f32.gmra.mxu0 %v1972
      %v2827 = vpop.f32.mrf.mxu0
      %v2828 = vadd.f32 0.0, %v2827
      %v2829 = vpop.f32.mrf.mxu0
      %2830 = vmatprep.mubr.f32.mxu0 0.0
      %2831 = vmatmul.mubr.f32.gmra.mxu0 %v1975
      %v2832 = vpop.f32.mrf.mxu0
      %v2833 = vadd.f32 0.0, %v2832
      %v2834 = vpop.f32.mrf.mxu0
      %2835 = vmatprep.mubr.f32.mxu0 0.0
      %2836 = vmatmul.mubr.f32.gmra.mxu0 %v1978
      %v2837 = vpop.f32.mrf.mxu0
      %v2838 = vadd.f32 0.0, %v2837
      %v2839 = vpop.f32.mrf.mxu0
      %2840 = vmatprep.mubr.f32.mxu0 0.0
      %2841 = vmatmul.mubr.f32.gmra.mxu0 %v1981
      %v2842 = vpop.f32.mrf.mxu0
      %v2843 = vadd.f32 0.0, %v2842
      %v2844 = vpop.f32.mrf.mxu0
      %2845 = vmatprep.mubr.f32.mxu0 0.0
      %2846 = vmatmul.mubr.f32.gmra.mxu0 %v1984
      %v2847 = vpop.f32.mrf.mxu0
      %v2848 = vadd.f32 0.0, %v2847
      %v2849 = vpop.f32.mrf.mxu0
      %2850 = vmatprep.mubr.f32.mxu0 0.0
      %2851 = vmatmul.mubr.f32.gmra.mxu0 %v1987
      %v2852 = vpop.f32.mrf.mxu0
      %v2853 = vadd.f32 0.0, %v2852
      %v2854 = vpop.f32.mrf.mxu0
      %2855 = vmatprep.mubr.f32.mxu0 0.0
      %2856 = vmatmul.mubr.f32.gmra.mxu0 %v1990
      %v2857 = vpop.f32.mrf.mxu0
      %v2858 = vadd.f32 0.0, %v2857
      %v2859 = vpop.f32.mrf.mxu0
      %2860 = vmatprep.mubr.f32.mxu0 0.0
      %2861 = vmatmul.mubr.f32.gmra.mxu0 %v1993
      %v2862 = vpop.f32.mrf.mxu0
      %v2863 = vadd.f32 0.0, %v2862
      %v2864 = vpop.f32.mrf.mxu0
      %2865 = vmatprep.mubr.f32.mxu0 0.0
      %2866 = vmatmul.mubr.f32.gmra.mxu0 %v1996
      %v2867 = vpop.f32.mrf.mxu0
      %v2868 = vadd.f32 0.0, %v2867
      %v2869 = vpop.f32.mrf.mxu0
      %2870 = vmatprep.mubr.f32.mxu0 0.0
      %2871 = vmatmul.mubr.f32.gmra.mxu0 %v1999
      %v2872 = vpop.f32.mrf.mxu0
      %v2873 = vadd.f32 0.0, %v2872
      %v2874 = vpop.f32.mrf.mxu0
      %2875 = vmatprep.mubr.f32.mxu0 0.0
      %2876 = vmatmul.mubr.f32.gmra.mxu0 %v2002
      %v2877 = vpop.f32.mrf.mxu0
      %v2878 = vadd.f32 0.0, %v2877
      %v2879 = vpop.f32.mrf.mxu0
      %2880 = vmatprep.mubr.f32.mxu0 0.0
      %2881 = vmatmul.mubr.f32.gmra.mxu0 %v2005
      %v2882 = vpop.f32.mrf.mxu0
      %v2883 = vadd.f32 0.0, %v2882
      %v2884 = vpop.f32.mrf.mxu0
      %2885 = vmatprep.mubr.f32.mxu0 0.0
      %2886 = vmatmul.mubr.f32.gmra.mxu0 %v2008
      %v2887 = vpop.f32.mrf.mxu0
      %v2888 = vadd.f32 0.0, %v2887
      %v2889 = vpop.f32.mrf.mxu0
      %2890 = vmatprep.mubr.f32.mxu0 0.0
      %2891 = vmatmul.mubr.f32.gmra.mxu0 %v2011
      %v2892 = vpop.f32.mrf.mxu0
      %v2893 = vadd.f32 0.0, %v2892
      %v2894 = vpop.f32.mrf.mxu0
      %2895 = vmatprep.mubr.f32.mxu0 0.0
      %2896 = vmatmul.mubr.f32.gmra.mxu0 %v2014
      %v2897 = vpop.f32.mrf.mxu0
      %v2898 = vadd.f32 0.0, %v2897
      %v2899 = vpop.f32.mrf.mxu0
      %2900 = vmatprep.mubr.f32.mxu0 0.0
      %2901 = vmatmul.mubr.f32.gmra.mxu0 %v2017
      %v2902 = vpop.f32.mrf.mxu0
      %v2903 = vadd.f32 0.0, %v2902
      %v2904 = vpop.f32.mrf.mxu0
      %2905 = vmatprep.mubr.f32.mxu0 0.0
      %2906 = vmatmul.mubr.f32.gmra.mxu0 %v2020
      %v2907 = vpop.f32.mrf.mxu0
      %v2908 = vadd.f32 0.0, %v2907
      %v2909 = vpop.f32.mrf.mxu0
      %2910 = vmatprep.mubr.f32.mxu0 0.0
      %2911 = vmatmul.mubr.f32.gmra.mxu0 %v2023
      %v2912 = vpop.f32.mrf.mxu0
      %v2913 = vadd.f32 0.0, %v2912
      %v2914 = vpop.f32.mrf.mxu0
      %2915 = vmatprep.mubr.f32.mxu0 0.0
      %2916 = vmatmul.mubr.f32.gmra.mxu0 %v2026
      %v2917 = vpop.f32.mrf.mxu0
      %v2918 = vadd.f32 0.0, %v2917
      %v2919 = vpop.f32.mrf.mxu0
      %2920 = vmatprep.mubr.f32.mxu0 0.0
      %2921 = vmatmul.mubr.f32.gmra.mxu0 %v2029
      %v2922 = vpop.f32.mrf.mxu0
      %v2923 = vadd.f32 0.0, %v2922
      %v2924 = vpop.f32.mrf.mxu0
      %2925 = vmatprep.mubr.f32.mxu0 0.0
      %2926 = vmatmul.mubr.f32.gmra.mxu0 %v2032
      %v2927 = vpop.f32.mrf.mxu0
      %v2928 = vadd.f32 0.0, %v2927
      %v2929 = vpop.f32.mrf.mxu0
      %2930 = vmatprep.mubr.f32.mxu0 0.0
      %2931 = vmatmul.mubr.f32.gmra.mxu0 %v2035
      %v2932 = vpop.f32.mrf.mxu0
      %v2933 = vadd.f32 0.0, %v2932
      %v2934 = vpop.f32.mrf.mxu0
      %2935 = vmatprep.mubr.f32.mxu0 0.0
      %2936 = vmatmul.mubr.f32.gmra.mxu0 %v2038
      %v2937 = vpop.f32.mrf.mxu0
      %v2938 = vadd.f32 0.0, %v2937
      %v2939 = vpop.f32.mrf.mxu0
      %2940 = vmatprep.mubr.f32.mxu0 0.0
      %2941 = vmatmul.mubr.f32.gmra.mxu0 %v2041
      %v2942 = vpop.f32.mrf.mxu0
      %v2943 = vadd.f32 0.0, %v2942
      %v2944 = vpop.f32.mrf.mxu0
      %2945 = vmatprep.mubr.f32.mxu0 0.0
      %2946 = vmatmul.mubr.f32.gmra.mxu0 %v2044
      %v2947 = vpop.f32.mrf.mxu0
      %v2948 = vadd.f32 0.0, %v2947
      %v2949 = vpop.f32.mrf.mxu0
      %2950 = vmatprep.mubr.f32.mxu0 0.0
      %2951 = vmatmul.mubr.f32.gmra.mxu0 %v2047
      %v2952 = vpop.f32.mrf.mxu0
      %v2953 = vadd.f32 0.0, %v2952
      %v2954 = vpop.f32.mrf.mxu0
      %2955 = vmatprep.mubr.f32.mxu0 0.0
      %2956 = vmatmul.mubr.f32.gmra.mxu0 %v2050
      %v2957 = vpop.f32.mrf.mxu0
      %v2958 = vadd.f32 0.0, %v2957
      %v2959 = vpop.f32.mrf.mxu0
      %2960 = vmatprep.mubr.f32.mxu0 0.0
      %2961 = vmatmul.mubr.f32.gmra.mxu0 %v2053
      %v2962 = vpop.f32.mrf.mxu0
      %v2963 = vadd.f32 0.0, %v2962
      %v2964 = vpop.f32.mrf.mxu0
      %2965 = vmatprep.mubr.f32.mxu0 0.0
      %2966 = vmatmul.mubr.f32.gmra.mxu0 %v2056
      %v2967 = vpop.f32.mrf.mxu0
      %v2968 = vadd.f32 0.0, %v2967
      %v2969 = vpop.f32.mrf.mxu0
      %2970 = vmatprep.mubr.f32.mxu0 0.0
      %2971 = vmatmul.mubr.f32.gmra.mxu0 %v2059
      %v2972 = vpop.f32.mrf.mxu0
      %v2973 = vadd.f32 0.0, %v2972
      %v2974 = vpop.f32.mrf.mxu0
      %2975 = vmatprep.mubr.f32.mxu0 0.0
      %2976 = vmatmul.mubr.f32.gmra.mxu0 %v2062
      %v2977 = vpop.f32.mrf.mxu0
      %v2978 = vadd.f32 0.0, %v2977
      %v2979 = vpop.f32.mrf.mxu0
      %2980 = vmatprep.mubr.f32.mxu0 0.0
      %2981 = vmatmul.mubr.f32.gmra.mxu0 %v2065
      %v2982 = vpop.f32.mrf.mxu0
      %v2983 = vadd.f32 0.0, %v2982
      %v2984 = vpop.f32.mrf.mxu0
      %2985 = vmatprep.mubr.f32.mxu0 0.0
      %2986 = vmatmul.mubr.f32.gmra.mxu0 %v2068
      %v2987 = vpop.f32.mrf.mxu0
      %v2988 = vadd.f32 0.0, %v2987
      %v2989 = vpop.f32.mrf.mxu0
      %2990 = vmatprep.mubr.f32.mxu0 0.0
      %2991 = vmatmul.mubr.f32.gmra.mxu0 %v2071
      %v2992 = vpop.f32.mrf.mxu0
      %v2993 = vadd.f32 0.0, %v2992
      %v2994 = vpop.f32.mrf.mxu0
      %2995 = vmatprep.mubr.f32.mxu0 0.0
      %2996 = vmatmul.mubr.f32.gmra.mxu0 %v2074
      %v2997 = vpop.f32.mrf.mxu0
      %v2998 = vadd.f32 0.0, %v2997
      %v2999 = vpop.f32.mrf.mxu0
      %3000 = vmatprep.mubr.f32.mxu0 0.0
      %3001 = vmatmul.mubr.f32.gmra.mxu0 %v2077
      %v3002 = vpop.f32.mrf.mxu0
      %v3003 = vadd.f32 0.0, %v3002
      %v3004 = vpop.f32.mrf.mxu0
      %3005 = vmatprep.mubr.f32.mxu0 0.0
      %3006 = vmatmul.mubr.f32.gmra.mxu0 %v2080
      %v3007 = vpop.f32.mrf.mxu0
      %v3008 = vadd.f32 0.0, %v3007
      %v3009 = vpop.f32.mrf.mxu0
      %3010 = vmatprep.mubr.f32.mxu0 0.0
      %3011 = vmatmul.mubr.f32.gmra.mxu0 %v2083
      %v3012 = vpop.f32.mrf.mxu0
      %v3013 = vadd.f32 0.0, %v3012
      %v3014 = vpop.f32.mrf.mxu0
      %3015 = vmatprep.mubr.f32.mxu0 0.0
      %3016 = vmatmul.mubr.f32.gmra.mxu0 %v2086
      %v3017 = vpop.f32.mrf.mxu0
      %v3018 = vadd.f32 0.0, %v3017
      %v3019 = vpop.f32.mrf.mxu0
      %3020 = vmatprep.mubr.f32.mxu0 0.0
      %3021 = vmatmul.mubr.f32.gmra.mxu0 %v2089
      %v3022 = vpop.f32.mrf.mxu0
      %v3023 = vadd.f32 0.0, %v3022
      %v3024 = vpop.f32.mrf.mxu0
      %3025 = vmatprep.mubr.f32.mxu0 0.0
      %3026 = vmatmul.mubr.f32.gmra.mxu0 %v2092
      %v3027 = vpop.f32.mrf.mxu0
      %v3028 = vadd.f32 0.0, %v3027
      %v3029 = vpop.f32.mrf.mxu0
      %3030 = vmatprep.mubr.f32.mxu0 0.0
      %3031 = vmatmul.mubr.f32.gmra.mxu0 %v2095
      %v3032 = vpop.f32.mrf.mxu0
      %v3033 = vadd.f32 0.0, %v3032
      %v3034 = vpop.f32.mrf.mxu0
      %3035 = vmatprep.mubr.f32.mxu0 0.0
      %3036 = vmatmul.mubr.f32.gmra.mxu0 %v2098
      %v3037 = vpop.f32.mrf.mxu0
      %v3038 = vadd.f32 0.0, %v3037
      %v3039 = vpop.f32.mrf.mxu0
      %3040 = vmatprep.mubr.f32.mxu0 0.0
      %3041 = vmatmul.mubr.f32.gmra.mxu0 %v2101
      %v3042 = vpop.f32.mrf.mxu0
      %v3043 = vadd.f32 0.0, %v3042
      %v3044 = vpop.f32.mrf.mxu0
      %3045 = vmatprep.mubr.f32.mxu0 0.0
      %3046 = vmatmul.mubr.f32.gmra.mxu0 %v2104
      %v3047 = vpop.f32.mrf.mxu0
      %v3048 = vadd.f32 0.0, %v3047
      %v3049 = vpop.f32.mrf.mxu0
      %3050 = vmatprep.mubr.f32.mxu0 0.0
      %3051 = vmatmul.mubr.f32.gmra.mxu0 %v2107
      %v3052 = vpop.f32.mrf.mxu0
      %v3053 = vadd.f32 0.0, %v3052
      %v3054 = vpop.f32.mrf.mxu0
      %3055 = vmatprep.mubr.f32.mxu0 0.0
      %3056 = vmatmul.mubr.f32.gmra.mxu0 %v2110
      %v3057 = vpop.f32.mrf.mxu0
      %v3058 = vadd.f32 0.0, %v3057
      %v3059 = vpop.f32.mrf.mxu0
      %3060 = vmatprep.mubr.f32.mxu0 0.0
      %3061 = vmatmul.mubr.f32.gmra.mxu0 %v2113
      %v3062 = vpop.f32.mrf.mxu0
      %v3063 = vadd.f32 0.0, %v3062
      %v3064 = vpop.f32.mrf.mxu0
      %3065 = vmatprep.mubr.f32.mxu0 0.0
      %3066 = vmatmul.mubr.f32.gmra.mxu0 %v2116
      %v3067 = vpop.f32.mrf.mxu0
      %v3068 = vadd.f32 0.0, %v3067
      %v3069 = vpop.f32.mrf.mxu0
      %3070 = vmatprep.mubr.f32.mxu0 0.0
      %3071 = vmatmul.mubr.f32.gmra.mxu0 %v2119
      %v3072 = vpop.f32.mrf.mxu0
      %v3073 = vadd.f32 0.0, %v3072
      %v3074 = vpop.f32.mrf.mxu0
      %3075 = vmatprep.mubr.f32.mxu0 0.0
      %3076 = vmatmul.mubr.f32.gmra.mxu0 %v2122
      %v3077 = vpop.f32.mrf.mxu0
      %v3078 = vadd.f32 0.0, %v3077
      %v3079 = vpop.f32.mrf.mxu0
      %3080 = vmatprep.mubr.f32.mxu0 0.0
      %3081 = vmatmul.mubr.f32.gmra.mxu0 %v2125
      %v3082 = vpop.f32.mrf.mxu0
      %v3083 = vadd.f32 0.0, %v3082
      %v3084 = vpop.f32.mrf.mxu0
      %3085 = vmatprep.mubr.f32.mxu0 0.0
      %3086 = vmatmul.mubr.f32.gmra.mxu0 %v2128
      %v3087 = vpop.f32.mrf.mxu0
      %v3088 = vadd.f32 0.0, %v3087
      %v3089 = vpop.f32.mrf.mxu0
      %3090 = vmatprep.mubr.f32.mxu0 0.0
      %3091 = vmatmul.mubr.f32.gmra.mxu0 %v2131
      %v3092 = vpop.f32.mrf.mxu0
      %v3093 = vadd.f32 0.0, %v3092
      %v3094 = vpop.f32.mrf.mxu0
      %3095 = vmatprep.mubr.f32.mxu0 0.0
      %3096 = vmatmul.mubr.f32.gmra.mxu0 %v2134
      %v3097 = vpop.f32.mrf.mxu0
      %v3098 = vadd.f32 0.0, %v3097
      %v3099 = vpop.f32.mrf.mxu0
      %3100 = vmatprep.mubr.f32.mxu0 0.0
      %3101 = vmatmul.mubr.f32.gmra.mxu0 %v2137
      %v3102 = vpop.f32.mrf.mxu0
      %v3103 = vadd.f32 0.0, %v3102
      %v3104 = vpop.f32.mrf.mxu0
      %3105 = vmatprep.mubr.f32.mxu0 0.0
      %3106 = vmatmul.mubr.f32.gmra.mxu0 %v2140
      %v3107 = vpop.f32.mrf.mxu0
      %v3108 = vadd.f32 0.0, %v3107
      %v3109 = vpop.f32.mrf.mxu0
      %3110 = vmatprep.mubr.f32.mxu0 0.0
      %3111 = vmatmul.mubr.f32.gmra.mxu0 %v2143
      %v3112 = vpop.f32.mrf.mxu0
      %v3113 = vadd.f32 0.0, %v3112
      %v3114 = vpop.f32.mrf.mxu0
      %3115 = vmatprep.mubr.f32.mxu0 0.0
      %3116 = vmatmul.mubr.f32.gmra.mxu0 %v2146
      %v3117 = vpop.f32.mrf.mxu0
      %v3118 = vadd.f32 0.0, %v3117
      %v3119 = vpop.f32.mrf.mxu0
      %3120 = vmatprep.mubr.f32.mxu0 0.0
      %3121 = vmatmul.mubr.f32.gmra.mxu0 %v2149
      %v3122 = vpop.f32.mrf.mxu0
      %v3123 = vadd.f32 0.0, %v3122
      %v3124 = vpop.f32.mrf.mxu0
      %3125 = vmatprep.mubr.f32.mxu0 0.0
      %3126 = vmatmul.mubr.f32.gmra.mxu0 %v2152
      %v3127 = vpop.f32.mrf.mxu0
      %v3128 = vadd.f32 0.0, %v3127
      %v3129 = vpop.f32.mrf.mxu0
      %3130 = vmatprep.mubr.f32.mxu0 0.0
      %3131 = vmatmul.mubr.f32.gmra.mxu0 %v2155
      %v3132 = vpop.f32.mrf.mxu0
      %v3133 = vadd.f32 0.0, %v3132
      %v3134 = vpop.f32.mrf.mxu0
      %3135 = vmatprep.mubr.f32.mxu0 0.0
      %3136 = vmatmul.mubr.f32.gmra.mxu0 %v2158
      %v3137 = vpop.f32.mrf.mxu0
      %v3138 = vadd.f32 0.0, %v3137
      %v3139 = vpop.f32.mrf.mxu0
      %3140 = vmatprep.mubr.f32.mxu0 0.0
      %3141 = vmatmul.mubr.f32.gmra.mxu0 %v2161
      %v3142 = vpop.f32.mrf.mxu0
      %v3143 = vadd.f32 0.0, %v3142
      %v3144 = vpop.f32.mrf.mxu0
      %3145 = vmatprep.mubr.f32.mxu0 0.0
      %3146 = vmatmul.mubr.f32.gmra.mxu0 %v2164
      %v3147 = vpop.f32.mrf.mxu0
      %v3148 = vadd.f32 0.0, %v3147
      %v3149 = vpop.f32.mrf.mxu0
      %3150 = vmatprep.mubr.f32.mxu0 0.0
      %3151 = vmatmul.mubr.f32.gmra.mxu0 %v2167
      %v3152 = vpop.f32.mrf.mxu0
      %v3153 = vadd.f32 0.0, %v3152
      %v3154 = vpop.f32.mrf.mxu0
      %3155 = vmatprep.mubr.f32.mxu0 0.0
      %3156 = vmatmul.mubr.f32.gmra.mxu0 %v2170
      %v3157 = vpop.f32.mrf.mxu0
      %v3158 = vadd.f32 0.0, %v3157
      %v3159 = vpop.f32.mrf.mxu0
      %3160 = vmatprep.mubr.f32.mxu0 0.0
      %3161 = vmatmul.mubr.f32.gmra.mxu0 %v2173
      %v3162 = vpop.f32.mrf.mxu0
      %v3163 = vadd.f32 0.0, %v3162
      %v3164 = vpop.f32.mrf.mxu0
      %3165 = vmatprep.mubr.f32.mxu0 0.0
      %3166 = vmatmul.mubr.f32.gmra.mxu0 %v2176
      %v3167 = vpop.f32.mrf.mxu0
      %v3168 = vadd.f32 0.0, %v3167
      %v3169 = vpop.f32.mrf.mxu0
      %3170 = vmatprep.mubr.f32.mxu0 0.0
      %3171 = vmatmul.mubr.f32.gmra.mxu0 %v2179
      %v3172 = vpop.f32.mrf.mxu0
      %v3173 = vadd.f32 0.0, %v3172
      %v3174 = vpop.f32.mrf.mxu0
      %3175 = vmatprep.mubr.f32.mxu0 0.0
      %3176 = vmatmul.mubr.f32.gmra.mxu0 %v2182
      %v3177 = vpop.f32.mrf.mxu0
      %v3178 = vadd.f32 0.0, %v3177
      %v3179 = vpop.f32.mrf.mxu0
      %3180 = vmatprep.mubr.f32.mxu0 0.0
      %3181 = vmatmul.mubr.f32.gmra.mxu0 %v2185
      %v3182 = vpop.f32.mrf.mxu0
      %v3183 = vadd.f32 0.0, %v3182
      %v3184 = vpop.f32.mrf.mxu0
      %3185 = vmatprep.mubr.f32.mxu0 0.0
      %3186 = vmatmul.mubr.f32.gmra.mxu0 %v2188
      %v3187 = vpop.f32.mrf.mxu0
      %v3188 = vadd.f32 0.0, %v3187
      %v3189 = vpop.f32.mrf.mxu0
      %3190 = vmatprep.mubr.f32.mxu0 0.0
      %3191 = vmatmul.mubr.f32.gmra.mxu0 %v2191
      %v3192 = vpop.f32.mrf.mxu0
      %v3193 = vadd.f32 0.0, %v3192
      %v3194 = vpop.f32.mrf.mxu0
      %3195 = vmatprep.mubr.f32.mxu0 0.0
      %3196 = vmatmul.mubr.f32.gmra.mxu0 %v2194
      %v3197 = vpop.f32.mrf.mxu0
      %v3198 = vadd.f32 0.0, %v3197
      %v3199 = vpop.f32.mrf.mxu0
      %3200 = vmatprep.mubr.f32.mxu0 0.0
      %3201 = vmatmul.mubr.f32.gmra.mxu0 %v2197
      %v3202 = vpop.f32.mrf.mxu0
      %v3203 = vadd.f32 0.0, %v3202
      %v3204 = vpop.f32.mrf.mxu0
      %3205 = vmatprep.mubr.f32.mxu0 0.0
      %3206 = vmatmul.mubr.f32.gmra.mxu0 %v2200
      %v3207 = vpop.f32.mrf.mxu0
      %v3208 = vadd.f32 0.0, %v3207
      %v3209 = vpop.f32.mrf.mxu0
      %3210 = vmatprep.mubr.f32.mxu0 0.0
      %3211 = vmatmul.mubr.f32.gmra.mxu0 %v2203
      %v3212 = vpop.f32.mrf.mxu0
      %v3213 = vadd.f32 0.0, %v3212
      %v3214 = vpop.f32.mrf.mxu0
      %3215 = vmatprep.mubr.f32.mxu0 0.0
      %3216 = vmatmul.mubr.f32.gmra.mxu0 %v2206
      %v3217 = vpop.f32.mrf.mxu0
      %v3218 = vadd.f32 0.0, %v3217
      %v3219 = vpop.f32.mrf.mxu0
      %3220 = vmatprep.mubr.f32.mxu0 0.0
      %3221 = vmatmul.mubr.f32.gmra.mxu0 %v2209
      %v3222 = vpop.f32.mrf.mxu0
      %v3223 = vadd.f32 0.0, %v3222
      %v3224 = vpop.f32.mrf.mxu0
      %3225 = vmatprep.mubr.f32.mxu0 0.0
      %3226 = vmatmul.mubr.f32.gmra.mxu0 %v2212
      %v3227 = vpop.f32.mrf.mxu0
      %v3228 = vadd.f32 0.0, %v3227
      %v3229 = vpop.f32.mrf.mxu0
      %3230 = vmatprep.mubr.f32.mxu0 0.0
      %3231 = vmatmul.mubr.f32.gmra.mxu0 %v2215
      %v3232 = vpop.f32.mrf.mxu0
      %v3233 = vadd.f32 0.0, %v3232
      %v3234 = vpop.f32.mrf.mxu0
      %3235 = vmatprep.mubr.f32.mxu0 0.0
      %3236 = vmatmul.mubr.f32.gmra.mxu0 %v2218
      %v3237 = vpop.f32.mrf.mxu0
      %v3238 = vadd.f32 0.0, %v3237
      %v3239 = vpop.f32.mrf.mxu0
      %3240 = vmatprep.mubr.f32.mxu0 0.0
      %3241 = vmatmul.mubr.f32.gmra.mxu0 %v2221
      %v3242 = vpop.f32.mrf.mxu0
      %v3243 = vadd.f32 0.0, %v3242
      %v3244 = vpop.f32.mrf.mxu0
      %3245 = vmatprep.mubr.f32.mxu0 0.0
      %3246 = vmatmul.mubr.f32.gmra.mxu0 %v2224
      %v3247 = vpop.f32.mrf.mxu0
      %v3248 = vadd.f32 0.0, %v3247
      %v3249 = vpop.f32.mrf.mxu0
      %3250 = vmatprep.mubr.f32.mxu0 0.0
      %3251 = vmatmul.mubr.f32.gmra.mxu0 %v2227
      %v3252 = vpop.f32.mrf.mxu0
      %v3253 = vadd.f32 0.0, %v3252
      %v3254 = vpop.f32.mrf.mxu0
      %3255 = vmatprep.mubr.f32.mxu0 0.0
      %3256 = vmatmul.mubr.f32.gmra.mxu0 %v2230
      %v3257 = vpop.f32.mrf.mxu0
      %v3258 = vadd.f32 0.0, %v3257
      %v3259 = vpop.f32.mrf.mxu0
      %3260 = vmatprep.mubr.f32.mxu0 0.0
      %3261 = vmatmul.mubr.f32.gmra.mxu0 %v2233
      %v3262 = vpop.f32.mrf.mxu0
      %v3263 = vadd.f32 0.0, %v3262
      %v3264 = vpop.f32.mrf.mxu0
      %3265 = vmatprep.mubr.f32.mxu0 0.0
      %3266 = vmatmul.mubr.f32.gmra.mxu0 %v2236
      %v3267 = vpop.f32.mrf.mxu0
      %v3268 = vadd.f32 0.0, %v3267
      %v3269 = vpop.f32.mrf.mxu0
      %3270 = vmatprep.mubr.f32.mxu0 0.0
      %3271 = vmatmul.mubr.f32.gmra.mxu0 %v2239
      %v3272 = vpop.f32.mrf.mxu0
      %v3273 = vadd.f32 0.0, %v3272
      %v3274 = vpop.f32.mrf.mxu0
      %3275 = vmatprep.mubr.f32.mxu0 0.0
      %3276 = vmatmul.mubr.f32.gmra.mxu0 %v2242
      %v3277 = vpop.f32.mrf.mxu0
      %v3278 = vadd.f32 0.0, %v3277
      %v3279 = vpop.f32.mrf.mxu0
      %3280 = vmatprep.mubr.f32.mxu0 0.0
      %3281 = vmatmul.mubr.f32.gmra.mxu0 %v2245
      %v3282 = vpop.f32.mrf.mxu0
      %v3283 = vadd.f32 0.0, %v3282
      %v3284 = vpop.f32.mrf.mxu0
      %3285 = vmatprep.mubr.f32.mxu0 0.0
      %3286 = vmatmul.mubr.f32.gmra.mxu0 %v2248
      %v3287 = vpop.f32.mrf.mxu0
      %v3288 = vadd.f32 0.0, %v3287
      %v3289 = vpop.f32.mrf.mxu0
      %3290 = vmatprep.mubr.f32.mxu0 0.0
      %3291 = vmatmul.mubr.f32.gmra.mxu0 %v2251
      %v3292 = vpop.f32.mrf.mxu0
      %v3293 = vadd.f32 0.0, %v3292
      %v3294 = vpop.f32.mrf.mxu0
      %3295 = vmatprep.mubr.f32.mxu0 0.0
      %3296 = vmatmul.mubr.f32.gmra.mxu0 %v2254
      %v3297 = vpop.f32.mrf.mxu0
      %v3298 = vadd.f32 0.0, %v3297
      %v3299 = vpop.f32.mrf.mxu0
      %3300 = vmatprep.mubr.f32.mxu0 0.0
      %3301 = vmatmul.mubr.f32.gmra.mxu0 %v2257
      %v3302 = vpop.f32.mrf.mxu0
      %v3303 = vadd.f32 0.0, %v3302
      %v3304 = vpop.f32.mrf.mxu0
      %3305 = vmatprep.mubr.f32.mxu0 0.0
      %3306 = vmatmul.mubr.f32.gmra.mxu0 %v2260
      %v3307 = vpop.f32.mrf.mxu0
      %v3308 = vadd.f32 0.0, %v3307
      %v3309 = vpop.f32.mrf.mxu0
      %3310 = vmatprep.mubr.f32.mxu0 0.0
      %3311 = vmatmul.mubr.f32.gmra.mxu0 %v2263
      %v3312 = vpop.f32.mrf.mxu0
      %v3313 = vadd.f32 0.0, %v3312
      %v3314 = vpop.f32.mrf.mxu0
      %3315 = vmatprep.mubr.f32.mxu0 0.0
      %3316 = vmatmul.mubr.f32.gmra.mxu0 %v2266
      %v3317 = vpop.f32.mrf.mxu0
      %v3318 = vadd.f32 0.0, %v3317
      %v3319 = vpop.f32.mrf.mxu0
      %3320 = vmatprep.mubr.f32.mxu0 0.0
      %3321 = vmatmul.mubr.f32.gmra.mxu0 %v2269
      %v3322 = vpop.f32.mrf.mxu0
      %v3323 = vadd.f32 0.0, %v3322
      %v3324 = vpop.f32.mrf.mxu0
      %3325 = vmatprep.mubr.f32.mxu0 0.0
      %3326 = vmatmul.mubr.f32.gmra.mxu0 %v2272
      %v3327 = vpop.f32.mrf.mxu0
      %v3328 = vadd.f32 0.0, %v3327
      %v3329 = vpop.f32.mrf.mxu0
      %3330 = vmatprep.mubr.f32.mxu0 0.0
      %3331 = vmatmul.mubr.f32.gmra.mxu0 %v2275
      %v3332 = vpop.f32.mrf.mxu0
      %v3333 = vadd.f32 0.0, %v3332
      %v3334 = vpop.f32.mrf.mxu0
      %3335 = vmatprep.mubr.f32.mxu0 0.0
      %3336 = vmatmul.mubr.f32.gmra.mxu0 %v2278
      %v3337 = vpop.f32.mrf.mxu0
      %v3338 = vadd.f32 0.0, %v3337
      %v3339 = vpop.f32.mrf.mxu0
      %3340 = vmatprep.mubr.f32.mxu0 0.0
      %3341 = vmatmul.mubr.f32.gmra.mxu0 %v2281
      %v3342 = vpop.f32.mrf.mxu0
      %v3343 = vadd.f32 0.0, %v3342
      %v3344 = vpop.f32.mrf.mxu0
      %3345 = vmatprep.mubr.f32.mxu0 0.0
      %3346 = vmatmul.mubr.f32.gmra.mxu0 %v2284
      %v3347 = vpop.f32.mrf.mxu0
      %v3348 = vadd.f32 0.0, %v3347
      %v3349 = vpop.f32.mrf.mxu0
      %3350 = vmatprep.mubr.f32.mxu0 0.0
      %3351 = vmatmul.mubr.f32.gmra.mxu0 %v2287
      %v3352 = vpop.f32.mrf.mxu0
      %v3353 = vadd.f32 0.0, %v3352
      %v3354 = vpop.f32.mrf.mxu0
      %3355 = vmatprep.mubr.f32.mxu0 0.0
      %3356 = vmatmul.mubr.f32.gmra.mxu0 %v2290
      %v3357 = vpop.f32.mrf.mxu0
      %v3358 = vadd.f32 0.0, %v3357
      %v3359 = vpop.f32.mrf.mxu0
      %3360 = vmatprep.mubr.f32.mxu0 0.0
      %3361 = vmatmul.mubr.f32.gmra.mxu0 %v2293
      %v3362 = vpop.f32.mrf.mxu0
      %v3363 = vadd.f32 0.0, %v3362
      %v3364 = vpop.f32.mrf.mxu0
      %3365 = vmatprep.mubr.f32.mxu0 0.0
      %3366 = vmatmul.mubr.f32.gmra.mxu0 %v2296
      %v3367 = vpop.f32.mrf.mxu0
      %v3368 = vadd.f32 0.0, %v3367
      %v3369 = vpop.f32.mrf.mxu0
      %3370 = vmatprep.mubr.f32.mxu0 0.0
      %3371 = vmatmul.mubr.f32.gmra.mxu0 %v2299
      %v3372 = vpop.f32.mrf.mxu0
      %v3373 = vadd.f32 0.0, %v3372
      %v3374 = vpop.f32.mrf.mxu0
      %3375 = vmatprep.mubr.f32.mxu0 0.0
      %3376 = vmatmul.mubr.f32.gmra.mxu0 %v2302
      %v3377 = vpop.f32.mrf.mxu0
      %v3378 = vadd.f32 0.0, %v3377
      %v3379 = vpop.f32.mrf.mxu0
      %3380 = vmatprep.mubr.f32.mxu0 0.0
      %3381 = vmatmul.mubr.f32.gmra.mxu0 %v2305
      %v3382 = vpop.f32.mrf.mxu0
      %v3383 = vadd.f32 0.0, %v3382
      %v3384 = vpop.f32.mrf.mxu0
      %3385 = vmatprep.mubr.f32.mxu0 0.0
      %3386 = vmatmul.mubr.f32.gmra.mxu0 %v2308
      %v3387 = vpop.f32.mrf.mxu0
      %v3388 = vadd.f32 0.0, %v3387
      %v3389 = vpop.f32.mrf.mxu0
      %3390 = vmatprep.mubr.f32.mxu0 0.0
      %3391 = vmatmul.mubr.f32.gmra.mxu0 %v2311
      %v3392 = vpop.f32.mrf.mxu0
      %v3393 = vadd.f32 0.0, %v3392
      %v3394 = vpop.f32.mrf.mxu0
      %3395 = vmatprep.mubr.f32.mxu0 0.0
      %3396 = vmatmul.mubr.f32.gmra.mxu0 %v2314
      %v3397 = vpop.f32.mrf.mxu0
      %v3398 = vadd.f32 0.0, %v3397
      %v3399 = vpop.f32.mrf.mxu0
      %3400 = vmatprep.mubr.f32.mxu0 0.0
      %3401 = vmatmul.mubr.f32.gmra.mxu0 %v2317
      %v3402 = vpop.f32.mrf.mxu0
      %v3403 = vadd.f32 0.0, %v3402
      %v3404 = vpop.f32.mrf.mxu0
      %3405 = vmatprep.mubr.f32.mxu0 0.0
      %3406 = vmatmul.mubr.f32.gmra.mxu0 %v2320
      %v3407 = vpop.f32.mrf.mxu0
      %v3408 = vadd.f32 0.0, %v3407
      %v3409 = vpop.f32.mrf.mxu0
      %3410 = vmatprep.mubr.f32.mxu0 0.0
      %3411 = vmatmul.mubr.f32.gmra.mxu0 %v2323
      %v3412 = vpop.f32.mrf.mxu0
      %v3413 = vadd.f32 0.0, %v3412
      %v3414 = vpop.f32.mrf.mxu0
      %3415 = vmatprep.mubr.f32.mxu0 0.0
      %3416 = vmatmul.mubr.f32.gmra.mxu0 %v2326
      %v3417 = vpop.f32.mrf.mxu0
      %v3418 = vadd.f32 0.0, %v3417
      %v3419 = vpop.f32.mrf.mxu0
      %3420 = vmatprep.mubr.f32.mxu0 0.0
      %3421 = vmatmul.mubr.f32.gmra.mxu0 %v2329
      %v3422 = vpop.f32.mrf.mxu0
      %v3423 = vadd.f32 0.0, %v3422
      %v3424 = vpop.f32.mrf.mxu0
      %3425 = vmatprep.mubr.f32.mxu0 0.0
      %3426 = vmatmul.mubr.f32.gmra.mxu0 %v2332
      %v3427 = vpop.f32.mrf.mxu0
      %v3428 = vadd.f32 0.0, %v3427
      %v3429 = vpop.f32.mrf.mxu0
      %3430 = vmatprep.mubr.f32.mxu0 0.0
      %3431 = vmatmul.mubr.f32.gmra.mxu0 %v2335
      %v3432 = vpop.f32.mrf.mxu0
      %v3433 = vadd.f32 0.0, %v3432
      %v3434 = vpop.f32.mrf.mxu0
      %3435 = vmatprep.mubr.f32.mxu0 0.0
      %3436 = vmatmul.mubr.f32.gmra.mxu0 %v2338
      %v3437 = vpop.f32.mrf.mxu0
      %v3438 = vadd.f32 0.0, %v3437
      %v3439 = vpop.f32.mrf.mxu0
      %3440 = vmatprep.mubr.f32.mxu0 0.0
      %3441 = vmatmul.mubr.f32.gmra.mxu0 %v2341
      %v3442 = vpop.f32.mrf.mxu0
      %v3443 = vadd.f32 0.0, %v3442
      %v3444 = vpop.f32.mrf.mxu0
      %3445 = vmatprep.mubr.f32.mxu0 0.0
      %3446 = vmatmul.mubr.f32.gmra.mxu0 %v2344
      %v3447 = vpop.f32.mrf.mxu0
      %v3448 = vadd.f32 0.0, %v3447
      %v3449 = vpop.f32.mrf.mxu0
      %3450 = vmatprep.mubr.f32.mxu0 0.0
      %3451 = vmatmul.mubr.f32.gmra.mxu0 %v2347
      %v3452 = vpop.f32.mrf.mxu0
      %v3453 = vadd.f32 0.0, %v3452
      %v3454 = vpop.f32.mrf.mxu0
      %3455 = vmatprep.mubr.f32.mxu0 0.0
      %3456 = vmatmul.mubr.f32.gmra.mxu0 %v2350
      %v3457 = vpop.f32.mrf.mxu0
      %v3458 = vadd.f32 0.0, %v3457
      %v3459 = vpop.f32.mrf.mxu0
      %3460 = vmatprep.mubr.f32.mxu0 0.0
      %3461 = vmatmul.mubr.f32.gmra.mxu0 %v2353
      %v3462 = vpop.f32.mrf.mxu0
      %v3463 = vadd.f32 0.0, %v3462
      %v3464 = vpop.f32.mrf.mxu0
      %3465 = vmatprep.mubr.f32.mxu0 0.0
      %3466 = vmatmul.mubr.f32.gmra.mxu0 %v2356
      %v3467 = vpop.f32.mrf.mxu0
      %v3468 = vadd.f32 0.0, %v3467
      %v3469 = vpop.f32.mrf.mxu0
      %3470 = vmatprep.mubr.f32.mxu0 0.0
      %3471 = vmatmul.mubr.f32.gmra.mxu0 %v2359
      %v3472 = vpop.f32.mrf.mxu0
      %v3473 = vadd.f32 0.0, %v3472
      %v3474 = vpop.f32.mrf.mxu0
      %3475 = vmatprep.mubr.f32.mxu0 0.0
      %3476 = vmatmul.mubr.f32.gmra.mxu0 %v2362
      %v3477 = vpop.f32.mrf.mxu0
      %v3478 = vadd.f32 0.0, %v3477
      %v3479 = vpop.f32.mrf.mxu0
      %3480 = vmatprep.mubr.f32.mxu0 0.0
      %3481 = vmatmul.mubr.f32.gmra.mxu0 %v2365
      %v3482 = vpop.f32.mrf.mxu0
      %v3483 = vadd.f32 0.0, %v3482
      %v3484 = vpop.f32.mrf.mxu0
      %3485 = vmatprep.mubr.f32.mxu0 0.0
      %3486 = vmatmul.mubr.f32.gmra.mxu0 %v2368
      %v3487 = vpop.f32.mrf.mxu0
      %v3488 = vadd.f32 0.0, %v3487
      %v3489 = vpop.f32.mrf.mxu0
      %3490 = vmatprep.mubr.f32.mxu0 0.0
      %3491 = vmatmul.mubr.f32.gmra.mxu0 %v2371
      %v3492 = vpop.f32.mrf.mxu0
      %v3493 = vadd.f32 0.0, %v3492
      %v3494 = vpop.f32.mrf.mxu0
      %3495 = vmatprep.mubr.f32.mxu0 0.0
      %3496 = vmatmul.mubr.f32.gmra.mxu0 %v2374
      %v3497 = vpop.f32.mrf.mxu0
      %v3498 = vadd.f32 0.0, %v3497
      %v3499 = vpop.f32.mrf.mxu0
      %3500 = vmatprep.mubr.f32.mxu0 0.0
      %3501 = vmatmul.mubr.f32.gmra.mxu0 %v2377
      %v3502 = vpop.f32.mrf.mxu0
      %v3503 = vadd.f32 0.0, %v3502
      %v3504 = vpop.f32.mrf.mxu0
      %3505 = vmatprep.mubr.f32.mxu0 0.0
      %3506 = vmatmul.mubr.f32.gmra.mxu0 %v2380
      %v3507 = vpop.f32.mrf.mxu0
      %v3508 = vadd.f32 0.0, %v3507
      %v3509 = vpop.f32.mrf.mxu0
      %3510 = vmatprep.mubr.f32.mxu0 0.0
      %3511 = vmatmul.mubr.f32.gmra.mxu0 %v2383
      %v3512 = vpop.f32.mrf.mxu0
      %v3513 = vadd.f32 0.0, %v3512
      %v3514 = vpop.f32.mrf.mxu0
      %3515 = vmatprep.mubr.f32.mxu0 0.0
      %3516 = vmatmul.mubr.f32.gmra.mxu0 %v2386
      %v3517 = vpop.f32.mrf.mxu0
      %v3518 = vadd.f32 0.0, %v3517
      %v3519 = vpop.f32.mrf.mxu0
      %3520 = vmatprep.mubr.f32.mxu0 0.0
      %3521 = vmatmul.mubr.f32.gmra.mxu0 %v2389
      %v3522 = vpop.f32.mrf.mxu0
      %v3523 = vadd.f32 0.0, %v3522
      %v3524 = vpop.f32.mrf.mxu0
      %3525 = vmatprep.mubr.f32.mxu0 0.0
      %3526 = vmatmul.mubr.f32.gmra.mxu0 %v2392
      %v3527 = vpop.f32.mrf.mxu0
      %v3528 = vadd.f32 0.0, %v3527
      %v3529 = vpop.f32.mrf.mxu0
      %3530 = vmatprep.mubr.f32.mxu0 0.0
      %3531 = vmatmul.mubr.f32.gmra.mxu0 %v2395
      %v3532 = vpop.f32.mrf.mxu0
      %v3533 = vadd.f32 0.0, %v3532
      %v3534 = vpop.f32.mrf.mxu0
      %3535 = vmatprep.mubr.f32.mxu0 0.0
      %3536 = vmatmul.mubr.f32.gmra.mxu0 %v2398
      %v3537 = vpop.f32.mrf.mxu0
      %v3538 = vadd.f32 0.0, %v3537
      %v3539 = vpop.f32.mrf.mxu0
      %3540 = vmatprep.mubr.f32.mxu0 0.0
      %3541 = vmatmul.mubr.f32.gmra.mxu0 %v2401
      %v3542 = vpop.f32.mrf.mxu0
      %v3543 = vadd.f32 0.0, %v3542
      %v3544 = vpop.f32.mrf.mxu0
      %3545 = vmatprep.mubr.f32.mxu0 0.0
      %3546 = vmatmul.mubr.f32.gmra.mxu0 %v2404
      %v3547 = vpop.f32.mrf.mxu0
      %v3548 = vadd.f32 0.0, %v3547
      %v3549 = vpop.f32.mrf.mxu0
      %3550 = vmatprep.mubr.f32.mxu0 0.0
      %3551 = vmatmul.mubr.f32.gmra.mxu0 %v2407
      %v3552 = vpop.f32.mrf.mxu0
      %v3553 = vadd.f32 0.0, %v3552
      %v3554 = vpop.f32.mrf.mxu0
      %3555 = vmatprep.mubr.f32.mxu0 0.0
      %3556 = vmatmul.mubr.f32.gmra.mxu0 %v2410
      %v3557 = vpop.f32.mrf.mxu0
      %v3558 = vadd.f32 0.0, %v3557
      %v3559 = vpop.f32.mrf.mxu0
      %3560 = vmatprep.mubr.f32.mxu0 0.0
      %3561 = vmatmul.mubr.f32.gmra.mxu0 %v2413
      %v3562 = vpop.f32.mrf.mxu0
      %v3563 = vadd.f32 0.0, %v3562
      %v3564 = vpop.f32.mrf.mxu0
      %3565 = vmatprep.mubr.f32.mxu0 0.0
      %3566 = vmatmul.mubr.f32.gmra.mxu0 %v2416
      %v3567 = vpop.f32.mrf.mxu0
      %v3568 = vadd.f32 0.0, %v3567
      %v3569 = vpop.f32.mrf.mxu0
      %3570 = vmatprep.mubr.f32.mxu0 0.0
      %3571 = vmatmul.mubr.f32.gmra.mxu0 %v2419
      %v3572 = vpop.f32.mrf.mxu0
      %v3573 = vadd.f32 0.0, %v3572
      %v3574 = vpop.f32.mrf.mxu0
      %3575 = vmatprep.mubr.f32.mxu0 0.0
      %3576 = vmatmul.mubr.f32.gmra.mxu0 %v2422
      %v3577 = vpop.f32.mrf.mxu0
      %v3578 = vadd.f32 0.0, %v3577
      %v3579 = vpop.f32.mrf.mxu0
      %3580 = vmatprep.mubr.f32.mxu0 0.0
      %3581 = vmatmul.mubr.f32.gmra.mxu0 %v2425
      %v3582 = vpop.f32.mrf.mxu0
      %v3583 = vadd.f32 0.0, %v3582
      %v3584 = vpop.f32.mrf.mxu0
      %3585 = vmatprep.mubr.f32.mxu0 0.0
      %3586 = vmatmul.mubr.f32.gmra.mxu0 %v2428
      %v3587 = vpop.f32.mrf.mxu0
      %v3588 = vadd.f32 0.0, %v3587
      %v3589 = vpop.f32.mrf.mxu0
      %3590 = vmatprep.mubr.f32.mxu0 0.0
      %3591 = vmatmul.mubr.f32.gmra.mxu0 %v2431
      %v3592 = vpop.f32.mrf.mxu0
      %v3593 = vadd.f32 0.0, %v3592
      %v3594 = vpop.f32.mrf.mxu0
      %3595 = vmatprep.mubr.f32.mxu0 0.0
      %3596 = vmatmul.mubr.f32.gmra.mxu0 %v2434
      %v3597 = vpop.f32.mrf.mxu0
      %v3598 = vadd.f32 0.0, %v3597
      %v3599 = vpop.f32.mrf.mxu0
      %3600 = vmatprep.mubr.f32.mxu0 0.0
      %3601 = vmatmul.mubr.f32.gmra.mxu0 %v2437
      %v3602 = vpop.f32.mrf.mxu0
      %v3603 = vadd.f32 0.0, %v3602
      %v3604 = vpop.f32.mrf.mxu0
      %3605 = vmatprep.mubr.f32.mxu0 0.0
      %3606 = vmatmul.mubr.f32.gmra.mxu0 %v2440
      %v3607 = vpop.f32.mrf.mxu0
      %v3608 = vadd.f32 0.0, %v3607
      %v3609 = vpop.f32.mrf.mxu0
      %3610 = vmatprep.mubr.f32.mxu0 0.0
      %3611 = vmatmul.mubr.f32.gmra.mxu0 %v2443
      %v3612 = vpop.f32.mrf.mxu0
      %v3613 = vadd.f32 0.0, %v3612
      %v3614 = vpop.f32.mrf.mxu0
      %3615 = vmatprep.mubr.f32.mxu0 0.0
      %3616 = vmatmul.mubr.f32.gmra.mxu0 %v2446
      %v3617 = vpop.f32.mrf.mxu0
      %v3618 = vadd.f32 0.0, %v3617
      %v3619 = vpop.f32.mrf.mxu0
      %3620 = vmatprep.mubr.f32.mxu0 0.0
      %3621 = vmatmul.mubr.f32.gmra.mxu0 %v2449
      %v3622 = vpop.f32.mrf.mxu0
      %v3623 = vadd.f32 0.0, %v3622
      %v3624 = vpop.f32.mrf.mxu0
      %3625 = vmatprep.mubr.f32.mxu0 0.0
      %3626 = vmatmul.mubr.f32.gmra.mxu0 %v2452
      %v3627 = vpop.f32.mrf.mxu0
      %v3628 = vadd.f32 0.0, %v3627
      %v3629 = vpop.f32.mrf.mxu0
      %3630 = vmatprep.mubr.f32.mxu0 0.0
      %3631 = vmatmul.mubr.f32.gmra.mxu0 %v2455
      %v3632 = vpop.f32.mrf.mxu0
      %v3633 = vadd.f32 0.0, %v3632
      %v3634 = vpop.f32.mrf.mxu0
      %3635 = vmatprep.mubr.f32.mxu0 0.0
      %3636 = vmatmul.mubr.f32.gmra.mxu0 %v2458
      %v3637 = vpop.f32.mrf.mxu0
      %v3638 = vadd.f32 0.0, %v3637
      %v3639 = vpop.f32.mrf.mxu0
      %3640 = vmatprep.mubr.f32.mxu0 0.0
      %3641 = vmatmul.mubr.f32.gmra.mxu0 %v2461
      %v3642 = vpop.f32.mrf.mxu0
      %v3643 = vadd.f32 0.0, %v3642
      %v3644 = vpop.f32.mrf.mxu0
      %3645 = vmatprep.mubr.f32.mxu0 0.0
      %3646 = vmatmul.mubr.f32.gmra.mxu0 %v2464
      %v3647 = vpop.f32.mrf.mxu0
      %v3648 = vadd.f32 0.0, %v3647
      %v3649 = vpop.f32.mrf.mxu0
      %3650 = vmatprep.mubr.f32.mxu0 0.0
      %3651 = vmatmul.mubr.f32.gmra.mxu0 %v2467
      %v3652 = vpop.f32.mrf.mxu0
      %v3653 = vadd.f32 0.0, %v3652
      %v3654 = vpop.f32.mrf.mxu0
      %3655 = vmatprep.mubr.f32.mxu0 0.0
      %3656 = vmatmul.mubr.f32.gmra.mxu0 %v2470
      %v3657 = vpop.f32.mrf.mxu0
      %v3658 = vadd.f32 0.0, %v3657
      %v3659 = vpop.f32.mrf.mxu0
      %3660 = vmatprep.mubr.f32.mxu0 0.0
      %3661 = vmatmul.mubr.f32.gmra.mxu0 %v2473
      %v3662 = vpop.f32.mrf.mxu0
      %v3663 = vadd.f32 0.0, %v3662
      %v3664 = vpop.f32.mrf.mxu0
      %3665 = vmatprep.mubr.f32.mxu0 0.0
      %3666 = vmatmul.mubr.f32.gmra.mxu0 %v2476
      %v3667 = vpop.f32.mrf.mxu0
      %v3668 = vadd.f32 0.0, %v3667
      %v3669 = vpop.f32.mrf.mxu0
      %3670 = vmatprep.mubr.f32.mxu0 0.0
      %3671 = vmatmul.mubr.f32.gmra.mxu0 %v2479
      %v3672 = vpop.f32.mrf.mxu0
      %v3673 = vadd.f32 0.0, %v3672
      %v3674 = vpop.f32.mrf.mxu0
      %3675 = vmatprep.mubr.f32.mxu0 0.0
      %3676 = vmatmul.mubr.f32.gmra.mxu0 %v2482
      %v3677 = vpop.f32.mrf.mxu0
      %v3678 = vadd.f32 0.0, %v3677
      %v3679 = vpop.f32.mrf.mxu0
      %3680 = vmatprep.mubr.f32.mxu0 0.0
      %3681 = vmatmul.mubr.f32.gmra.mxu0 %v2485
      %v3682 = vpop.f32.mrf.mxu0
      %v3683 = vadd.f32 0.0, %v3682
      %v3684 = vpop.f32.mrf.mxu0
      %3685 = vmatprep.mubr.f32.mxu0 0.0
      %3686 = vmatmul.mubr.f32.gmra.mxu0 %v2488
      %v3687 = vpop.f32.mrf.mxu0
      %v3688 = vadd.f32 0.0, %v3687
      %v3689 = vpop.f32.mrf.mxu0
      %3690 = vmatprep.mubr.f32.mxu0 0.0
      %3691 = vmatmul.mubr.f32.gmra.mxu0 %v2491
      %v3692 = vpop.f32.mrf.mxu0
      %v3693 = vadd.f32 0.0, %v3692
      %v3694 = vpop.f32.mrf.mxu0
      %3695 = vmatprep.mubr.f32.mxu0 0.0
      %3696 = vmatmul.mubr.f32.gmra.mxu0 %v2494
      %v3697 = vpop.f32.mrf.mxu0
      %v3698 = vadd.f32 0.0, %v3697
      %v3699 = vpop.f32.mrf.mxu0
      %3700 = vmatprep.mubr.f32.mxu0 0.0
      %3701 = vmatmul.mubr.f32.gmra.mxu0 %v2497
      %v3702 = vpop.f32.mrf.mxu0
      %v3703 = vadd.f32 0.0, %v3702
      %v3704 = vpop.f32.mrf.mxu0
      %3705 = vmatprep.mubr.f32.mxu0 0.0
      %3706 = vmatmul.mubr.f32.gmra.mxu0 %v2500
      %v3707 = vpop.f32.mrf.mxu0
      %v3708 = vadd.f32 0.0, %v3707
      %v3709 = vpop.f32.mrf.mxu0
      %3710 = vmatprep.mubr.f32.mxu0 0.0
      %3711 = vmatmul.mubr.f32.gmra.mxu0 %v2503
      %v3712 = vpop.f32.mrf.mxu0
      %v3713 = vadd.f32 0.0, %v3712
      %v3714 = vpop.f32.mrf.mxu0
      %3715 = vmatprep.mubr.f32.mxu0 0.0
      %3716 = vmatmul.mubr.f32.gmra.mxu0 %v2506
      %v3717 = vpop.f32.mrf.mxu0
      %v3718 = vadd.f32 0.0, %v3717
      %v3719 = vpop.f32.mrf.mxu0
      %3720 = vmatprep.mubr.f32.mxu0 0.0
      %3721 = vmatmul.mubr.f32.gmra.mxu0 %v2509
      %v3722 = vpop.f32.mrf.mxu0
      %v3723 = vadd.f32 0.0, %v3722
      %v3724 = vpop.f32.mrf.mxu0
      %3725 = vmatprep.mubr.f32.mxu0 0.0
      %3726 = vmatmul.mubr.f32.gmra.mxu0 %v2512
      %v3727 = vpop.f32.mrf.mxu0
      %v3728 = vadd.f32 0.0, %v3727
      %v3729 = vpop.f32.mrf.mxu0
      %3730 = vmatprep.mubr.f32.mxu0 0.0
      %3731 = vmatmul.mubr.f32.gmra.mxu0 %v2515
      %v3732 = vpop.f32.mrf.mxu0
      %v3733 = vadd.f32 0.0, %v3732
      %v3734 = vpop.f32.mrf.mxu0
      %3735 = vmatprep.mubr.f32.mxu0 0.0
      %3736 = vmatmul.mubr.f32.gmra.mxu0 %v2518
      %v3737 = vpop.f32.mrf.mxu0
      %v3738 = vadd.f32 0.0, %v3737
      %v3739 = vpop.f32.mrf.mxu0
      %3740 = vmatprep.mubr.f32.mxu0 0.0
      %3741 = vmatmul.mubr.f32.gmra.mxu0 %v2521
      %v3742 = vpop.f32.mrf.mxu0
      %v3743 = vadd.f32 0.0, %v3742
      %v3744 = vpop.f32.mrf.mxu0
      %3745 = vmatprep.mubr.f32.mxu0 0.0
      %3746 = vmatmul.mubr.f32.gmra.mxu0 %v2524
      %v3747 = vpop.f32.mrf.mxu0
      %v3748 = vadd.f32 0.0, %v3747
      %v3749 = vpop.f32.mrf.mxu0
      %3750 = vmatprep.mubr.f32.mxu0 0.0
      %3751 = vmatmul.mubr.f32.gmra.mxu0 %v2527
      %v3752 = vpop.f32.mrf.mxu0
      %v3753 = vadd.f32 0.0, %v3752
      %v3754 = vpop.f32.mrf.mxu0
      %3755 = vmatprep.mubr.f32.mxu0 0.0
      %3756 = vmatmul.mubr.f32.gmra.mxu0 %v2530
      %v3757 = vpop.f32.mrf.mxu0
      %v3758 = vadd.f32 0.0, %v3757
      %v3759 = vpop.f32.mrf.mxu0
      %3760 = vmatprep.mubr.f32.mxu0 0.0
      %3761 = vmatmul.mubr.f32.gmra.mxu0 %v2533
      %v3762 = vpop.f32.mrf.mxu0
      %v3763 = vadd.f32 0.0, %v3762
      %v3764 = vpop.f32.mrf.mxu0
      %3765 = vmatprep.mubr.f32.mxu0 0.0
      %3766 = vmatmul.mubr.f32.gmra.mxu0 %v2536
      %v3767 = vpop.f32.mrf.mxu0
      %v3768 = vadd.f32 0.0, %v3767
      %v3769 = vpop.f32.mrf.mxu0
      %3770 = vmatprep.mubr.f32.mxu0 0.0
      %3771 = vmatmul.mubr.f32.gmra.mxu0 %v2539
      %v3772 = vpop.f32.mrf.mxu0
      %v3773 = vadd.f32 0.0, %v3772
      %v3774 = vpop.f32.mrf.mxu0
      %3775 = vmatprep.mubr.f32.mxu0 0.0
      %3776 = vmatmul.mubr.f32.gmra.mxu0 %v2542
      %v3777 = vpop.f32.mrf.mxu0
      %v3778 = vadd.f32 0.0, %v3777
      %v3779 = vpop.f32.mrf.mxu0
      %3780 = vmatprep.mubr.f32.mxu0 0.0
      %3781 = vmatmul.mubr.f32.gmra.mxu0 %v2545
      %v3782 = vpop.f32.mrf.mxu0
      %v3783 = vadd.f32 0.0, %v3782
      %v3784 = vpop.f32.mrf.mxu0
      %3785 = vmatprep.mubr.f32.mxu0 0.0
      %3786 = vmatmul.mubr.f32.gmra.mxu0 %v2548
      %v3787 = vpop.f32.mrf.mxu0
      %v3788 = vadd.f32 0.0, %v3787
      %v3789 = vpop.f32.mrf.mxu0
      %3790 = vmatprep.mubr.f32.mxu0 0.0
      %3791 = vmatmul.mubr.f32.gmra.mxu0 %v2551
      %v3792 = vpop.f32.mrf.mxu0
      %v3793 = vadd.f32 0.0, %v3792
      %v3794 = vpop.f32.mrf.mxu0
      %3795 = vmatprep.mubr.f32.mxu0 0.0
      %3796 = vmatmul.mubr.f32.gmra.mxu0 %v2554
      %v3797 = vpop.f32.mrf.mxu0
      %v3798 = vadd.f32 0.0, %v3797
      %v3799 = vpop.f32.mrf.mxu0
      %3800 = vmatprep.mubr.f32.mxu0 0.0
      %3801 = vmatmul.mubr.f32.gmra.mxu0 %v2557
      %v3802 = vpop.f32.mrf.mxu0
      %v3803 = vadd.f32 0.0, %v3802
      %v3804 = vpop.f32.mrf.mxu0
      %3805 = vmatprep.mubr.f32.mxu0 0.0
      %3806 = vmatmul.mubr.f32.gmra.mxu0 %v2560
      %v3807 = vpop.f32.mrf.mxu0
      %v3808 = vadd.f32 0.0, %v3807
      %v3809 = vpop.f32.mrf.mxu0
      %3810 = vmatprep.mubr.f32.mxu0 0.0
      %3811 = vmatmul.mubr.f32.gmra.mxu0 %v2563
      %v3812 = vpop.f32.mrf.mxu0
      %v3813 = vadd.f32 0.0, %v3812
      %v3814 = vpop.f32.mrf.mxu0
      %3815 = vmatprep.mubr.f32.mxu0 0.0
      %3816 = vmatmul.mubr.f32.gmra.mxu0 %v2566
      %v3817 = vpop.f32.mrf.mxu0
      %v3818 = vadd.f32 0.0, %v3817
      %v3819 = vpop.f32.mrf.mxu0
      %3820 = vmatprep.mubr.f32.mxu0 0.0
      %3821 = vmatmul.mubr.f32.gmra.mxu0 %v2569
      %v3822 = vpop.f32.mrf.mxu0
      %v3823 = vadd.f32 0.0, %v3822
      %v3824 = vpop.f32.mrf.mxu0
      %3825 = vmatprep.mubr.f32.mxu0 0.0
      %3826 = vmatmul.mubr.f32.gmra.mxu0 %v2572
      %v3827 = vpop.f32.mrf.mxu0
      %v3828 = vadd.f32 0.0, %v3827
      %v3829 = vpop.f32.mrf.mxu0
      %3830 = vmatprep.mubr.f32.mxu0 0.0
      %3831 = vmatmul.mubr.f32.gmra.mxu0 %v2575
      %v3832 = vpop.f32.mrf.mxu0
      %v3833 = vadd.f32 0.0, %v3832
      %v3834 = vpop.f32.mrf.mxu0
      %3835 = vmatprep.mubr.f32.mxu0 0.0
      %3836 = vmatmul.mubr.f32.gmra.mxu0 %v2578
      %v3837 = vpop.f32.mrf.mxu0
      %v3838 = vadd.f32 0.0, %v3837
      %v3839 = vpop.f32.mrf.mxu0
      %3840 = vmatprep.mubr.f32.mxu0 0.0
      %3841 = vmatmul.mubr.f32.gmra.mxu0 %v2581
      %v3842 = vpop.f32.mrf.mxu0
      %v3843 = vadd.f32 0.0, %v3842
      %v3844 = vpop.f32.mrf.mxu0
      %3845 = vmatprep.mubr.f32.mxu0 0.0
      %3846 = vmatmul.mubr.f32.gmra.mxu0 %v2584
      %v3847 = vpop.f32.mrf.mxu0
      %v3848 = vadd.f32 0.0, %v3847
      %v3849 = vpop.f32.mrf.mxu0
      %3850 = vmatprep.mubr.f32.mxu0 0.0
      %3851 = vmatmul.mubr.f32.gmra.mxu0 %v2587
      %v3852 = vpop.f32.mrf.mxu0
      %v3853 = vadd.f32 0.0, %v3852
      %v3854 = vpop.f32.mrf.mxu0
      %3855 = vmatprep.mubr.f32.mxu0 0.0
      %3856 = vmatmul.mubr.f32.gmra.mxu0 %v2590
      %v3857 = vpop.f32.mrf.mxu0
      %v3858 = vadd.f32 0.0, %v3857
      %v3859 = vpop.f32.mrf.mxu0
      %3860 = vmatprep.mubr.f32.mxu0 0.0
      %3861 = vmatmul.mubr.f32.gmra.mxu0 %v2593
      %v3862 = vpop.f32.mrf.mxu0
      %v3863 = vadd.f32 0.0, %v3862
      %v3864 = vpop.f32.mrf.mxu0
      %3865 = vmatprep.mubr.f32.mxu0 0.0
      %3866 = vmatmul.mubr.f32.gmra.mxu0 %v2596
      %v3867 = vpop.f32.mrf.mxu0
      %v3868 = vadd.f32 0.0, %v3867
      %v3869 = vpop.f32.mrf.mxu0
      %3870 = vmatprep.mubr.f32.mxu0 0.0
      %3871 = vmatmul.mubr.f32.gmra.mxu0 %v2599
      %v3872 = vpop.f32.mrf.mxu0
      %v3873 = vadd.f32 0.0, %v3872
      %v3874 = vpop.f32.mrf.mxu0
      %3875 = vmatprep.mubr.f32.mxu0 0.0
      %3876 = vmatmul.mubr.f32.gmra.mxu0 %v2602
      %v3877 = vpop.f32.mrf.mxu0
      %v3878 = vadd.f32 0.0, %v3877
      %v3879 = vpop.f32.mrf.mxu0
      %3880 = vmatprep.mubr.f32.mxu0 0.0
      %3881 = vmatmul.mubr.f32.gmra.mxu0 %v2605
      %v3882 = vpop.f32.mrf.mxu0
      %v3883 = vadd.f32 0.0, %v3882
      %v3884 = vpop.f32.mrf.mxu0
      %3885 = vmatprep.mubr.f32.mxu0 0.0
      %3886 = vmatmul.mubr.f32.gmra.mxu0 %v2608
      %v3887 = vpop.f32.mrf.mxu0
      %v3888 = vadd.f32 0.0, %v3887
      %v3889 = vpop.f32.mrf.mxu0
      %3890 = vmatprep.mubr.f32.mxu0 0.0
      %3891 = vmatmul.mubr.f32.gmra.mxu0 %v2611
      %v3892 = vpop.f32.mrf.mxu0
      %v3893 = vadd.f32 0.0, %v3892
      %v3894 = vpop.f32.mrf.mxu0
      %3895 = vmatprep.mubr.f32.mxu0 0.0
      %3896 = vmatmul.mubr.f32.gmra.mxu0 %v2614
      %v3897 = vpop.f32.mrf.mxu0
      %v3898 = vadd.f32 0.0, %v3897
      %v3899 = vpop.f32.mrf.mxu0
      %3900 = vmatprep.mubr.f32.mxu0 0.0
      %3901 = vmatmul.mubr.f32.gmra.mxu0 %v2617
      %v3902 = vpop.f32.mrf.mxu0
      %v3903 = vadd.f32 0.0, %v3902
      %v3904 = vpop.f32.mrf.mxu0
      %3905 = vmatprep.mubr.f32.mxu0 0.0
      %3906 = vmatmul.mubr.f32.gmra.mxu0 %v2620
      %v3907 = vpop.f32.mrf.mxu0
      %v3908 = vadd.f32 0.0, %v3907
      %v3909 = vpop.f32.mrf.mxu0
      %3910 = vmatprep.mubr.f32.mxu0 0.0
      %3911 = vmatmul.mubr.f32.gmra.mxu0 %v2623
      %v3912 = vpop.f32.mrf.mxu0
      %v3913 = vadd.f32 0.0, %v3912
      %v3914 = vpop.f32.mrf.mxu0
      %3915 = vmatprep.mubr.f32.mxu0 0.0
      %3916 = vmatmul.mubr.f32.gmra.mxu0 %v2626
      %v3917 = vpop.f32.mrf.mxu0
      %v3918 = vadd.f32 0.0, %v3917
      %v3919 = vpop.f32.mrf.mxu0
      %3920 = vmatprep.mubr.f32.mxu0 0.0
      %3921 = vmatmul.mubr.f32.gmra.mxu0 %v2629
      %v3922 = vpop.f32.mrf.mxu0
      %v3923 = vadd.f32 0.0, %v3922
      %v3924 = vpop.f32.mrf.mxu0
      %3925 = vmatprep.mubr.f32.mxu0 0.0
      %3926 = vmatmul.mubr.f32.gmra.mxu0 %v2632
      %v3927 = vpop.f32.mrf.mxu0
      %v3928 = vadd.f32 0.0, %v3927
      %v3929 = vpop.f32.mrf.mxu0
      %3930 = vmatprep.mubr.f32.mxu0 0.0
      %3931 = vmatmul.mubr.f32.gmra.mxu0 %v2635
      %v3932 = vpop.f32.mrf.mxu0
      %v3933 = vadd.f32 0.0, %v3932
      %v3934 = vpop.f32.mrf.mxu0
      %3935 = vmatprep.mubr.f32.mxu0 0.0
      %3936 = vmatmul.mubr.f32.gmra.mxu0 %v2638
      %v3937 = vpop.f32.mrf.mxu0
      %v3938 = vadd.f32 0.0, %v3937
      %v3939 = vpop.f32.mrf.mxu0
      %3940 = vmatprep.mubr.f32.mxu0 0.0
      %3941 = vmatmul.mubr.f32.gmra.mxu0 %v2641
      %v3942 = vpop.f32.mrf.mxu0
      %v3943 = vadd.f32 0.0, %v3942
      %v3944 = vpop.f32.mrf.mxu0
      %3945 = vmatprep.mubr.f32.mxu0 0.0
      %3946 = vmatmul.mubr.f32.gmra.mxu0 %v2644
      %v3947 = vpop.f32.mrf.mxu0
      %v3948 = vadd.f32 0.0, %v3947
      %v3949 = vpop.f32.mrf.mxu0
      %3950 = vmatprep.mubr.f32.mxu0 0.0
      %3951 = vmatmul.mubr.f32.gmra.mxu0 %v2647
      %v3952 = vpop.f32.mrf.mxu0
      %v3953 = vadd.f32 0.0, %v3952
      %v3954 = vpop.f32.mrf.mxu0
      %3955 = vmatprep.mubr.f32.mxu0 0.0
      %3956 = vmatmul.mubr.f32.gmra.mxu0 %v2650
      %v3957 = vpop.f32.mrf.mxu0
      %v3958 = vadd.f32 0.0, %v3957
      %v3959 = vpop.f32.mrf.mxu0
      %3960 = vmatprep.mubr.f32.mxu0 0.0
      %3961 = vmatmul.mubr.f32.gmra.mxu0 %v2653
      %v3962 = vpop.f32.mrf.mxu0
      %v3963 = vadd.f32 0.0, %v3962
      %v3964 = vpop.f32.mrf.mxu0
      %3965 = vmatprep.mubr.f32.mxu0 0.0
      %3966 = vmatmul.mubr.f32.gmra.mxu0 %v2656
      %v3967 = vpop.f32.mrf.mxu0
      %v3968 = vadd.f32 0.0, %v3967
      %v3969 = vpop.f32.mrf.mxu0
      %3970 = vmatprep.mubr.f32.mxu0 0.0
      %3971 = vmatmul.mubr.f32.gmra.mxu0 %v2659
      %v3972 = vpop.f32.mrf.mxu0
      %v3973 = vadd.f32 0.0, %v3972
      %v3974 = vpop.f32.mrf.mxu0
      %3975 = vmatprep.mubr.f32.mxu0 0.0
      %3976 = vmatmul.mubr.f32.gmra.mxu0 %v2662
      %v3977 = vpop.f32.mrf.mxu0
      %v3978 = vadd.f32 0.0, %v3977
      %v3979 = vpop.f32.mrf.mxu0
      %3980 = vmatprep.mubr.f32.mxu0 0.0
      %3981 = vmatmul.mubr.f32.gmra.mxu0 %v2665
      %v3982 = vpop.f32.mrf.mxu0
      %v3983 = vadd.f32 0.0, %v3982
      %v3984 = vpop.f32.mrf.mxu0
      %3985 = vmatprep.mubr.f32.mxu0 0.0
      %3986 = vmatmul.mubr.f32.gmra.mxu0 %v2668
      %v3987 = vpop.f32.mrf.mxu0
      %v3988 = vadd.f32 0.0, %v3987
      %v3989 = vpop.f32.mrf.mxu0
      %3990 = vmatprep.mubr.f32.mxu0 0.0
      %3991 = vmatmul.mubr.f32.gmra.mxu0 %v2671
      %v3992 = vpop.f32.mrf.mxu0
      %v3993 = vadd.f32 0.0, %v3992
      %v3994 = vpop.f32.mrf.mxu0
      %3995 = vmatprep.mubr.f32.mxu0 0.0
      %3996 = vmatmul.mubr.f32.gmra.mxu0 %v2674
      %v3997 = vpop.f32.mrf.mxu0
      %v3998 = vadd.f32 0.0, %v3997
      %v3999 = vpop.f32.mrf.mxu0
      %4000 = vmatprep.mubr.f32.mxu0 0.0
      %4001 = vmatmul.mubr.f32.gmra.mxu0 %v2677
      %v4002 = vpop.f32.mrf.mxu0
      %v4003 = vadd.f32 0.0, %v4002
      %v4004 = vpop.f32.mrf.mxu0
      %4005 = vmatprep.mubr.f32.mxu0 0.0
      %4006 = vmatmul.mubr.f32.gmra.mxu0 %v2680
      %v4007 = vpop.f32.mrf.mxu0
      %v4008 = vadd.f32 0.0, %v4007
      %v4009 = vpop.f32.mrf.mxu0
      %4010 = vmatprep.mubr.f32.mxu0 0.0
      %4011 = vmatmul.mubr.f32.gmra.mxu0 %v2683
      %v4012 = vpop.f32.mrf.mxu0
      %v4013 = vadd.f32 0.0, %v4012
      %v4014 = vpop.f32.mrf.mxu0
      %4015 = vmatprep.mubr.f32.mxu0 0.0
      %4016 = vmatmul.mubr.f32.gmra.mxu0 %v2686
      %v4017 = vpop.f32.mrf.mxu0
      %v4018 = vadd.f32 0.0, %v4017
      %v4019 = vpop.f32.mrf.mxu0
      %4020 = vmatprep.mubr.f32.mxu0 0.0
      %4021 = vmatmul.mubr.f32.gmra.mxu0 %v2689
      %v4022 = vpop.f32.mrf.mxu0
      %v4023 = vadd.f32 0.0, %v4022
      %v4024 = vpop.f32.mrf.mxu0
      %4025 = vmatprep.mubr.f32.mxu0 0.0
      %4026 = vmatmul.mubr.f32.gmra.mxu0 %v2692
      %v4027 = vpop.f32.mrf.mxu0
      %v4028 = vadd.f32 0.0, %v4027
      %v4029 = vpop.f32.mrf.mxu0
      %4030 = vmatprep.mubr.f32.mxu0 0.0
      %4031 = vmatmul.mubr.f32.gmra.mxu0 %v2695
      %v4032 = vpop.f32.mrf.mxu0
      %v4033 = vadd.f32 0.0, %v4032
      %v4034 = vpop.f32.mrf.mxu0
      %4035 = vmatprep.mubr.f32.mxu0 0.0
      %4036 = vmatmul.mubr.f32.gmra.mxu0 %v2698
      %v4037 = vpop.f32.mrf.mxu0
      %v4038 = vadd.f32 0.0, %v4037
      %v4039 = vpop.f32.mrf.mxu0
      %4040 = vmatprep.mubr.f32.mxu0 0.0
      %4041 = vmatmul.mubr.f32.gmra.mxu0 %v2701
      %v4042 = vpop.f32.mrf.mxu0
      %v4043 = vadd.f32 0.0, %v4042
      %v4044 = vpop.f32.mrf.mxu0
      %4045 = vmatprep.mubr.f32.mxu0 0.0
      %4046 = vmatmul.mubr.f32.gmra.mxu0 %v2704
      %v4047 = vpop.f32.mrf.mxu0
      %v4048 = vadd.f32 0.0, %v4047
      %v4049 = vpop.f32.mrf.mxu0
      %4050 = vmatprep.mubr.f32.mxu0 0.0
      %4051 = vmatmul.mubr.f32.gmra.mxu0 %v2707
      %v4052 = vpop.f32.mrf.mxu0
      %v4053 = vadd.f32 0.0, %v4052
      %v4054 = vpop.f32.mrf.mxu0
      %4055 = vmatprep.mubr.f32.mxu0 0.0
      %4056 = vmatmul.mubr.f32.gmra.mxu0 %v2710
      %v4057 = vpop.f32.mrf.mxu0
      %v4058 = vadd.f32 0.0, %v4057
      %v4059 = vpop.f32.mrf.mxu0
      %4060 = vdwg.mxu0
      %vm4061 = vcmask 261120
      %4062 = vst.msk [vmem:[%s145] sm:$0xff] %vm4061, %v2783
      %4063 = vst.msk [vmem:[%s145 + $0x8] sm:$0xff] %vm4061, %v2788
      %4064 = vst.msk [vmem:[%s145 + $0x10] sm:$0xff] %vm4061, %v2793
      %4065 = vst.msk [vmem:[%s145 + $0x18] sm:$0xff] %vm4061, %v2798
      %4066 = vst.msk [vmem:[%s145 + $0x20] sm:$0xff] %vm4061, %v2803
      %4067 = vst.msk [vmem:[%s145 + $0x28] sm:$0xff] %vm4061, %v2808
      %4068 = vst.msk [vmem:[%s145 + $0x30] sm:$0xff] %vm4061, %v2813
      %4069 = vst.msk [vmem:[%s145 + $0x38] sm:$0xff] %vm4061, %v2818
      %4070 = vst.msk [vmem:[%s145 + $0x40] sm:$0xff] %vm4061, %v2823
      %4071 = vst.msk [vmem:[%s145 + $0x48] sm:$0xff] %vm4061, %v2828
      %4072 = vst.msk [vmem:[%s145 + $0x50] sm:$0xff] %vm4061, %v2833
      %4073 = vst.msk [vmem:[%s145 + $0x58] sm:$0xff] %vm4061, %v2838
      %4074 = vst.msk [vmem:[%s145 + $0x60] sm:$0xff] %vm4061, %v2843
      %4075 = vst.msk [vmem:[%s145 + $0x68] sm:$0xff] %vm4061, %v2848
      %4076 = vst.msk [vmem:[%s145 + $0x70] sm:$0xff] %vm4061, %v2853
      %4077 = vst.msk [vmem:[%s145 + $0x78] sm:$0xff] %vm4061, %v2858
      %4078 = vst.msk [vmem:[%s145 + $0x80] sm:$0xff] %vm4061, %v2863
      %4079 = vst.msk [vmem:[%s145 + $0x88] sm:$0xff] %vm4061, %v2868
      %4080 = vst.msk [vmem:[%s145 + $0x90] sm:$0xff] %vm4061, %v2873
      %4081 = vst.msk [vmem:[%s145 + $0x98] sm:$0xff] %vm4061, %v2878
      %4082 = vst.msk [vmem:[%s145 + $0xa0] sm:$0xff] %vm4061, %v2883
      %4083 = vst.msk [vmem:[%s145 + $0xa8] sm:$0xff] %vm4061, %v2888
      %4084 = vst.msk [vmem:[%s145 + $0xb0] sm:$0xff] %vm4061, %v2893
      %4085 = vst.msk [vmem:[%s145 + $0xb8] sm:$0xff] %vm4061, %v2898
      %4086 = vst.msk [vmem:[%s145 + $0xc0] sm:$0xff] %vm4061, %v2903
      %4087 = vst.msk [vmem:[%s145 + $0xc8] sm:$0xff] %vm4061, %v2908
      %4088 = vst.msk [vmem:[%s145 + $0xd0] sm:$0xff] %vm4061, %v2913
      %4089 = vst.msk [vmem:[%s145 + $0xd8] sm:$0xff] %vm4061, %v2918
      %4090 = vst.msk [vmem:[%s145 + $0xe0] sm:$0xff] %vm4061, %v2923
      %4091 = vst.msk [vmem:[%s145 + $0xe8] sm:$0xff] %vm4061, %v2928
      %4092 = vst.msk [vmem:[%s145 + $0xf0] sm:$0xff] %vm4061, %v2933
      %4093 = vst.msk [vmem:[%s145 + $0xf8] sm:$0xff] %vm4061, %v2938
      %4094 = vst.msk [vmem:[%s145 + $0x100] sm:$0xff] %vm4061, %v2943
      %4095 = vst.msk [vmem:[%s145 + $0x108] sm:$0xff] %vm4061, %v2948
      %4096 = vst.msk [vmem:[%s145 + $0x110] sm:$0xff] %vm4061, %v2953
      %4097 = vst.msk [vmem:[%s145 + $0x118] sm:$0xff] %vm4061, %v2958
      %4098 = vst.msk [vmem:[%s145 + $0x120] sm:$0xff] %vm4061, %v2963
      %4099 = vst.msk [vmem:[%s145 + $0x128] sm:$0xff] %vm4061, %v2968
      %4100 = vst.msk [vmem:[%s145 + $0x130] sm:$0xff] %vm4061, %v2973
      %4101 = vst.msk [vmem:[%s145 + $0x138] sm:$0xff] %vm4061, %v2978
      %4102 = vst.msk [vmem:[%s145 + $0x140] sm:$0xff] %vm4061, %v2983
      %4103 = vst.msk [vmem:[%s145 + $0x148] sm:$0xff] %vm4061, %v2988
      %4104 = vst.msk [vmem:[%s145 + $0x150] sm:$0xff] %vm4061, %v2993
      %4105 = vst.msk [vmem:[%s145 + $0x158] sm:$0xff] %vm4061, %v2998
      %4106 = vst.msk [vmem:[%s145 + $0x160] sm:$0xff] %vm4061, %v3003
      %4107 = vst.msk [vmem:[%s145 + $0x168] sm:$0xff] %vm4061, %v3008
      %4108 = vst.msk [vmem:[%s145 + $0x170] sm:$0xff] %vm4061, %v3013
      %4109 = vst.msk [vmem:[%s145 + $0x178] sm:$0xff] %vm4061, %v3018
      %4110 = vst.msk [vmem:[%s145 + $0x180] sm:$0xff] %vm4061, %v3023
      %4111 = vst.msk [vmem:[%s145 + $0x188] sm:$0xff] %vm4061, %v3028
      %4112 = vst.msk [vmem:[%s145 + $0x190] sm:$0xff] %vm4061, %v3033
      %4113 = vst.msk [vmem:[%s145 + $0x198] sm:$0xff] %vm4061, %v3038
      %4114 = vst.msk [vmem:[%s145 + $0x1a0] sm:$0xff] %vm4061, %v3043
      %4115 = vst.msk [vmem:[%s145 + $0x1a8] sm:$0xff] %vm4061, %v3048
      %4116 = vst.msk [vmem:[%s145 + $0x1b0] sm:$0xff] %vm4061, %v3053
      %4117 = vst.msk [vmem:[%s145 + $0x1b8] sm:$0xff] %vm4061, %v3058
      %4118 = vst.msk [vmem:[%s145 + $0x1c0] sm:$0xff] %vm4061, %v3063
      %4119 = vst.msk [vmem:[%s145 + $0x1c8] sm:$0xff] %vm4061, %v3068
      %4120 = vst.msk [vmem:[%s145 + $0x1d0] sm:$0xff] %vm4061, %v3073
      %4121 = vst.msk [vmem:[%s145 + $0x1d8] sm:$0xff] %vm4061, %v3078
      %4122 = vst.msk [vmem:[%s145 + $0x1e0] sm:$0xff] %vm4061, %v3083
      %4123 = vst.msk [vmem:[%s145 + $0x1e8] sm:$0xff] %vm4061, %v3088
      %4124 = vst.msk [vmem:[%s145 + $0x1f0] sm:$0xff] %vm4061, %v3093
      %4125 = vst.msk [vmem:[%s145 + $0x1f8] sm:$0xff] %vm4061, %v3098
      %4126 = vst.msk [vmem:[%s145 + $0x200] sm:$0xff] %vm4061, %v3103
      %4127 = vst.msk [vmem:[%s145 + $0x208] sm:$0xff] %vm4061, %v3108
      %4128 = vst.msk [vmem:[%s145 + $0x210] sm:$0xff] %vm4061, %v3113
      %4129 = vst.msk [vmem:[%s145 + $0x218] sm:$0xff] %vm4061, %v3118
      %4130 = vst.msk [vmem:[%s145 + $0x220] sm:$0xff] %vm4061, %v3123
      %4131 = vst.msk [vmem:[%s145 + $0x228] sm:$0xff] %vm4061, %v3128
      %4132 = vst.msk [vmem:[%s145 + $0x230] sm:$0xff] %vm4061, %v3133
      %4133 = vst.msk [vmem:[%s145 + $0x238] sm:$0xff] %vm4061, %v3138
      %4134 = vst.msk [vmem:[%s145 + $0x240] sm:$0xff] %vm4061, %v3143
      %4135 = vst.msk [vmem:[%s145 + $0x248] sm:$0xff] %vm4061, %v3148
      %4136 = vst.msk [vmem:[%s145 + $0x250] sm:$0xff] %vm4061, %v3153
      %4137 = vst.msk [vmem:[%s145 + $0x258] sm:$0xff] %vm4061, %v3158
      %4138 = vst.msk [vmem:[%s145 + $0x260] sm:$0xff] %vm4061, %v3163
      %4139 = vst.msk [vmem:[%s145 + $0x268] sm:$0xff] %vm4061, %v3168
      %4140 = vst.msk [vmem:[%s145 + $0x270] sm:$0xff] %vm4061, %v3173
      %4141 = vst.msk [vmem:[%s145 + $0x278] sm:$0xff] %vm4061, %v3178
      %4142 = vst.msk [vmem:[%s145 + $0x280] sm:$0xff] %vm4061, %v3183
      %4143 = vst.msk [vmem:[%s145 + $0x288] sm:$0xff] %vm4061, %v3188
      %4144 = vst.msk [vmem:[%s145 + $0x290] sm:$0xff] %vm4061, %v3193
      %4145 = vst.msk [vmem:[%s145 + $0x298] sm:$0xff] %vm4061, %v3198
      %4146 = vst.msk [vmem:[%s145 + $0x2a0] sm:$0xff] %vm4061, %v3203
      %4147 = vst.msk [vmem:[%s145 + $0x2a8] sm:$0xff] %vm4061, %v3208
      %4148 = vst.msk [vmem:[%s145 + $0x2b0] sm:$0xff] %vm4061, %v3213
      %4149 = vst.msk [vmem:[%s145 + $0x2b8] sm:$0xff] %vm4061, %v3218
      %4150 = vst.msk [vmem:[%s145 + $0x2c0] sm:$0xff] %vm4061, %v3223
      %4151 = vst.msk [vmem:[%s145 + $0x2c8] sm:$0xff] %vm4061, %v3228
      %4152 = vst.msk [vmem:[%s145 + $0x2d0] sm:$0xff] %vm4061, %v3233
      %4153 = vst.msk [vmem:[%s145 + $0x2d8] sm:$0xff] %vm4061, %v3238
      %4154 = vst.msk [vmem:[%s145 + $0x2e0] sm:$0xff] %vm4061, %v3243
      %4155 = vst.msk [vmem:[%s145 + $0x2e8] sm:$0xff] %vm4061, %v3248
      %4156 = vst.msk [vmem:[%s145 + $0x2f0] sm:$0xff] %vm4061, %v3253
      %4157 = vst.msk [vmem:[%s145 + $0x2f8] sm:$0xff] %vm4061, %v3258
      %4158 = vst.msk [vmem:[%s145 + $0x300] sm:$0xff] %vm4061, %v3263
      %4159 = vst.msk [vmem:[%s145 + $0x308] sm:$0xff] %vm4061, %v3268
      %4160 = vst.msk [vmem:[%s145 + $0x310] sm:$0xff] %vm4061, %v3273
      %4161 = vst.msk [vmem:[%s145 + $0x318] sm:$0xff] %vm4061, %v3278
      %4162 = vst.msk [vmem:[%s145 + $0x320] sm:$0xff] %vm4061, %v3283
      %4163 = vst.msk [vmem:[%s145 + $0x328] sm:$0xff] %vm4061, %v3288
      %4164 = vst.msk [vmem:[%s145 + $0x330] sm:$0xff] %vm4061, %v3293
      %4165 = vst.msk [vmem:[%s145 + $0x338] sm:$0xff] %vm4061, %v3298
      %4166 = vst.msk [vmem:[%s145 + $0x340] sm:$0xff] %vm4061, %v3303
      %4167 = vst.msk [vmem:[%s145 + $0x348] sm:$0xff] %vm4061, %v3308
      %4168 = vst.msk [vmem:[%s145 + $0x350] sm:$0xff] %vm4061, %v3313
      %4169 = vst.msk [vmem:[%s145 + $0x358] sm:$0xff] %vm4061, %v3318
      %4170 = vst.msk [vmem:[%s145 + $0x360] sm:$0xff] %vm4061, %v3323
      %4171 = vst.msk [vmem:[%s145 + $0x368] sm:$0xff] %vm4061, %v3328
      %4172 = vst.msk [vmem:[%s145 + $0x370] sm:$0xff] %vm4061, %v3333
      %4173 = vst.msk [vmem:[%s145 + $0x378] sm:$0xff] %vm4061, %v3338
      %4174 = vst.msk [vmem:[%s145 + $0x380] sm:$0xff] %vm4061, %v3343
      %4175 = vst.msk [vmem:[%s145 + $0x388] sm:$0xff] %vm4061, %v3348
      %4176 = vst.msk [vmem:[%s145 + $0x390] sm:$0xff] %vm4061, %v3353
      %4177 = vst.msk [vmem:[%s145 + $0x398] sm:$0xff] %vm4061, %v3358
      %4178 = vst.msk [vmem:[%s145 + $0x3a0] sm:$0xff] %vm4061, %v3363
      %4179 = vst.msk [vmem:[%s145 + $0x3a8] sm:$0xff] %vm4061, %v3368
      %4180 = vst.msk [vmem:[%s145 + $0x3b0] sm:$0xff] %vm4061, %v3373
      %4181 = vst.msk [vmem:[%s145 + $0x3b8] sm:$0xff] %vm4061, %v3378
      %4182 = vst.msk [vmem:[%s145 + $0x3c0] sm:$0xff] %vm4061, %v3383
      %4183 = vst.msk [vmem:[%s145 + $0x3c8] sm:$0xff] %vm4061, %v3388
      %4184 = vst.msk [vmem:[%s145 + $0x3d0] sm:$0xff] %vm4061, %v3393
      %4185 = vst.msk [vmem:[%s145 + $0x3d8] sm:$0xff] %vm4061, %v3398
      %4186 = vst.msk [vmem:[%s145 + $0x3e0] sm:$0xff] %vm4061, %v3403
      %4187 = vst.msk [vmem:[%s145 + $0x3e8] sm:$0xff] %vm4061, %v3408
      %4188 = vst.msk [vmem:[%s145 + $0x3f0] sm:$0xff] %vm4061, %v3413
      %4189 = vst.msk [vmem:[%s145 + $0x3f8] sm:$0xff] %vm4061, %v3418
      %4190 = vst.msk [vmem:[%s145 + $0x400] sm:$0xff] %vm4061, %v3423
      %4191 = vst.msk [vmem:[%s145 + $0x408] sm:$0xff] %vm4061, %v3428
      %4192 = vst.msk [vmem:[%s145 + $0x410] sm:$0xff] %vm4061, %v3433
      %4193 = vst.msk [vmem:[%s145 + $0x418] sm:$0xff] %vm4061, %v3438
      %4194 = vst.msk [vmem:[%s145 + $0x420] sm:$0xff] %vm4061, %v3443
      %4195 = vst.msk [vmem:[%s145 + $0x428] sm:$0xff] %vm4061, %v3448
      %4196 = vst.msk [vmem:[%s145 + $0x430] sm:$0xff] %vm4061, %v3453
      %4197 = vst.msk [vmem:[%s145 + $0x438] sm:$0xff] %vm4061, %v3458
      %4198 = vst.msk [vmem:[%s145 + $0x440] sm:$0xff] %vm4061, %v3463
      %4199 = vst.msk [vmem:[%s145 + $0x448] sm:$0xff] %vm4061, %v3468
      %4200 = vst.msk [vmem:[%s145 + $0x450] sm:$0xff] %vm4061, %v3473
      %4201 = vst.msk [vmem:[%s145 + $0x458] sm:$0xff] %vm4061, %v3478
      %4202 = vst.msk [vmem:[%s145 + $0x460] sm:$0xff] %vm4061, %v3483
      %4203 = vst.msk [vmem:[%s145 + $0x468] sm:$0xff] %vm4061, %v3488
      %4204 = vst.msk [vmem:[%s145 + $0x470] sm:$0xff] %vm4061, %v3493
      %4205 = vst.msk [vmem:[%s145 + $0x478] sm:$0xff] %vm4061, %v3498
      %4206 = vst.msk [vmem:[%s145 + $0x480] sm:$0xff] %vm4061, %v3503
      %4207 = vst.msk [vmem:[%s145 + $0x488] sm:$0xff] %vm4061, %v3508
      %4208 = vst.msk [vmem:[%s145 + $0x490] sm:$0xff] %vm4061, %v3513
      %4209 = vst.msk [vmem:[%s145 + $0x498] sm:$0xff] %vm4061, %v3518
      %4210 = vst.msk [vmem:[%s145 + $0x4a0] sm:$0xff] %vm4061, %v3523
      %4211 = vst.msk [vmem:[%s145 + $0x4a8] sm:$0xff] %vm4061, %v3528
      %4212 = vst.msk [vmem:[%s145 + $0x4b0] sm:$0xff] %vm4061, %v3533
      %4213 = vst.msk [vmem:[%s145 + $0x4b8] sm:$0xff] %vm4061, %v3538
      %4214 = vst.msk [vmem:[%s145 + $0x4c0] sm:$0xff] %vm4061, %v3543
      %4215 = vst.msk [vmem:[%s145 + $0x4c8] sm:$0xff] %vm4061, %v3548
      %4216 = vst.msk [vmem:[%s145 + $0x4d0] sm:$0xff] %vm4061, %v3553
      %4217 = vst.msk [vmem:[%s145 + $0x4d8] sm:$0xff] %vm4061, %v3558
      %4218 = vst.msk [vmem:[%s145 + $0x4e0] sm:$0xff] %vm4061, %v3563
      %4219 = vst.msk [vmem:[%s145 + $0x4e8] sm:$0xff] %vm4061, %v3568
      %4220 = vst.msk [vmem:[%s145 + $0x4f0] sm:$0xff] %vm4061, %v3573
      %4221 = vst.msk [vmem:[%s145 + $0x4f8] sm:$0xff] %vm4061, %v3578
      %4222 = vst.msk [vmem:[%s145 + $0x500] sm:$0xff] %vm4061, %v3583
      %4223 = vst.msk [vmem:[%s145 + $0x508] sm:$0xff] %vm4061, %v3588
      %4224 = vst.msk [vmem:[%s145 + $0x510] sm:$0xff] %vm4061, %v3593
      %4225 = vst.msk [vmem:[%s145 + $0x518] sm:$0xff] %vm4061, %v3598
      %4226 = vst.msk [vmem:[%s145 + $0x520] sm:$0xff] %vm4061, %v3603
      %4227 = vst.msk [vmem:[%s145 + $0x528] sm:$0xff] %vm4061, %v3608
      %4228 = vst.msk [vmem:[%s145 + $0x530] sm:$0xff] %vm4061, %v3613
      %4229 = vst.msk [vmem:[%s145 + $0x538] sm:$0xff] %vm4061, %v3618
      %4230 = vst.msk [vmem:[%s145 + $0x540] sm:$0xff] %vm4061, %v3623
      %4231 = vst.msk [vmem:[%s145 + $0x548] sm:$0xff] %vm4061, %v3628
      %4232 = vst.msk [vmem:[%s145 + $0x550] sm:$0xff] %vm4061, %v3633
      %4233 = vst.msk [vmem:[%s145 + $0x558] sm:$0xff] %vm4061, %v3638
      %4234 = vst.msk [vmem:[%s145 + $0x560] sm:$0xff] %vm4061, %v3643
      %4235 = vst.msk [vmem:[%s145 + $0x568] sm:$0xff] %vm4061, %v3648
      %4236 = vst.msk [vmem:[%s145 + $0x570] sm:$0xff] %vm4061, %v3653
      %4237 = vst.msk [vmem:[%s145 + $0x578] sm:$0xff] %vm4061, %v3658
      %4238 = vst.msk [vmem:[%s145 + $0x580] sm:$0xff] %vm4061, %v3663
      %4239 = vst.msk [vmem:[%s145 + $0x588] sm:$0xff] %vm4061, %v3668
      %4240 = vst.msk [vmem:[%s145 + $0x590] sm:$0xff] %vm4061, %v3673
      %4241 = vst.msk [vmem:[%s145 + $0x598] sm:$0xff] %vm4061, %v3678
      %4242 = vst.msk [vmem:[%s145 + $0x5a0] sm:$0xff] %vm4061, %v3683
      %4243 = vst.msk [vmem:[%s145 + $0x5a8] sm:$0xff] %vm4061, %v3688
      %4244 = vst.msk [vmem:[%s145 + $0x5b0] sm:$0xff] %vm4061, %v3693
      %4245 = vst.msk [vmem:[%s145 + $0x5b8] sm:$0xff] %vm4061, %v3698
      %4246 = vst.msk [vmem:[%s145 + $0x5c0] sm:$0xff] %vm4061, %v3703
      %4247 = vst.msk [vmem:[%s145 + $0x5c8] sm:$0xff] %vm4061, %v3708
      %4248 = vst.msk [vmem:[%s145 + $0x5d0] sm:$0xff] %vm4061, %v3713
      %4249 = vst.msk [vmem:[%s145 + $0x5d8] sm:$0xff] %vm4061, %v3718
      %4250 = vst.msk [vmem:[%s145 + $0x5e0] sm:$0xff] %vm4061, %v3723
      %4251 = vst.msk [vmem:[%s145 + $0x5e8] sm:$0xff] %vm4061, %v3728
      %4252 = vst.msk [vmem:[%s145 + $0x5f0] sm:$0xff] %vm4061, %v3733
      %4253 = vst.msk [vmem:[%s145 + $0x5f8] sm:$0xff] %vm4061, %v3738
      %4254 = vst.msk [vmem:[%s145 + $0x600] sm:$0xff] %vm4061, %v3743
      %4255 = vst.msk [vmem:[%s145 + $0x608] sm:$0xff] %vm4061, %v3748
      %4256 = vst.msk [vmem:[%s145 + $0x610] sm:$0xff] %vm4061, %v3753
      %4257 = vst.msk [vmem:[%s145 + $0x618] sm:$0xff] %vm4061, %v3758
      %4258 = vst.msk [vmem:[%s145 + $0x620] sm:$0xff] %vm4061, %v3763
      %4259 = vst.msk [vmem:[%s145 + $0x628] sm:$0xff] %vm4061, %v3768
      %4260 = vst.msk [vmem:[%s145 + $0x630] sm:$0xff] %vm4061, %v3773
      %4261 = vst.msk [vmem:[%s145 + $0x638] sm:$0xff] %vm4061, %v3778
      %4262 = vst.msk [vmem:[%s145 + $0x640] sm:$0xff] %vm4061, %v3783
      %4263 = vst.msk [vmem:[%s145 + $0x648] sm:$0xff] %vm4061, %v3788
      %4264 = vst.msk [vmem:[%s145 + $0x650] sm:$0xff] %vm4061, %v3793
      %4265 = vst.msk [vmem:[%s145 + $0x658] sm:$0xff] %vm4061, %v3798
      %4266 = vst.msk [vmem:[%s145 + $0x660] sm:$0xff] %vm4061, %v3803
      %4267 = vst.msk [vmem:[%s145 + $0x668] sm:$0xff] %vm4061, %v3808
      %4268 = vst.msk [vmem:[%s145 + $0x670] sm:$0xff] %vm4061, %v3813
      %4269 = vst.msk [vmem:[%s145 + $0x678] sm:$0xff] %vm4061, %v3818
      %4270 = vst.msk [vmem:[%s145 + $0x680] sm:$0xff] %vm4061, %v3823
      %4271 = vst.msk [vmem:[%s145 + $0x688] sm:$0xff] %vm4061, %v3828
      %4272 = vst.msk [vmem:[%s145 + $0x690] sm:$0xff] %vm4061, %v3833
      %4273 = vst.msk [vmem:[%s145 + $0x698] sm:$0xff] %vm4061, %v3838
      %4274 = vst.msk [vmem:[%s145 + $0x6a0] sm:$0xff] %vm4061, %v3843
      %4275 = vst.msk [vmem:[%s145 + $0x6a8] sm:$0xff] %vm4061, %v3848
      %4276 = vst.msk [vmem:[%s145 + $0x6b0] sm:$0xff] %vm4061, %v3853
      %4277 = vst.msk [vmem:[%s145 + $0x6b8] sm:$0xff] %vm4061, %v3858
      %4278 = vst.msk [vmem:[%s145 + $0x6c0] sm:$0xff] %vm4061, %v3863
      %4279 = vst.msk [vmem:[%s145 + $0x6c8] sm:$0xff] %vm4061, %v3868
      %4280 = vst.msk [vmem:[%s145 + $0x6d0] sm:$0xff] %vm4061, %v3873
      %4281 = vst.msk [vmem:[%s145 + $0x6d8] sm:$0xff] %vm4061, %v3878
      %4282 = vst.msk [vmem:[%s145 + $0x6e0] sm:$0xff] %vm4061, %v3883
      %4283 = vst.msk [vmem:[%s145 + $0x6e8] sm:$0xff] %vm4061, %v3888
      %4284 = vst.msk [vmem:[%s145 + $0x6f0] sm:$0xff] %vm4061, %v3893
      %4285 = vst.msk [vmem:[%s145 + $0x6f8] sm:$0xff] %vm4061, %v3898
      %4286 = vst.msk [vmem:[%s145 + $0x700] sm:$0xff] %vm4061, %v3903
      %4287 = vst.msk [vmem:[%s145 + $0x708] sm:$0xff] %vm4061, %v3908
      %4288 = vst.msk [vmem:[%s145 + $0x710] sm:$0xff] %vm4061, %v3913
      %4289 = vst.msk [vmem:[%s145 + $0x718] sm:$0xff] %vm4061, %v3918
      %4290 = vst.msk [vmem:[%s145 + $0x720] sm:$0xff] %vm4061, %v3923
      %4291 = vst.msk [vmem:[%s145 + $0x728] sm:$0xff] %vm4061, %v3928
      %4292 = vst.msk [vmem:[%s145 + $0x730] sm:$0xff] %vm4061, %v3933
      %4293 = vst.msk [vmem:[%s145 + $0x738] sm:$0xff] %vm4061, %v3938
      %4294 = vst.msk [vmem:[%s145 + $0x740] sm:$0xff] %vm4061, %v3943
      %4295 = vst.msk [vmem:[%s145 + $0x748] sm:$0xff] %vm4061, %v3948
      %4296 = vst.msk [vmem:[%s145 + $0x750] sm:$0xff] %vm4061, %v3953
      %4297 = vst.msk [vmem:[%s145 + $0x758] sm:$0xff] %vm4061, %v3958
      %4298 = vst.msk [vmem:[%s145 + $0x760] sm:$0xff] %vm4061, %v3963
      %4299 = vst.msk [vmem:[%s145 + $0x768] sm:$0xff] %vm4061, %v3968
      %4300 = vst.msk [vmem:[%s145 + $0x770] sm:$0xff] %vm4061, %v3973
      %4301 = vst.msk [vmem:[%s145 + $0x778] sm:$0xff] %vm4061, %v3978
      %4302 = vst.msk [vmem:[%s145 + $0x780] sm:$0xff] %vm4061, %v3983
      %4303 = vst.msk [vmem:[%s145 + $0x788] sm:$0xff] %vm4061, %v3988
      %4304 = vst.msk [vmem:[%s145 + $0x790] sm:$0xff] %vm4061, %v3993
      %4305 = vst.msk [vmem:[%s145 + $0x798] sm:$0xff] %vm4061, %v3998
      %4306 = vst.msk [vmem:[%s145 + $0x7a0] sm:$0xff] %vm4061, %v4003
      %4307 = vst.msk [vmem:[%s145 + $0x7a8] sm:$0xff] %vm4061, %v4008
      %4308 = vst.msk [vmem:[%s145 + $0x7b0] sm:$0xff] %vm4061, %v4013
      %4309 = vst.msk [vmem:[%s145 + $0x7b8] sm:$0xff] %vm4061, %v4018
      %4310 = vst.msk [vmem:[%s145 + $0x7c0] sm:$0xff] %vm4061, %v4023
      %4311 = vst.msk [vmem:[%s145 + $0x7c8] sm:$0xff] %vm4061, %v4028
      %4312 = vst.msk [vmem:[%s145 + $0x7d0] sm:$0xff] %vm4061, %v4033
      %4313 = vst.msk [vmem:[%s145 + $0x7d8] sm:$0xff] %vm4061, %v4038
      %4314 = vst.msk [vmem:[%s145 + $0x7e0] sm:$0xff] %vm4061, %v4043
      %4315 = vst.msk [vmem:[%s145 + $0x7e8] sm:$0xff] %vm4061, %v4048
      %4316 = vst.msk [vmem:[%s145 + $0x7f0] sm:$0xff] %vm4061, %v4053
      %4317 = vst.msk [vmem:[%s145 + $0x7f8] sm:$0xff] %vm4061, %v4058
      %s4318 = smul.u32 256, %s13
      %p4319 = scmp.lt.s32.totalorder %s4318, 511
      %s4320 = scalar_select %p4319, %s4318, 511
      %s4321 = smul.addr %s4320, 8
      %s4322 = scalar_lea.vmem %s2, %s4321
      // Predicated region
      $region29: #{tpu_custom_call.1} parent=27 // pred_check
        %p4323 = pneg %p78
      $region30: #{tpu_custom_call.1} parent=27 // pred_check_branch
        %4325 = sbr.rel (%p4323) target = $region32
      $region31: #{tpu_custom_call.1} parent=27 // pred_region
        %s4326 = smul.u32 256, %s13
      $region32: #{tpu_custom_call.1} parent=27 // pred_fallthru
        _
    $region28: #{tpu_custom_call.1} parent=5 // pred_fallthru
      _
    %p4327 = scmp.le.s32.totalorder 2, %s8
    // Predicated region
    $region33: #{tpu_custom_call.1} parent=5 // pred_check
      %p4328 = pneg %p4327
    $region34: #{tpu_custom_call.1} parent=5 // pred_check_branch
      %4330 = sbr.rel (%p4328) target = $region36
    $region35: #{tpu_custom_call.1} parent=5 // pred_region
      %s4331 = ssub.s32 %s8, 2
      // Predicated region
      $region37: #{tpu_custom_call.1} parent=35 // pred_check
        %p4332 = pneg %p84
      $region38: #{tpu_custom_call.1} parent=35 // pred_check_branch
        %4334 = sbr.rel (%p4332) target = $region40
      $region39: #{tpu_custom_call.1} parent=35 // pred_region
        %s4335 = smul.u32 256, %s14
        %p4336 = scmp.lt.s32.totalorder %s4335, 511
        %s4337 = scalar_select %p4336, %s4335, 511
        %s4338 = smul.addr %s4337, 8
        %s4339 = scalar_lea.vmem %s2, %s4338
      $region40: #{tpu_custom_call.1} parent=35 // pred_fallthru
        _
    $region36: #{tpu_custom_call.1} parent=5 // pred_fallthru
      _
  $region6: #{tpu_custom_call.1} parent=0 // loop_footer
    %s12 = sadd.s32 1, %s8
  $region7: #{tpu_custom_call.1} parent=0 // loop_footer_branch
    %7 = sbr.rel target = $region3
  $region8: #{tpu_custom_call.1} parent=0 // loop_exit
    _

</llo_original>
